<compile_context>
chip_gen: v7x
topology: tpu7x:2x2x1
jax: 0.10.0
libtpu: 0.0.40
codegen_flags: <defaults>
</compile_context>

<pallas_src>
import jax
import jax.numpy as jnp
from jax.experimental import pallas as pl
from jax.experimental.pallas import tpu as pltpu

D = 768  # hidden size fixed by the module (nn.Linear(768*2, 768), nn.Linear(768, 768))


def _round_up(x, m):
    return ((x + m - 1) // m) * m


def _pick_config():
    """Generation-aware defaults: (max row tile, vmem limit, MXU alignment,
    prefer-even-step-count, single-buffer weights)."""
    try:
        kind = jax.devices()[0].device_kind.lower()
    except Exception:  # pragma: no cover - defensive
        kind = ""
    mib = 1 << 20
    if "v7" in kind or "tpu7" in kind:
        # 64 MiB physical VMEM/TC, 2 TCs/chip.
        return dict(tm=512, vmem=48 * mib, align=256, even_steps=True,
                    single_buffer_weights=True)
    if "v6" in kind:
        # HBM-bound; 512-row bf16 tiles already sit on the roofline plateau.
        return dict(tm=512, vmem=64 * mib, align=256, even_steps=False,
                    single_buffer_weights=False)
    if "v5" in kind:
        # MXU-bound after bf16 I/O; 128x128 MXU; default scoped limit is 16 MiB.
        return dict(tm=512, vmem=96 * mib, align=128, even_steps=False,
                    single_buffer_weights=False)
    # Unknown / older generations: conservative.
    return dict(tm=256, vmem=48 * mib, align=128, even_steps=False,
                single_buffer_weights=False)


def _choose_tm(n_rows, auto_tm, align, prefer_even_steps):
    """Row tile: multiple of 16 (bf16 sublane pack), <= auto_tm, aligned to the
    MXU tile where possible, aimed at >= ~4 pipeline steps so input DMA /
    compute / output writeback overlap.  tm never exceeds N rounded down to 16,
    so only the LAST grid block is ragged (standard Pallas handling)."""
    if n_rows <= 16:
        return max(1, n_rows)                 # single exact block (full-dim escape)
    n_floor16 = (n_rows // 16) * 16
    tm = min(auto_tm, max(align, _round_up(pl.cdiv(n_rows, 4), align)))
    tm = max(16, min(tm, n_floor16))
    tm = (tm // 16) * 16
    if prefer_even_steps:
        steps = pl.cdiv(n_rows, tm)
        if steps > 1 and steps % 2 == 1:      # shard evenly across 2 TCs (v7x)
            tm = max(16, min(tm, _round_up(pl.cdiv(n_rows, steps + 1), 16)))
    return tm


def prepare_fusion_params(w1, b1, w2, b2):
    """Pre-split / pre-cast the parameters once (do NOT redo this per forward).

    w1: (1536, 768) = base_fusion.weight.T   (x @ w1 form)
    w2: (768, 768)  = base_weight.weight.T
    b1, b2: (768,)
    Weights become bf16 MXU operands (f32 accumulation in-kernel); biases stay f32."""
    return dict(
        w1a=w1[:D].astype(jnp.bfloat16),        # applied to `base`
        w1b=w1[D:].astype(jnp.bfloat16),        # applied to `novel`
        b1=b1.reshape(1, D).astype(jnp.float32),
        w2=w2.astype(jnp.bfloat16),
        b2=b2.reshape(1, D).astype(jnp.float32),
    )


def fusion_kernel(base_ref, novel_ref, pos_abs_ref, abs_novel_ref,
                  w1a_ref, w1b_ref, b1_ref, w2_ref, b2_ref,
                  new_ref, abs_ref):
    base = base_ref[...]          # bf16 (tm, D) streamed tile
    novel = novel_ref[...]        # bf16 (tm, D)

    # MXU operands in bf16, f32 accumulation (casts below are no-ops for bf16 I/O).
    base_mm = base if base.dtype == jnp.bfloat16 else base.astype(jnp.bfloat16)
    novel_mm = novel if novel.dtype == jnp.bfloat16 else novel.astype(jnp.bfloat16)

    # deep_z = relu(cat(base, novel) @ W1.T + b1)  (split-matmul form, identical math)
    deep_z = (jnp.dot(base_mm, w1a_ref[...], preferred_element_type=jnp.float32)
              + jnp.dot(novel_mm, w1b_ref[...], preferred_element_type=jnp.float32)
              + b1_ref[...])
    deep_z = jnp.maximum(deep_z, 0.0)

    # gate = sigmoid(deep_z @ W2.T + b2)
    logits = jnp.dot(deep_z.astype(jnp.bfloat16), w2_ref[...],
                     preferred_element_type=jnp.float32) + b2_ref[...]
    gate = jax.nn.sigmoid(logits)

    # new_slot_tag_embeds = 1 * (gate * base + (1 - gate) * novel)  (f32 blend)
    base_f = base.astype(jnp.float32)
    novel_f = novel.astype(jnp.float32)
    new_ref[...] = (gate * base_f + (1.0 - gate) * novel_f).astype(new_ref.dtype)

    # slot_tag_embeds_abs = 0.5 * pos_abs + 0.5 * abs_novel  (f32 average)
    abs_ref[...] = (0.5 * (pos_abs_ref[...].astype(jnp.float32)
                           + abs_novel_ref[...].astype(jnp.float32))
                    ).astype(abs_ref.dtype)


def fusion_net_forward(base, novel, pos_abs, abs_novel, params,
                       *, io_dtype=jnp.bfloat16, tm=None, vmem_limit_bytes=None):
    """base/novel/pos_abs/abs_novel: (N, 768); params from prepare_fusion_params.
    Returns (new_slot_tag_embeds, slot_tag_embeds_abs), both (N, 768) in io_dtype."""
    N, d = base.shape
    assert d == D

    cfg = _pick_config()
    if tm is None:
        tm = _choose_tm(N, cfg["tm"], cfg["align"], cfg["even_steps"])
    if vmem_limit_bytes is None:
        vmem_limit_bytes = cfg["vmem"]

    # Stream activations at io_dtype (default bf16 -> halves HBM traffic of the
    # 4 inputs + 2 outputs; the kernel is memory-bound).  These casts are no-ops
    # when the caller already holds bf16 — the preferred way to use this kernel.
    base = base.astype(io_dtype)
    novel = novel.astype(io_dtype)
    pos_abs = pos_abs.astype(io_dtype)
    abs_novel = abs_novel.astype(io_dtype)

    grid = (pl.cdiv(N, tm),)   # no host-side pad; Pallas masks the ragged last block
    row_spec = pl.BlockSpec((tm, D), lambda i: (i, 0))
    # Constant index maps -> weights/biases stay resident (never re-DMA'd).
    if cfg["single_buffer_weights"]:
        w_spec = pl.BlockSpec((D, D), lambda i: (0, 0), pipeline_mode=pl.Buffered(1))
        b_spec = pl.BlockSpec((1, D), lambda i: (0, 0), pipeline_mode=pl.Buffered(1))
    else:
        w_spec = pl.BlockSpec((D, D), lambda i: (0, 0))
        b_spec = pl.BlockSpec((1, D), lambda i: (0, 0))

    io_bytes = jnp.dtype(io_dtype).itemsize
    cost = pl.CostEstimate(
        flops=2 * N * D * D * 3,                  # base@W1a + novel@W1b + deep_z@W2
        transcendentals=2 * N * D,                # sigmoid ~ exp + reciprocal
        bytes_accessed=(6 * N * D * io_bytes      # 4 streamed inputs + 2 outputs
                        + 3 * D * D * 2           # bf16 weights
                        + 2 * D * 4),             # f32 biases
    )

    new_out, abs_out = pl.pallas_call(
        fusion_kernel,
        out_shape=(jax.ShapeDtypeStruct((N, D), io_dtype),
                   jax.ShapeDtypeStruct((N, D), io_dtype)),
        grid_spec=pltpu.PrefetchScalarGridSpec(
            num_scalar_prefetch=0,
            grid=grid,
            in_specs=[row_spec, row_spec, row_spec, row_spec,
                      w_spec, w_spec, b_spec,
                      w_spec, b_spec],
            out_specs=[row_spec, row_spec],
        ),
        compiler_params=pltpu.CompilerParams(
            dimension_semantics=("parallel",),
            vmem_limit_bytes=vmem_limit_bytes),
        cost_estimate=cost,
    )(base, novel, pos_abs, abs_novel,
      params["w1a"], params["w1b"], params["b1"], params["w2"], params["b2"])

    return new_out, abs_out


def reference_forward(base, novel, pos_abs, abs_novel, w1, b1, w2, b2,
                      matmul_dtype=jnp.float32):
    """Pure-JAX reference (f32 inputs). With matmul_dtype=bf16 it mirrors the
    kernel's bf16-operand / f32-accumulate matmuls; with f32 it is the exact
    PyTorch math."""
    z = jnp.concatenate([base, novel], axis=-1).astype(matmul_dtype)
    deep_z = jax.nn.relu(
        jnp.dot(z, w1.astype(matmul_dtype), preferred_element_type=jnp.float32) + b1)
    gate = jax.nn.sigmoid(
        jnp.dot(deep_z.astype(matmul_dtype), w2.astype(matmul_dtype),
                preferred_element_type=jnp.float32) + b2)
    new = gate * base + (1.0 - gate) * novel
    abs_out = 0.5 * pos_abs + 0.5 * abs_novel
    return new, abs_out


if __name__ == "__main__":
    key = jax.random.PRNGKey(0)
    ks = jax.random.split(key, 8)

    # Small example: batch=2, seq=8 -> N = 16 rows of 768-dim embeddings.
    batch, seq = 2, 8
    N = batch * seq
    io_dtype = jnp.bfloat16   # caller holds bf16 activations (the fast path)

    base = jax.random.normal(ks[0], (N, D), jnp.float32).astype(io_dtype)
    novel = jax.random.normal(ks[1], (N, D), jnp.float32).astype(io_dtype)
    pos_abs = jax.random.normal(ks[2], (N, D), jnp.float32).astype(io_dtype)
    abs_novel = jax.random.normal(ks[3], (N, D), jnp.float32).astype(io_dtype)

    # Parameters stored in x @ W form (i.e. PyTorch weight.T).
    w1 = jax.random.normal(ks[4], (2 * D, D), jnp.float32) * 0.02   # base_fusion
    b1 = jax.random.normal(ks[5], (D,), jnp.float32) * 0.02
    w2 = jax.random.normal(ks[6], (D, D), jnp.float32) * 0.02       # base_weight
    b2 = jax.random.normal(ks[7], (D,), jnp.float32) * 0.02

    params = prepare_fusion_params(w1, b1, w2, b2)   # one-time split / cast

    new_out, abs_out = fusion_net_forward(base, novel, pos_abs, abs_novel, params)
    jax.block_until_ready((new_out, abs_out))

    # References computed from the SAME bf16 inputs (upcast to f32).
    base_f, novel_f = base.astype(jnp.float32), novel.astype(jnp.float32)
    pos_f, absn_f = pos_abs.astype(jnp.float32), abs_novel.astype(jnp.float32)

    ref_new_bf, ref_abs = reference_forward(base_f, novel_f, pos_f, absn_f,
                                            w1, b1, w2, b2,
                                            matmul_dtype=jnp.bfloat16)
    assert jnp.allclose(new_out.astype(jnp.float32), ref_new_bf, atol=2e-2, rtol=2e-2)
    assert jnp.allclose(abs_out.astype(jnp.float32), ref_abs, atol=2e-2, rtol=2e-2)

    # Looser check against exact f32 PyTorch-equivalent math (bf16 MXU operands
    # and bf16 outputs introduce ~1e-2-level relative differences).
    ref_new_f32, _ = reference_forward(base_f, novel_f, pos_f, absn_f,
                                       w1, b1, w2, b2,
                                       matmul_dtype=jnp.float32)
    assert jnp.allclose(new_out.astype(jnp.float32), ref_new_f32, atol=5e-2, rtol=5e-2)

    # Ragged-tail case (N not a multiple of the row tile) exercising the
    # pad-free last-block path (batch=5, seq=8 -> 40 rows, tm=32, 2 grid steps).
    N2 = 5 * seq
    k2 = jax.random.split(jax.random.PRNGKey(1), 4)
    acts2 = [jax.random.normal(k, (N2, D), jnp.float32).astype(io_dtype) for k in k2]
    new2, abs2 = fusion_net_forward(*acts2, params)
    jax.block_until_ready((new2, abs2))
    ref_new2, ref_abs2 = reference_forward(*[a.astype(jnp.float32) for a in acts2],
                                           w1, b1, w2, b2,
                                           matmul_dtype=jnp.bfloat16)
    assert jnp.allclose(new2.astype(jnp.float32), ref_new2, atol=2e-2, rtol=2e-2)
    assert jnp.allclose(abs2.astype(jnp.float32), ref_abs2, atol=2e-2, rtol=2e-2)

    print("KERNEL_OK")
</pallas_src>

<mosaic_0001>
module attributes {stable_mosaic.version = 11 : i64} {
  func.func @fusion_kernel(%arg0: i32, %arg1: memref<16x768xbf16, #tpu.memory_space<vmem>>, %arg2: memref<16x768xbf16, #tpu.memory_space<vmem>>, %arg3: memref<16x768xbf16, #tpu.memory_space<vmem>>, %arg4: memref<16x768xbf16, #tpu.memory_space<vmem>>, %arg5: memref<768x768xbf16, #tpu.memory_space<vmem>>, %arg6: memref<768x768xbf16, #tpu.memory_space<vmem>>, %arg7: memref<1x768xf32, #tpu.memory_space<vmem>>, %arg8: memref<768x768xbf16, #tpu.memory_space<vmem>>, %arg9: memref<1x768xf32, #tpu.memory_space<vmem>>, %arg10: memref<16x768xbf16, #tpu.memory_space<vmem>>, %arg11: memref<16x768xbf16, #tpu.memory_space<vmem>>) attributes {dimension_semantics = [#tpu.dimension_semantics<parallel>], iteration_bounds = array<i64: 1>, scalar_prefetch = 0 : i64, scratch_operands = 0 : i64, tpu.core_type = #tpu.core_type<tc>, window_params = [{transform_indices = @transform_0, window_bounds = array<i64: 16, 768>}, {transform_indices = @transform_1, window_bounds = array<i64: 16, 768>}, {transform_indices = @transform_2, window_bounds = array<i64: 16, 768>}, {transform_indices = @transform_3, window_bounds = array<i64: 16, 768>}, {pipeline_mode = #tpu.pipeline_mode<synchronous>, transform_indices = @transform_4, window_bounds = array<i64: 768, 768>}, {pipeline_mode = #tpu.pipeline_mode<synchronous>, transform_indices = @transform_5, window_bounds = array<i64: 768, 768>}, {pipeline_mode = #tpu.pipeline_mode<synchronous>, transform_indices = @transform_6, window_bounds = array<i64: 1, 768>}, {pipeline_mode = #tpu.pipeline_mode<synchronous>, transform_indices = @transform_7, window_bounds = array<i64: 768, 768>}, {pipeline_mode = #tpu.pipeline_mode<synchronous>, transform_indices = @transform_8, window_bounds = array<i64: 1, 768>}, {transform_indices = @transform_9, window_bounds = array<i64: 16, 768>}, {transform_indices = @transform_10, window_bounds = array<i64: 16, 768>}]} {
    %c0 = arith.constant 0 : index
    %c0_0 = arith.constant 0 : index
    %0 = vector.load %arg1[%c0, %c0_0] : memref<16x768xbf16, #tpu.memory_space<vmem>>, vector<16x768xbf16>
    %c0_1 = arith.constant 0 : index
    %c0_2 = arith.constant 0 : index
    %1 = vector.load %arg2[%c0_1, %c0_2] : memref<16x768xbf16, #tpu.memory_space<vmem>>, vector<16x768xbf16>
    %c0_3 = arith.constant 0 : index
    %c0_4 = arith.constant 0 : index
    %2 = vector.load %arg5[%c0_3, %c0_4] : memref<768x768xbf16, #tpu.memory_space<vmem>>, vector<768x768xbf16>
    %cst = arith.constant dense<0.000000e+00> : vector<16x768xf32>
    %3 = tpu.matmul %0, %2, %cst {dimension_numbers = #tpu.dot_dimension_numbers<[1], [0], [0], [1], [0, 0, 1, 1], [], []>} : vector<16x768xbf16>, vector<768x768xbf16>, vector<16x768xf32> -> vector<16x768xf32>
    %c0_5 = arith.constant 0 : index
    %c0_6 = arith.constant 0 : index
    %4 = vector.load %arg6[%c0_5, %c0_6] : memref<768x768xbf16, #tpu.memory_space<vmem>>, vector<768x768xbf16>
    %cst_7 = arith.constant dense<0.000000e+00> : vector<16x768xf32>
    %5 = tpu.matmul %1, %4, %cst_7 {dimension_numbers = #tpu.dot_dimension_numbers<[1], [0], [0], [1], [0, 0, 1, 1], [], []>} : vector<16x768xbf16>, vector<768x768xbf16>, vector<16x768xf32> -> vector<16x768xf32>
    %6 = arith.addf %3, %5 : vector<16x768xf32>
    %c0_8 = arith.constant 0 : index
    %c0_9 = arith.constant 0 : index
    %7 = vector.load %arg7[%c0_8, %c0_9] : memref<1x768xf32, #tpu.memory_space<vmem>>, vector<1x768xf32>
    %8 = vector.broadcast %7 : vector<1x768xf32> to vector<16x768xf32>
    %9 = arith.addf %6, %8 : vector<16x768xf32>
    %cst_10 = arith.constant 0.000000e+00 : f32
    %10 = vector.broadcast %cst_10 : f32 to vector<16x768xf32>
    %11 = arith.maximumf %9, %10 : vector<16x768xf32>
    %12 = arith.truncf %11 : vector<16x768xf32> to vector<16x768xbf16>
    %c0_11 = arith.constant 0 : index
    %c0_12 = arith.constant 0 : index
    %13 = vector.load %arg8[%c0_11, %c0_12] : memref<768x768xbf16, #tpu.memory_space<vmem>>, vector<768x768xbf16>
    %cst_13 = arith.constant dense<0.000000e+00> : vector<16x768xf32>
    %14 = tpu.matmul %12, %13, %cst_13 {dimension_numbers = #tpu.dot_dimension_numbers<[1], [0], [0], [1], [0, 0, 1, 1], [], []>} : vector<16x768xbf16>, vector<768x768xbf16>, vector<16x768xf32> -> vector<16x768xf32>
    %c0_14 = arith.constant 0 : index
    %c0_15 = arith.constant 0 : index
    %15 = vector.load %arg9[%c0_14, %c0_15] : memref<1x768xf32, #tpu.memory_space<vmem>>, vector<1x768xf32>
    %16 = vector.broadcast %15 : vector<1x768xf32> to vector<16x768xf32>
    %17 = arith.addf %14, %16 : vector<16x768xf32>
    %18 = arith.negf %17 : vector<16x768xf32>
    %19 = math.exp %18 : vector<16x768xf32>
    %cst_16 = arith.constant 1.000000e+00 : f32
    %20 = vector.broadcast %cst_16 : f32 to vector<16x768xf32>
    %21 = arith.addf %20, %19 : vector<16x768xf32>
    %22 = arith.divf %20, %21 : vector<16x768xf32>
    %23 = arith.extf %0 : vector<16x768xbf16> to vector<16x768xf32>
    %24 = arith.extf %1 : vector<16x768xbf16> to vector<16x768xf32>
    %25 = arith.mulf %22, %23 : vector<16x768xf32>
    %cst_17 = arith.constant 1.000000e+00 : f32
    %26 = vector.broadcast %cst_17 : f32 to vector<16x768xf32>
    %27 = arith.subf %26, %22 : vector<16x768xf32>
    %28 = arith.mulf %27, %24 : vector<16x768xf32>
    %29 = arith.addf %25, %28 : vector<16x768xf32>
    %30 = arith.truncf %29 : vector<16x768xf32> to vector<16x768xbf16>
    %c0_18 = arith.constant 0 : index
    %c0_19 = arith.constant 0 : index
    %31 = vector.load %arg10[%c0_18, %c0_19] : memref<16x768xbf16, #tpu.memory_space<vmem>>, vector<16x768xbf16>
    tpu.vector_store %arg10[%c0_18, %c0_19], %30 {strides = array<i32>} : memref<16x768xbf16, #tpu.memory_space<vmem>>, vector<16x768xbf16>,
    %c0_20 = arith.constant 0 : index
    %c0_21 = arith.constant 0 : index
    %32 = vector.load %arg3[%c0_20, %c0_21] : memref<16x768xbf16, #tpu.memory_space<vmem>>, vector<16x768xbf16>
    %33 = arith.extf %32 : vector<16x768xbf16> to vector<16x768xf32>
    %c0_22 = arith.constant 0 : index
    %c0_23 = arith.constant 0 : index
    %34 = vector.load %arg4[%c0_22, %c0_23] : memref<16x768xbf16, #tpu.memory_space<vmem>>, vector<16x768xbf16>
    %35 = arith.extf %34 : vector<16x768xbf16> to vector<16x768xf32>
    %36 = arith.addf %33, %35 : vector<16x768xf32>
    %cst_24 = arith.constant 5.000000e-01 : f32
    %37 = vector.broadcast %cst_24 : f32 to vector<16x768xf32>
    %38 = arith.mulf %37, %36 : vector<16x768xf32>
    %39 = arith.truncf %38 : vector<16x768xf32> to vector<16x768xbf16>
    %c0_25 = arith.constant 0 : index
    %c0_26 = arith.constant 0 : index
    %40 = vector.load %arg11[%c0_25, %c0_26] : memref<16x768xbf16, #tpu.memory_space<vmem>>, vector<16x768xbf16>
    tpu.vector_store %arg11[%c0_25, %c0_26], %39 {strides = array<i32>} : memref<16x768xbf16, #tpu.memory_space<vmem>>, vector<16x768xbf16>,
    return
  }
  func.func @transform_0(%arg0: i32) -> (i32, i32) {
    %c0_i32 = arith.constant 0 : i32
    %c0_i32_0 = arith.constant 0 : i32
    return %arg0, %c0_i32 : i32, i32
  }
  func.func @transform_1(%arg0: i32) -> (i32, i32) {
    %c0_i32 = arith.constant 0 : i32
    %c0_i32_0 = arith.constant 0 : i32
    return %arg0, %c0_i32 : i32, i32
  }
  func.func @transform_2(%arg0: i32) -> (i32, i32) {
    %c0_i32 = arith.constant 0 : i32
    %c0_i32_0 = arith.constant 0 : i32
    return %arg0, %c0_i32 : i32, i32
  }
  func.func @transform_3(%arg0: i32) -> (i32, i32) {
    %c0_i32 = arith.constant 0 : i32
    %c0_i32_0 = arith.constant 0 : i32
    return %arg0, %c0_i32 : i32, i32
  }
  func.func @transform_4(%arg0: i32) -> (i32, i32) {
    %c0_i32 = arith.constant 0 : i32
    %c0_i32_0 = arith.constant 0 : i32
    %c0_i32_1 = arith.constant 0 : i32
    return %c0_i32, %c0_i32_0 : i32, i32
  }
  func.func @transform_5(%arg0: i32) -> (i32, i32) {
    %c0_i32 = arith.constant 0 : i32
    %c0_i32_0 = arith.constant 0 : i32
    %c0_i32_1 = arith.constant 0 : i32
    return %c0_i32, %c0_i32_0 : i32, i32
  }
  func.func @transform_6(%arg0: i32) -> (i32, i32) {
    %c0_i32 = arith.constant 0 : i32
    %c0_i32_0 = arith.constant 0 : i32
    %c0_i32_1 = arith.constant 0 : i32
    return %c0_i32, %c0_i32_0 : i32, i32
  }
  func.func @transform_7(%arg0: i32) -> (i32, i32) {
    %c0_i32 = arith.constant 0 : i32
    %c0_i32_0 = arith.constant 0 : i32
    %c0_i32_1 = arith.constant 0 : i32
    return %c0_i32, %c0_i32_0 : i32, i32
  }
  func.func @transform_8(%arg0: i32) -> (i32, i32) {
    %c0_i32 = arith.constant 0 : i32
    %c0_i32_0 = arith.constant 0 : i32
    %c0_i32_1 = arith.constant 0 : i32
    return %c0_i32, %c0_i32_0 : i32, i32
  }
  func.func @transform_9(%arg0: i32) -> (i32, i32) {
    %c0_i32 = arith.constant 0 : i32
    %c0_i32_0 = arith.constant 0 : i32
    return %arg0, %c0_i32 : i32, i32
  }
  func.func @transform_10(%arg0: i32) -> (i32, i32) {
    %c0_i32 = arith.constant 0 : i32
    %c0_i32_0 = arith.constant 0 : i32
    return %arg0, %c0_i32 : i32, i32
  }
}

</mosaic_0001>

<llo_original>
// kernel: tpu_custom_call.1
$region0: #{tpu_custom_call.1}
  #allocation0 [shape = 'u32[]', space=smem, size = 0x4, offset = 0x4, fixed_abs, tag = 'smem constant byte address 0x4 - core index']
  #allocation1 [shape = 'u32[144,128]{1,0:T(1,128)}', space=vmem, size = 0x12000, scoped, tag = 'internal scratch']
  %s0 = inlined_call_operand.hbm [shape: bf16[16,768], index: 0, kind: input, shape index: {}]
  %s1 = inlined_call_operand.hbm [shape: bf16[16,768], index: 1, kind: input, shape index: {}]
  %s2 = inlined_call_operand.hbm [shape: bf16[16,768], index: 2, kind: input, shape index: {}]
  %s3 = inlined_call_operand.hbm [shape: bf16[16,768], index: 3, kind: input, shape index: {}]
  %s4 = inlined_call_operand.hbm [shape: bf16[768,768], index: 4, kind: input, shape index: {}]
  %s5 = inlined_call_operand.hbm [shape: bf16[768,768], index: 5, kind: input, shape index: {}]
  %s6 = inlined_call_operand.hbm [shape: f32[1,768], index: 6, kind: input, shape index: {}]
  %s7 = inlined_call_operand.hbm [shape: bf16[768,768], index: 7, kind: input, shape index: {}]
  %s8 = inlined_call_operand.hbm [shape: f32[1,768], index: 8, kind: input, shape index: {}]
  %s9 = inlined_call_operand.hbm [shape: bf16[16,768], index: 9, kind: output, shape index: {0}]
  %s10 = inlined_call_operand.hbm [shape: bf16[16,768], index: 10, kind: output, shape index: {1}]
  %11 = xla_tuple %s9, %s10
  %s12 = sld [smem:[#allocation0]]
  $region90: #{tpu_custom_call.1} parent=0
    _
  %s14 = ssub.s32 1, %s12
  %s15 = scalar_select 0, %s14, %s12
  $region1: #{tpu_custom_call.1} parent=0
    #allocation2 [shape = 'u8[24576]{0}', space=vmem, size = 0x6000, scoped, tag = 'input window, operand 0, single buffered']
    #allocation3 [shape = 's32[1]{0}', space=sflag, size = 0x4, scoped, tag = 'scoped memory for tpu_custom_call.1']
    #allocation4 [shape = 's32[1]{0}', space=sflag, size = 0x4, scoped, tag = 'scoped memory for tpu_custom_call.1']
    #allocation5 [shape = 'u8[24576]{0}', space=vmem, size = 0x6000, scoped, tag = 'input window, operand 1, single buffered']
    #allocation6 [shape = 's32[1]{0}', space=sflag, size = 0x4, scoped, tag = 'scoped memory for tpu_custom_call.1']
    #allocation7 [shape = 'u8[24576]{0}', space=vmem, size = 0x6000, scoped, tag = 'input window, operand 2, single buffered']
    #allocation8 [shape = 'u8[24576]{0}', space=vmem, size = 0x6000, scoped, tag = 'input window, operand 3, single buffered']
    #allocation9 [shape = 's32[1]{0}', space=sflag, size = 0x4, scoped, tag = 'scoped memory for tpu_custom_call.1']
    #allocation10 [shape = 'u8[1179648]{0}', space=vmem, size = 0x120000, scoped, tag = 'input window, operand 4, single buffered']
    #allocation11 [shape = 'u8[1179648]{0}', space=vmem, size = 0x120000, scoped, tag = 'input window, operand 5, single buffered']
    #allocation12 [shape = 's32[1]{0}', space=sflag, size = 0x4, scoped, tag = 'scoped memory for tpu_custom_call.1']
    #allocation13 [shape = 'u8[3072]{0}', space=vmem, size = 0xc00, scoped, tag = 'input window, operand 6, single buffered']
    #allocation14 [shape = 'u8[1179648]{0}', space=vmem, size = 0x120000, scoped, tag = 'input window, operand 7, single buffered']
    #allocation15 [shape = 's32[1]{0}', space=sflag, size = 0x4, scoped, tag = 'scoped memory for tpu_custom_call.1']
    #allocation16 [shape = 'u8[3072]{0}', space=vmem, size = 0xc00, scoped, tag = 'input window, operand 8, single buffered']
    #allocation17 [shape = 'u8[24576]{0}', space=vmem, size = 0x6000, scoped, tag = 'output window, operand 0, single buffered']
    #allocation18 [shape = 'u8[24576]{0}', space=vmem, size = 0x6000, scoped, tag = 'output window, operand 1, single buffered']
    #allocation19 [shape = 's32[1]{0}', space=sflag, size = 0x4, scoped, tag = 'scoped memory for tpu_custom_call.1']
    %16 = vsyncpa [#allocation3], 0
    %17 = vsyncpa [#allocation6], 0
    %18 = vsyncpa [#allocation9], 0
    %19 = vsyncpa [#allocation12], 0
    %20 = vsyncpa [#allocation15], 0
    %21 = vsyncpa [#allocation4], 0
    %22 = vsyncpa [#allocation19], 0
    // Predicated region
    $region2: #{tpu_custom_call.1} parent=1 // pred_check
      _
    $region3: #{tpu_custom_call.1} parent=1 // pred_check_branch
      %24 = sbr.rel (0) target = $region5
    $region4: #{tpu_custom_call.1} parent=1 // pred_region
      %s26 = ssub.s32 768, 768
      %27 = vsyncadd [#allocation3], %s26
      %s28 = sshll.u32 [#allocation2], 4
      %s29 = int_to_ptr.vmem [resolvable:$true] %s28
      %34 = dma.hbm_to_vmem [thread:$0]  %s0, 768, %s29, [#allocation3], 384, 384, 24
    $region5: #{tpu_custom_call.1} parent=1 // pred_fallthru
      _
    // Predicated region
    $region6: #{tpu_custom_call.1} parent=1 // pred_check
      _
    $region7: #{tpu_custom_call.1} parent=1 // pred_check_branch
      %36 = sbr.rel (0) target = $region9
    $region8: #{tpu_custom_call.1} parent=1 // pred_region
      %s38 = ssub.s32 768, 768
      %39 = vsyncadd [#allocation6], %s38
      %s40 = sshll.u32 [#allocation5], 4
      %s41 = int_to_ptr.vmem [resolvable:$true] %s40
      %46 = dma.hbm_to_vmem [thread:$0]  %s1, 768, %s41, [#allocation6], 384, 384, 24
    $region9: #{tpu_custom_call.1} parent=1 // pred_fallthru
      _
    // Predicated region
    $region10: #{tpu_custom_call.1} parent=1 // pred_check
      _
    $region11: #{tpu_custom_call.1} parent=1 // pred_check_branch
      %48 = sbr.rel (0) target = $region13
    $region12: #{tpu_custom_call.1} parent=1 // pred_region
      %s50 = ssub.s32 768, 768
      %51 = vsyncadd [#allocation6], %s50
      %s52 = sshll.u32 [#allocation7], 4
      %s53 = int_to_ptr.vmem [resolvable:$true] %s52
      %58 = dma.hbm_to_vmem [thread:$0]  %s2, 768, %s53, [#allocation6], 384, 384, 24
    $region13: #{tpu_custom_call.1} parent=1 // pred_fallthru
      _
    // Predicated region
    $region14: #{tpu_custom_call.1} parent=1 // pred_check
      _
    $region15: #{tpu_custom_call.1} parent=1 // pred_check_branch
      %60 = sbr.rel (0) target = $region17
    $region16: #{tpu_custom_call.1} parent=1 // pred_region
      %s62 = ssub.s32 768, 768
      %63 = vsyncadd [#allocation9], %s62
      %s64 = sshll.u32 [#allocation8], 4
      %s65 = int_to_ptr.vmem [resolvable:$true] %s64
      %70 = dma.hbm_to_vmem [thread:$0]  %s3, 768, %s65, [#allocation9], 384, 384, 24
    $region17: #{tpu_custom_call.1} parent=1 // pred_fallthru
      _
    // Predicated region
    $region18: #{tpu_custom_call.1} parent=1 // pred_check
      _
    $region19: #{tpu_custom_call.1} parent=1 // pred_check_branch
      %72 = sbr.rel (0) target = $region21
    $region20: #{tpu_custom_call.1} parent=1 // pred_region
      %s74 = ssub.s32 36864, 36864
      %75 = vsyncadd [#allocation9], %s74
      %s76 = sshll.u32 [#allocation10], 4
      %s77 = int_to_ptr.vmem [resolvable:$true] %s76
      %82 = dma.hbm_to_vmem [thread:$0]  %s4, 36864, %s77, [#allocation9], 384, 384, 24
    $region21: #{tpu_custom_call.1} parent=1 // pred_fallthru
      _
    // Predicated region
    $region22: #{tpu_custom_call.1} parent=1 // pred_check
      _
    $region23: #{tpu_custom_call.1} parent=1 // pred_check_branch
      %84 = sbr.rel (0) target = $region25
    $region24: #{tpu_custom_call.1} parent=1 // pred_region
      %s86 = ssub.s32 36864, 36864
      %87 = vsyncadd [#allocation12], %s86
      %s88 = sshll.u32 [#allocation11], 4
      %s89 = int_to_ptr.vmem [resolvable:$true] %s88
      %94 = dma.hbm_to_vmem [thread:$0]  %s5, 36864, %s89, [#allocation12], 384, 384, 24
    $region25: #{tpu_custom_call.1} parent=1 // pred_fallthru
      _
    // Predicated region
    $region26: #{tpu_custom_call.1} parent=1 // pred_check
      _
    $region27: #{tpu_custom_call.1} parent=1 // pred_check_branch
      %96 = sbr.rel (0) target = $region29
    $region28: #{tpu_custom_call.1} parent=1 // pred_region
      %s98 = ssub.s32 96, 96
      %99 = vsyncadd [#allocation12], %s98
      %s101 = sshll.u32 [#allocation13], 4
      %s102 = int_to_ptr.vmem [resolvable:$true] %s101
      %104 = dma.hbm_to_vmem [thread:$0]  %s6, 96, %s102, [#allocation12]
    $region29: #{tpu_custom_call.1} parent=1 // pred_fallthru
      _
    // Predicated region
    $region30: #{tpu_custom_call.1} parent=1 // pred_check
      _
    $region31: #{tpu_custom_call.1} parent=1 // pred_check_branch
      %106 = sbr.rel (0) target = $region33
    $region32: #{tpu_custom_call.1} parent=1 // pred_region
      %s108 = ssub.s32 36864, 36864
      %109 = vsyncadd [#allocation15], %s108
      %s110 = sshll.u32 [#allocation14], 4
      %s111 = int_to_ptr.vmem [resolvable:$true] %s110
      %116 = dma.hbm_to_vmem [thread:$0]  %s7, 36864, %s111, [#allocation15], 384, 384, 24
    $region33: #{tpu_custom_call.1} parent=1 // pred_fallthru
      _
    // Predicated region
    $region34: #{tpu_custom_call.1} parent=1 // pred_check
      _
    $region35: #{tpu_custom_call.1} parent=1 // pred_check_branch
      %118 = sbr.rel (0) target = $region37
    $region36: #{tpu_custom_call.1} parent=1 // pred_region
      %s120 = ssub.s32 96, 96
      %121 = vsyncadd [#allocation15], %s120
      %s123 = sshll.u32 [#allocation16], 4
      %s124 = int_to_ptr.vmem [resolvable:$true] %s123
      %126 = dma.hbm_to_vmem [thread:$0]  %s8, 96, %s124, [#allocation15]
    $region37: #{tpu_custom_call.1} parent=1 // pred_fallthru
      _
    // Predicated region
    $region38: #{tpu_custom_call.1} parent=1 // pred_check
      _
    $region39: #{tpu_custom_call.1} parent=1 // pred_check_branch
      %128 = sbr.rel (0) target = $region41
    $region40: #{tpu_custom_call.1} parent=1 // pred_region
      %129 = dma.done [#allocation3], 768
    $region41: #{tpu_custom_call.1} parent=1 // pred_fallthru
      _
    // Predicated region
    $region42: #{tpu_custom_call.1} parent=1 // pred_check
      _
    $region43: #{tpu_custom_call.1} parent=1 // pred_check_branch
      %131 = sbr.rel (0) target = $region45
    $region44: #{tpu_custom_call.1} parent=1 // pred_region
      %132 = dma.done [#allocation6], 768
    $region45: #{tpu_custom_call.1} parent=1 // pred_fallthru
      _
    // Predicated region
    $region46: #{tpu_custom_call.1} parent=1 // pred_check
      _
    $region47: #{tpu_custom_call.1} parent=1 // pred_check_branch
      %134 = sbr.rel (0) target = $region49
    $region48: #{tpu_custom_call.1} parent=1 // pred_region
      %135 = dma.done [#allocation6], 768
    $region49: #{tpu_custom_call.1} parent=1 // pred_fallthru
      _
    // Predicated region
    $region50: #{tpu_custom_call.1} parent=1 // pred_check
      _
    $region51: #{tpu_custom_call.1} parent=1 // pred_check_branch
      %137 = sbr.rel (0) target = $region53
    $region52: #{tpu_custom_call.1} parent=1 // pred_region
      %138 = dma.done [#allocation9], 768
    $region53: #{tpu_custom_call.1} parent=1 // pred_fallthru
      _
    // Predicated region
    $region54: #{tpu_custom_call.1} parent=1 // pred_check
      _
    $region55: #{tpu_custom_call.1} parent=1 // pred_check_branch
      %140 = sbr.rel (0) target = $region57
    $region56: #{tpu_custom_call.1} parent=1 // pred_region
      %141 = dma.done [#allocation9], 36864
    $region57: #{tpu_custom_call.1} parent=1 // pred_fallthru
      _
    // Predicated region
    $region58: #{tpu_custom_call.1} parent=1 // pred_check
      _
    $region59: #{tpu_custom_call.1} parent=1 // pred_check_branch
      %143 = sbr.rel (0) target = $region61
    $region60: #{tpu_custom_call.1} parent=1 // pred_region
      %144 = dma.done [#allocation12], 36864
    $region61: #{tpu_custom_call.1} parent=1 // pred_fallthru
      _
    // Predicated region
    $region62: #{tpu_custom_call.1} parent=1 // pred_check
      _
    $region63: #{tpu_custom_call.1} parent=1 // pred_check_branch
      %146 = sbr.rel (0) target = $region65
    $region64: #{tpu_custom_call.1} parent=1 // pred_region
      %147 = dma.done [#allocation12], 96
    $region65: #{tpu_custom_call.1} parent=1 // pred_fallthru
      _
    // Predicated region
    $region66: #{tpu_custom_call.1} parent=1 // pred_check
      _
    $region67: #{tpu_custom_call.1} parent=1 // pred_check_branch
      %149 = sbr.rel (0) target = $region69
    $region68: #{tpu_custom_call.1} parent=1 // pred_region
      %150 = dma.done [#allocation15], 36864
    $region69: #{tpu_custom_call.1} parent=1 // pred_fallthru
      _
    // Predicated region
    $region70: #{tpu_custom_call.1} parent=1 // pred_check
      _
    $region71: #{tpu_custom_call.1} parent=1 // pred_check_branch
      %152 = sbr.rel (0) target = $region73
    $region72: #{tpu_custom_call.1} parent=1 // pred_region
      %153 = dma.done [#allocation15], 96
    $region73: #{tpu_custom_call.1} parent=1 // pred_fallthru
      _
    %v154 = vld [vmem:[#allocation2] sm:$0xff]
    %v155 = vld [vmem:[#allocation2 + $0x8] sm:$0xff]
    %v156 = vld [vmem:[#allocation2 + $0x10] sm:$0xff]
    %v157 = vld [vmem:[#allocation2 + $0x18] sm:$0xff]
    %v158 = vld [vmem:[#allocation2 + $0x20] sm:$0xff]
    %v159 = vld [vmem:[#allocation2 + $0x28] sm:$0xff]
    %v160 = vld [vmem:[#allocation5] sm:$0xff]
    %v161 = vld [vmem:[#allocation5 + $0x8] sm:$0xff]
    %v162 = vld [vmem:[#allocation5 + $0x10] sm:$0xff]
    %v163 = vld [vmem:[#allocation5 + $0x18] sm:$0xff]
    %v164 = vld [vmem:[#allocation5 + $0x20] sm:$0xff]
    %v165 = vld [vmem:[#allocation5 + $0x28] sm:$0xff]
    %v166 = vld [vmem:[#allocation10] sm:$0xff]
    %v167 = vld [vmem:[#allocation10 + $0x8] sm:$0xff]
    %v168 = vld [vmem:[#allocation10 + $0x10] sm:$0xff]
    %v169 = vld [vmem:[#allocation10 + $0x18] sm:$0xff]
    %v170 = vld [vmem:[#allocation10 + $0x20] sm:$0xff]
    %v171 = vld [vmem:[#allocation10 + $0x28] sm:$0xff]
    %v172 = vld [vmem:[#allocation10 + $0x30] sm:$0xff]
    %v173 = vld [vmem:[#allocation10 + $0x38] sm:$0xff]
    %v174 = vld [vmem:[#allocation10 + $0x40] sm:$0xff]
    %v175 = vld [vmem:[#allocation10 + $0x48] sm:$0xff]
    %v176 = vld [vmem:[#allocation10 + $0x50] sm:$0xff]
    %v177 = vld [vmem:[#allocation10 + $0x58] sm:$0xff]
    %v178 = vld [vmem:[#allocation10 + $0x60] sm:$0xff]
    %v179 = vld [vmem:[#allocation10 + $0x68] sm:$0xff]
    %v180 = vld [vmem:[#allocation10 + $0x70] sm:$0xff]
    %v181 = vld [vmem:[#allocation10 + $0x78] sm:$0xff]
    %v182 = vld [vmem:[#allocation10 + $0x80] sm:$0xff]
    %v183 = vld [vmem:[#allocation10 + $0x88] sm:$0xff]
    %v184 = vld [vmem:[#allocation10 + $0x90] sm:$0xff]
    %v185 = vld [vmem:[#allocation10 + $0x98] sm:$0xff]
    %v186 = vld [vmem:[#allocation10 + $0xa0] sm:$0xff]
    %v187 = vld [vmem:[#allocation10 + $0xa8] sm:$0xff]
    %v188 = vld [vmem:[#allocation10 + $0xb0] sm:$0xff]
    %v189 = vld [vmem:[#allocation10 + $0xb8] sm:$0xff]
    %v190 = vld [vmem:[#allocation10 + $0xc0] sm:$0xff]
    %v191 = vld [vmem:[#allocation10 + $0xc8] sm:$0xff]
    %v192 = vld [vmem:[#allocation10 + $0xd0] sm:$0xff]
    %v193 = vld [vmem:[#allocation10 + $0xd8] sm:$0xff]
    %v194 = vld [vmem:[#allocation10 + $0xe0] sm:$0xff]
    %v195 = vld [vmem:[#allocation10 + $0xe8] sm:$0xff]
    %v196 = vld [vmem:[#allocation10 + $0xf0] sm:$0xff]
    %v197 = vld [vmem:[#allocation10 + $0xf8] sm:$0xff]
    %v198 = vld [vmem:[#allocation10 + $0x100] sm:$0xff]
    %v199 = vld [vmem:[#allocation10 + $0x108] sm:$0xff]
    %v200 = vld [vmem:[#allocation10 + $0x110] sm:$0xff]
    %v201 = vld [vmem:[#allocation10 + $0x118] sm:$0xff]
    %v202 = vld [vmem:[#allocation10 + $0x120] sm:$0xff]
    %v203 = vld [vmem:[#allocation10 + $0x128] sm:$0xff]
    %v204 = vld [vmem:[#allocation10 + $0x130] sm:$0xff]
    %v205 = vld [vmem:[#allocation10 + $0x138] sm:$0xff]
    %v206 = vld [vmem:[#allocation10 + $0x140] sm:$0xff]
    %v207 = vld [vmem:[#allocation10 + $0x148] sm:$0xff]
    %v208 = vld [vmem:[#allocation10 + $0x150] sm:$0xff]
    %v209 = vld [vmem:[#allocation10 + $0x158] sm:$0xff]
    %v210 = vld [vmem:[#allocation10 + $0x160] sm:$0xff]
    %v211 = vld [vmem:[#allocation10 + $0x168] sm:$0xff]
    %v212 = vld [vmem:[#allocation10 + $0x170] sm:$0xff]
    %v213 = vld [vmem:[#allocation10 + $0x178] sm:$0xff]
    %v214 = vld [vmem:[#allocation10 + $0x180] sm:$0xff]
    %v215 = vld [vmem:[#allocation10 + $0x188] sm:$0xff]
    %v216 = vld [vmem:[#allocation10 + $0x190] sm:$0xff]
    %v217 = vld [vmem:[#allocation10 + $0x198] sm:$0xff]
    %v218 = vld [vmem:[#allocation10 + $0x1a0] sm:$0xff]
    %v219 = vld [vmem:[#allocation10 + $0x1a8] sm:$0xff]
    %v220 = vld [vmem:[#allocation10 + $0x1b0] sm:$0xff]
    %v221 = vld [vmem:[#allocation10 + $0x1b8] sm:$0xff]
    %v222 = vld [vmem:[#allocation10 + $0x1c0] sm:$0xff]
    %v223 = vld [vmem:[#allocation10 + $0x1c8] sm:$0xff]
    %v224 = vld [vmem:[#allocation10 + $0x1d0] sm:$0xff]
    %v225 = vld [vmem:[#allocation10 + $0x1d8] sm:$0xff]
    %v226 = vld [vmem:[#allocation10 + $0x1e0] sm:$0xff]
    %v227 = vld [vmem:[#allocation10 + $0x1e8] sm:$0xff]
    %v228 = vld [vmem:[#allocation10 + $0x1f0] sm:$0xff]
    %v229 = vld [vmem:[#allocation10 + $0x1f8] sm:$0xff]
    %v230 = vld [vmem:[#allocation10 + $0x200] sm:$0xff]
    %v231 = vld [vmem:[#allocation10 + $0x208] sm:$0xff]
    %v232 = vld [vmem:[#allocation10 + $0x210] sm:$0xff]
    %v233 = vld [vmem:[#allocation10 + $0x218] sm:$0xff]
    %v234 = vld [vmem:[#allocation10 + $0x220] sm:$0xff]
    %v235 = vld [vmem:[#allocation10 + $0x228] sm:$0xff]
    %v236 = vld [vmem:[#allocation10 + $0x230] sm:$0xff]
    %v237 = vld [vmem:[#allocation10 + $0x238] sm:$0xff]
    %v238 = vld [vmem:[#allocation10 + $0x240] sm:$0xff]
    %v239 = vld [vmem:[#allocation10 + $0x248] sm:$0xff]
    %v240 = vld [vmem:[#allocation10 + $0x250] sm:$0xff]
    %v241 = vld [vmem:[#allocation10 + $0x258] sm:$0xff]
    %v242 = vld [vmem:[#allocation10 + $0x260] sm:$0xff]
    %v243 = vld [vmem:[#allocation10 + $0x268] sm:$0xff]
    %v244 = vld [vmem:[#allocation10 + $0x270] sm:$0xff]
    %v245 = vld [vmem:[#allocation10 + $0x278] sm:$0xff]
    %v246 = vld [vmem:[#allocation10 + $0x280] sm:$0xff]
    %v247 = vld [vmem:[#allocation10 + $0x288] sm:$0xff]
    %v248 = vld [vmem:[#allocation10 + $0x290] sm:$0xff]
    %v249 = vld [vmem:[#allocation10 + $0x298] sm:$0xff]
    %v250 = vld [vmem:[#allocation10 + $0x2a0] sm:$0xff]
    %v251 = vld [vmem:[#allocation10 + $0x2a8] sm:$0xff]
    %v252 = vld [vmem:[#allocation10 + $0x2b0] sm:$0xff]
    %v253 = vld [vmem:[#allocation10 + $0x2b8] sm:$0xff]
    %v254 = vld [vmem:[#allocation10 + $0x2c0] sm:$0xff]
    %v255 = vld [vmem:[#allocation10 + $0x2c8] sm:$0xff]
    %v256 = vld [vmem:[#allocation10 + $0x2d0] sm:$0xff]
    %v257 = vld [vmem:[#allocation10 + $0x2d8] sm:$0xff]
    %v258 = vld [vmem:[#allocation10 + $0x2e0] sm:$0xff]
    %v259 = vld [vmem:[#allocation10 + $0x2e8] sm:$0xff]
    %v260 = vld [vmem:[#allocation10 + $0x2f0] sm:$0xff]
    %v261 = vld [vmem:[#allocation10 + $0x2f8] sm:$0xff]
    %v262 = vld [vmem:[#allocation10 + $0x300] sm:$0xff]
    %v263 = vld [vmem:[#allocation10 + $0x308] sm:$0xff]
    %v264 = vld [vmem:[#allocation10 + $0x310] sm:$0xff]
    %v265 = vld [vmem:[#allocation10 + $0x318] sm:$0xff]
    %v266 = vld [vmem:[#allocation10 + $0x320] sm:$0xff]
    %v267 = vld [vmem:[#allocation10 + $0x328] sm:$0xff]
    %v268 = vld [vmem:[#allocation10 + $0x330] sm:$0xff]
    %v269 = vld [vmem:[#allocation10 + $0x338] sm:$0xff]
    %v270 = vld [vmem:[#allocation10 + $0x340] sm:$0xff]
    %v271 = vld [vmem:[#allocation10 + $0x348] sm:$0xff]
    %v272 = vld [vmem:[#allocation10 + $0x350] sm:$0xff]
    %v273 = vld [vmem:[#allocation10 + $0x358] sm:$0xff]
    %v274 = vld [vmem:[#allocation10 + $0x360] sm:$0xff]
    %v275 = vld [vmem:[#allocation10 + $0x368] sm:$0xff]
    %v276 = vld [vmem:[#allocation10 + $0x370] sm:$0xff]
    %v277 = vld [vmem:[#allocation10 + $0x378] sm:$0xff]
    %v278 = vld [vmem:[#allocation10 + $0x380] sm:$0xff]
    %v279 = vld [vmem:[#allocation10 + $0x388] sm:$0xff]
    %v280 = vld [vmem:[#allocation10 + $0x390] sm:$0xff]
    %v281 = vld [vmem:[#allocation10 + $0x398] sm:$0xff]
    %v282 = vld [vmem:[#allocation10 + $0x3a0] sm:$0xff]
    %v283 = vld [vmem:[#allocation10 + $0x3a8] sm:$0xff]
    %v284 = vld [vmem:[#allocation10 + $0x3b0] sm:$0xff]
    %v285 = vld [vmem:[#allocation10 + $0x3b8] sm:$0xff]
    %v286 = vld [vmem:[#allocation10 + $0x3c0] sm:$0xff]
    %v287 = vld [vmem:[#allocation10 + $0x3c8] sm:$0xff]
    %v288 = vld [vmem:[#allocation10 + $0x3d0] sm:$0xff]
    %v289 = vld [vmem:[#allocation10 + $0x3d8] sm:$0xff]
    %v290 = vld [vmem:[#allocation10 + $0x3e0] sm:$0xff]
    %v291 = vld [vmem:[#allocation10 + $0x3e8] sm:$0xff]
    %v292 = vld [vmem:[#allocation10 + $0x3f0] sm:$0xff]
    %v293 = vld [vmem:[#allocation10 + $0x3f8] sm:$0xff]
    %v294 = vld [vmem:[#allocation10 + $0x400] sm:$0xff]
    %v295 = vld [vmem:[#allocation10 + $0x408] sm:$0xff]
    %v296 = vld [vmem:[#allocation10 + $0x410] sm:$0xff]
    %v297 = vld [vmem:[#allocation10 + $0x418] sm:$0xff]
    %v298 = vld [vmem:[#allocation10 + $0x420] sm:$0xff]
    %v299 = vld [vmem:[#allocation10 + $0x428] sm:$0xff]
    %v300 = vld [vmem:[#allocation10 + $0x430] sm:$0xff]
    %v301 = vld [vmem:[#allocation10 + $0x438] sm:$0xff]
    %v302 = vld [vmem:[#allocation10 + $0x440] sm:$0xff]
    %v303 = vld [vmem:[#allocation10 + $0x448] sm:$0xff]
    %v304 = vld [vmem:[#allocation10 + $0x450] sm:$0xff]
    %v305 = vld [vmem:[#allocation10 + $0x458] sm:$0xff]
    %v306 = vld [vmem:[#allocation10 + $0x460] sm:$0xff]
    %v307 = vld [vmem:[#allocation10 + $0x468] sm:$0xff]
    %v308 = vld [vmem:[#allocation10 + $0x470] sm:$0xff]
    %v309 = vld [vmem:[#allocation10 + $0x478] sm:$0xff]
    %v310 = vld [vmem:[#allocation10 + $0x480] sm:$0xff]
    %v311 = vld [vmem:[#allocation10 + $0x488] sm:$0xff]
    %v312 = vld [vmem:[#allocation10 + $0x490] sm:$0xff]
    %v313 = vld [vmem:[#allocation10 + $0x498] sm:$0xff]
    %v314 = vld [vmem:[#allocation10 + $0x4a0] sm:$0xff]
    %v315 = vld [vmem:[#allocation10 + $0x4a8] sm:$0xff]
    %v316 = vld [vmem:[#allocation10 + $0x4b0] sm:$0xff]
    %v317 = vld [vmem:[#allocation10 + $0x4b8] sm:$0xff]
    %v318 = vld [vmem:[#allocation10 + $0x4c0] sm:$0xff]
    %v319 = vld [vmem:[#allocation10 + $0x4c8] sm:$0xff]
    %v320 = vld [vmem:[#allocation10 + $0x4d0] sm:$0xff]
    %v321 = vld [vmem:[#allocation10 + $0x4d8] sm:$0xff]
    %v322 = vld [vmem:[#allocation10 + $0x4e0] sm:$0xff]
    %v323 = vld [vmem:[#allocation10 + $0x4e8] sm:$0xff]
    %v324 = vld [vmem:[#allocation10 + $0x4f0] sm:$0xff]
    %v325 = vld [vmem:[#allocation10 + $0x4f8] sm:$0xff]
    %v326 = vld [vmem:[#allocation10 + $0x500] sm:$0xff]
    %v327 = vld [vmem:[#allocation10 + $0x508] sm:$0xff]
    %v328 = vld [vmem:[#allocation10 + $0x510] sm:$0xff]
    %v329 = vld [vmem:[#allocation10 + $0x518] sm:$0xff]
    %v330 = vld [vmem:[#allocation10 + $0x520] sm:$0xff]
    %v331 = vld [vmem:[#allocation10 + $0x528] sm:$0xff]
    %v332 = vld [vmem:[#allocation10 + $0x530] sm:$0xff]
    %v333 = vld [vmem:[#allocation10 + $0x538] sm:$0xff]
    %v334 = vld [vmem:[#allocation10 + $0x540] sm:$0xff]
    %v335 = vld [vmem:[#allocation10 + $0x548] sm:$0xff]
    %v336 = vld [vmem:[#allocation10 + $0x550] sm:$0xff]
    %v337 = vld [vmem:[#allocation10 + $0x558] sm:$0xff]
    %v338 = vld [vmem:[#allocation10 + $0x560] sm:$0xff]
    %v339 = vld [vmem:[#allocation10 + $0x568] sm:$0xff]
    %v340 = vld [vmem:[#allocation10 + $0x570] sm:$0xff]
    %v341 = vld [vmem:[#allocation10 + $0x578] sm:$0xff]
    %v342 = vld [vmem:[#allocation10 + $0x580] sm:$0xff]
    %v343 = vld [vmem:[#allocation10 + $0x588] sm:$0xff]
    %v344 = vld [vmem:[#allocation10 + $0x590] sm:$0xff]
    %v345 = vld [vmem:[#allocation10 + $0x598] sm:$0xff]
    %v346 = vld [vmem:[#allocation10 + $0x5a0] sm:$0xff]
    %v347 = vld [vmem:[#allocation10 + $0x5a8] sm:$0xff]
    %v348 = vld [vmem:[#allocation10 + $0x5b0] sm:$0xff]
    %v349 = vld [vmem:[#allocation10 + $0x5b8] sm:$0xff]
    %v350 = vld [vmem:[#allocation10 + $0x5c0] sm:$0xff]
    %v351 = vld [vmem:[#allocation10 + $0x5c8] sm:$0xff]
    %v352 = vld [vmem:[#allocation10 + $0x5d0] sm:$0xff]
    %v353 = vld [vmem:[#allocation10 + $0x5d8] sm:$0xff]
    %v354 = vld [vmem:[#allocation10 + $0x5e0] sm:$0xff]
    %v355 = vld [vmem:[#allocation10 + $0x5e8] sm:$0xff]
    %v356 = vld [vmem:[#allocation10 + $0x5f0] sm:$0xff]
    %v357 = vld [vmem:[#allocation10 + $0x5f8] sm:$0xff]
    %v358 = vld [vmem:[#allocation10 + $0x600] sm:$0xff]
    %v359 = vld [vmem:[#allocation10 + $0x608] sm:$0xff]
    %v360 = vld [vmem:[#allocation10 + $0x610] sm:$0xff]
    %v361 = vld [vmem:[#allocation10 + $0x618] sm:$0xff]
    %v362 = vld [vmem:[#allocation10 + $0x620] sm:$0xff]
    %v363 = vld [vmem:[#allocation10 + $0x628] sm:$0xff]
    %v364 = vld [vmem:[#allocation10 + $0x630] sm:$0xff]
    %v365 = vld [vmem:[#allocation10 + $0x638] sm:$0xff]
    %v366 = vld [vmem:[#allocation10 + $0x640] sm:$0xff]
    %v367 = vld [vmem:[#allocation10 + $0x648] sm:$0xff]
    %v368 = vld [vmem:[#allocation10 + $0x650] sm:$0xff]
    %v369 = vld [vmem:[#allocation10 + $0x658] sm:$0xff]
    %v370 = vld [vmem:[#allocation10 + $0x660] sm:$0xff]
    %v371 = vld [vmem:[#allocation10 + $0x668] sm:$0xff]
    %v372 = vld [vmem:[#allocation10 + $0x670] sm:$0xff]
    %v373 = vld [vmem:[#allocation10 + $0x678] sm:$0xff]
    %v374 = vld [vmem:[#allocation10 + $0x680] sm:$0xff]
    %v375 = vld [vmem:[#allocation10 + $0x688] sm:$0xff]
    %v376 = vld [vmem:[#allocation10 + $0x690] sm:$0xff]
    %v377 = vld [vmem:[#allocation10 + $0x698] sm:$0xff]
    %v378 = vld [vmem:[#allocation10 + $0x6a0] sm:$0xff]
    %v379 = vld [vmem:[#allocation10 + $0x6a8] sm:$0xff]
    %v380 = vld [vmem:[#allocation10 + $0x6b0] sm:$0xff]
    %v381 = vld [vmem:[#allocation10 + $0x6b8] sm:$0xff]
    %v382 = vld [vmem:[#allocation10 + $0x6c0] sm:$0xff]
    %v383 = vld [vmem:[#allocation10 + $0x6c8] sm:$0xff]
    %v384 = vld [vmem:[#allocation10 + $0x6d0] sm:$0xff]
    %v385 = vld [vmem:[#allocation10 + $0x6d8] sm:$0xff]
    %v386 = vld [vmem:[#allocation10 + $0x6e0] sm:$0xff]
    %v387 = vld [vmem:[#allocation10 + $0x6e8] sm:$0xff]
    %v388 = vld [vmem:[#allocation10 + $0x6f0] sm:$0xff]
    %v389 = vld [vmem:[#allocation10 + $0x6f8] sm:$0xff]
    %v390 = vld [vmem:[#allocation10 + $0x700] sm:$0xff]
    %v391 = vld [vmem:[#allocation10 + $0x708] sm:$0xff]
    %v392 = vld [vmem:[#allocation10 + $0x710] sm:$0xff]
    %v393 = vld [vmem:[#allocation10 + $0x718] sm:$0xff]
    %v394 = vld [vmem:[#allocation10 + $0x720] sm:$0xff]
    %v395 = vld [vmem:[#allocation10 + $0x728] sm:$0xff]
    %v396 = vld [vmem:[#allocation10 + $0x730] sm:$0xff]
    %v397 = vld [vmem:[#allocation10 + $0x738] sm:$0xff]
    %v398 = vld [vmem:[#allocation10 + $0x740] sm:$0xff]
    %v399 = vld [vmem:[#allocation10 + $0x748] sm:$0xff]
    %v400 = vld [vmem:[#allocation10 + $0x750] sm:$0xff]
    %v401 = vld [vmem:[#allocation10 + $0x758] sm:$0xff]
    %v402 = vld [vmem:[#allocation10 + $0x760] sm:$0xff]
    %v403 = vld [vmem:[#allocation10 + $0x768] sm:$0xff]
    %v404 = vld [vmem:[#allocation10 + $0x770] sm:$0xff]
    %v405 = vld [vmem:[#allocation10 + $0x778] sm:$0xff]
    %v406 = vld [vmem:[#allocation10 + $0x780] sm:$0xff]
    %v407 = vld [vmem:[#allocation10 + $0x788] sm:$0xff]
    %v408 = vld [vmem:[#allocation10 + $0x790] sm:$0xff]
    %v409 = vld [vmem:[#allocation10 + $0x798] sm:$0xff]
    %v410 = vld [vmem:[#allocation10 + $0x7a0] sm:$0xff]
    %v411 = vld [vmem:[#allocation10 + $0x7a8] sm:$0xff]
    %v412 = vld [vmem:[#allocation10 + $0x7b0] sm:$0xff]
    %v413 = vld [vmem:[#allocation10 + $0x7b8] sm:$0xff]
    %v414 = vld [vmem:[#allocation10 + $0x7c0] sm:$0xff]
    %v415 = vld [vmem:[#allocation10 + $0x7c8] sm:$0xff]
    %v416 = vld [vmem:[#allocation10 + $0x7d0] sm:$0xff]
    %v417 = vld [vmem:[#allocation10 + $0x7d8] sm:$0xff]
    %v418 = vld [vmem:[#allocation10 + $0x7e0] sm:$0xff]
    %v419 = vld [vmem:[#allocation10 + $0x7e8] sm:$0xff]
    %v420 = vld [vmem:[#allocation10 + $0x7f0] sm:$0xff]
    %v421 = vld [vmem:[#allocation10 + $0x7f8] sm:$0xff]
    %v422 = vld [vmem:[#allocation10 + $0x800] sm:$0xff]
    %v423 = vld [vmem:[#allocation10 + $0x808] sm:$0xff]
    %v424 = vld [vmem:[#allocation10 + $0x810] sm:$0xff]
    %v425 = vld [vmem:[#allocation10 + $0x818] sm:$0xff]
    %v426 = vld [vmem:[#allocation10 + $0x820] sm:$0xff]
    %v427 = vld [vmem:[#allocation10 + $0x828] sm:$0xff]
    %v428 = vld [vmem:[#allocation10 + $0x830] sm:$0xff]
    %v429 = vld [vmem:[#allocation10 + $0x838] sm:$0xff]
    %v430 = vld [vmem:[#allocation10 + $0x840] sm:$0xff]
    %v431 = vld [vmem:[#allocation10 + $0x848] sm:$0xff]
    %v432 = vld [vmem:[#allocation10 + $0x850] sm:$0xff]
    %v433 = vld [vmem:[#allocation10 + $0x858] sm:$0xff]
    %v434 = vld [vmem:[#allocation10 + $0x860] sm:$0xff]
    %v435 = vld [vmem:[#allocation10 + $0x868] sm:$0xff]
    %v436 = vld [vmem:[#allocation10 + $0x870] sm:$0xff]
    %v437 = vld [vmem:[#allocation10 + $0x878] sm:$0xff]
    %v438 = vld [vmem:[#allocation10 + $0x880] sm:$0xff]
    %v439 = vld [vmem:[#allocation10 + $0x888] sm:$0xff]
    %v440 = vld [vmem:[#allocation10 + $0x890] sm:$0xff]
    %v441 = vld [vmem:[#allocation10 + $0x898] sm:$0xff]
    %v442 = vld [vmem:[#allocation10 + $0x8a0] sm:$0xff]
    %v443 = vld [vmem:[#allocation10 + $0x8a8] sm:$0xff]
    %v444 = vld [vmem:[#allocation10 + $0x8b0] sm:$0xff]
    %v445 = vld [vmem:[#allocation10 + $0x8b8] sm:$0xff]
    %v446 = vld [vmem:[#allocation10 + $0x8c0] sm:$0xff]
    %v447 = vld [vmem:[#allocation10 + $0x8c8] sm:$0xff]
    %v448 = vld [vmem:[#allocation10 + $0x8d0] sm:$0xff]
    %v449 = vld [vmem:[#allocation10 + $0x8d8] sm:$0xff]
    %v450 = vld [vmem:[#allocation10 + $0x8e0] sm:$0xff]
    %v451 = vld [vmem:[#allocation10 + $0x8e8] sm:$0xff]
    %v452 = vld [vmem:[#allocation10 + $0x8f0] sm:$0xff]
    %v453 = vld [vmem:[#allocation10 + $0x8f8] sm:$0xff]
    %v454 = vld [vmem:[#allocation11] sm:$0xff]
    %v455 = vld [vmem:[#allocation11 + $0x8] sm:$0xff]
    %v456 = vld [vmem:[#allocation11 + $0x10] sm:$0xff]
    %v457 = vld [vmem:[#allocation11 + $0x18] sm:$0xff]
    %v458 = vld [vmem:[#allocation11 + $0x20] sm:$0xff]
    %v459 = vld [vmem:[#allocation11 + $0x28] sm:$0xff]
    %v460 = vld [vmem:[#allocation11 + $0x30] sm:$0xff]
    %v461 = vld [vmem:[#allocation11 + $0x38] sm:$0xff]
    %v462 = vld [vmem:[#allocation11 + $0x40] sm:$0xff]
    %v463 = vld [vmem:[#allocation11 + $0x48] sm:$0xff]
    %v464 = vld [vmem:[#allocation11 + $0x50] sm:$0xff]
    %v465 = vld [vmem:[#allocation11 + $0x58] sm:$0xff]
    %v466 = vld [vmem:[#allocation11 + $0x60] sm:$0xff]
    %v467 = vld [vmem:[#allocation11 + $0x68] sm:$0xff]
    %v468 = vld [vmem:[#allocation11 + $0x70] sm:$0xff]
    %v469 = vld [vmem:[#allocation11 + $0x78] sm:$0xff]
    %v470 = vld [vmem:[#allocation11 + $0x80] sm:$0xff]
    %v471 = vld [vmem:[#allocation11 + $0x88] sm:$0xff]
    %v472 = vld [vmem:[#allocation11 + $0x90] sm:$0xff]
    %v473 = vld [vmem:[#allocation11 + $0x98] sm:$0xff]
    %v474 = vld [vmem:[#allocation11 + $0xa0] sm:$0xff]
    %v475 = vld [vmem:[#allocation11 + $0xa8] sm:$0xff]
    %v476 = vld [vmem:[#allocation11 + $0xb0] sm:$0xff]
    %v477 = vld [vmem:[#allocation11 + $0xb8] sm:$0xff]
    %v478 = vld [vmem:[#allocation11 + $0xc0] sm:$0xff]
    %v479 = vld [vmem:[#allocation11 + $0xc8] sm:$0xff]
    %v480 = vld [vmem:[#allocation11 + $0xd0] sm:$0xff]
    %v481 = vld [vmem:[#allocation11 + $0xd8] sm:$0xff]
    %v482 = vld [vmem:[#allocation11 + $0xe0] sm:$0xff]
    %v483 = vld [vmem:[#allocation11 + $0xe8] sm:$0xff]
    %v484 = vld [vmem:[#allocation11 + $0xf0] sm:$0xff]
    %v485 = vld [vmem:[#allocation11 + $0xf8] sm:$0xff]
    %v486 = vld [vmem:[#allocation11 + $0x100] sm:$0xff]
    %v487 = vld [vmem:[#allocation11 + $0x108] sm:$0xff]
    %v488 = vld [vmem:[#allocation11 + $0x110] sm:$0xff]
    %v489 = vld [vmem:[#allocation11 + $0x118] sm:$0xff]
    %v490 = vld [vmem:[#allocation11 + $0x120] sm:$0xff]
    %v491 = vld [vmem:[#allocation11 + $0x128] sm:$0xff]
    %v492 = vld [vmem:[#allocation11 + $0x130] sm:$0xff]
    %v493 = vld [vmem:[#allocation11 + $0x138] sm:$0xff]
    %v494 = vld [vmem:[#allocation11 + $0x140] sm:$0xff]
    %v495 = vld [vmem:[#allocation11 + $0x148] sm:$0xff]
    %v496 = vld [vmem:[#allocation11 + $0x150] sm:$0xff]
    %v497 = vld [vmem:[#allocation11 + $0x158] sm:$0xff]
    %v498 = vld [vmem:[#allocation11 + $0x160] sm:$0xff]
    %v499 = vld [vmem:[#allocation11 + $0x168] sm:$0xff]
    %v500 = vld [vmem:[#allocation11 + $0x170] sm:$0xff]
    %v501 = vld [vmem:[#allocation11 + $0x178] sm:$0xff]
    %v502 = vld [vmem:[#allocation11 + $0x180] sm:$0xff]
    %v503 = vld [vmem:[#allocation11 + $0x188] sm:$0xff]
    %v504 = vld [vmem:[#allocation11 + $0x190] sm:$0xff]
    %v505 = vld [vmem:[#allocation11 + $0x198] sm:$0xff]
    %v506 = vld [vmem:[#allocation11 + $0x1a0] sm:$0xff]
    %v507 = vld [vmem:[#allocation11 + $0x1a8] sm:$0xff]
    %v508 = vld [vmem:[#allocation11 + $0x1b0] sm:$0xff]
    %v509 = vld [vmem:[#allocation11 + $0x1b8] sm:$0xff]
    %v510 = vld [vmem:[#allocation11 + $0x1c0] sm:$0xff]
    %v511 = vld [vmem:[#allocation11 + $0x1c8] sm:$0xff]
    %v512 = vld [vmem:[#allocation11 + $0x1d0] sm:$0xff]
    %v513 = vld [vmem:[#allocation11 + $0x1d8] sm:$0xff]
    %v514 = vld [vmem:[#allocation11 + $0x1e0] sm:$0xff]
    %v515 = vld [vmem:[#allocation11 + $0x1e8] sm:$0xff]
    %v516 = vld [vmem:[#allocation11 + $0x1f0] sm:$0xff]
    %v517 = vld [vmem:[#allocation11 + $0x1f8] sm:$0xff]
    %v518 = vld [vmem:[#allocation11 + $0x200] sm:$0xff]
    %v519 = vld [vmem:[#allocation11 + $0x208] sm:$0xff]
    %v520 = vld [vmem:[#allocation11 + $0x210] sm:$0xff]
    %v521 = vld [vmem:[#allocation11 + $0x218] sm:$0xff]
    %v522 = vld [vmem:[#allocation11 + $0x220] sm:$0xff]
    %v523 = vld [vmem:[#allocation11 + $0x228] sm:$0xff]
    %v524 = vld [vmem:[#allocation11 + $0x230] sm:$0xff]
    %v525 = vld [vmem:[#allocation11 + $0x238] sm:$0xff]
    %v526 = vld [vmem:[#allocation11 + $0x240] sm:$0xff]
    %v527 = vld [vmem:[#allocation11 + $0x248] sm:$0xff]
    %v528 = vld [vmem:[#allocation11 + $0x250] sm:$0xff]
    %v529 = vld [vmem:[#allocation11 + $0x258] sm:$0xff]
    %v530 = vld [vmem:[#allocation11 + $0x260] sm:$0xff]
    %v531 = vld [vmem:[#allocation11 + $0x268] sm:$0xff]
    %v532 = vld [vmem:[#allocation11 + $0x270] sm:$0xff]
    %v533 = vld [vmem:[#allocation11 + $0x278] sm:$0xff]
    %v534 = vld [vmem:[#allocation11 + $0x280] sm:$0xff]
    %v535 = vld [vmem:[#allocation11 + $0x288] sm:$0xff]
    %v536 = vld [vmem:[#allocation11 + $0x290] sm:$0xff]
    %v537 = vld [vmem:[#allocation11 + $0x298] sm:$0xff]
    %v538 = vld [vmem:[#allocation11 + $0x2a0] sm:$0xff]
    %v539 = vld [vmem:[#allocation11 + $0x2a8] sm:$0xff]
    %v540 = vld [vmem:[#allocation11 + $0x2b0] sm:$0xff]
    %v541 = vld [vmem:[#allocation11 + $0x2b8] sm:$0xff]
    %v542 = vld [vmem:[#allocation11 + $0x2c0] sm:$0xff]
    %v543 = vld [vmem:[#allocation11 + $0x2c8] sm:$0xff]
    %v544 = vld [vmem:[#allocation11 + $0x2d0] sm:$0xff]
    %v545 = vld [vmem:[#allocation11 + $0x2d8] sm:$0xff]
    %v546 = vld [vmem:[#allocation11 + $0x2e0] sm:$0xff]
    %v547 = vld [vmem:[#allocation11 + $0x2e8] sm:$0xff]
    %v548 = vld [vmem:[#allocation11 + $0x2f0] sm:$0xff]
    %v549 = vld [vmem:[#allocation11 + $0x2f8] sm:$0xff]
    %v550 = vld [vmem:[#allocation11 + $0x300] sm:$0xff]
    %v551 = vld [vmem:[#allocation11 + $0x308] sm:$0xff]
    %v552 = vld [vmem:[#allocation11 + $0x310] sm:$0xff]
    %v553 = vld [vmem:[#allocation11 + $0x318] sm:$0xff]
    %v554 = vld [vmem:[#allocation11 + $0x320] sm:$0xff]
    %v555 = vld [vmem:[#allocation11 + $0x328] sm:$0xff]
    %v556 = vld [vmem:[#allocation11 + $0x330] sm:$0xff]
    %v557 = vld [vmem:[#allocation11 + $0x338] sm:$0xff]
    %v558 = vld [vmem:[#allocation11 + $0x340] sm:$0xff]
    %v559 = vld [vmem:[#allocation11 + $0x348] sm:$0xff]
    %v560 = vld [vmem:[#allocation11 + $0x350] sm:$0xff]
    %v561 = vld [vmem:[#allocation11 + $0x358] sm:$0xff]
    %v562 = vld [vmem:[#allocation11 + $0x360] sm:$0xff]
    %v563 = vld [vmem:[#allocation11 + $0x368] sm:$0xff]
    %v564 = vld [vmem:[#allocation11 + $0x370] sm:$0xff]
    %v565 = vld [vmem:[#allocation11 + $0x378] sm:$0xff]
    %v566 = vld [vmem:[#allocation11 + $0x380] sm:$0xff]
    %v567 = vld [vmem:[#allocation11 + $0x388] sm:$0xff]
    %v568 = vld [vmem:[#allocation11 + $0x390] sm:$0xff]
    %v569 = vld [vmem:[#allocation11 + $0x398] sm:$0xff]
    %v570 = vld [vmem:[#allocation11 + $0x3a0] sm:$0xff]
    %v571 = vld [vmem:[#allocation11 + $0x3a8] sm:$0xff]
    %v572 = vld [vmem:[#allocation11 + $0x3b0] sm:$0xff]
    %v573 = vld [vmem:[#allocation11 + $0x3b8] sm:$0xff]
    %v574 = vld [vmem:[#allocation11 + $0x3c0] sm:$0xff]
    %v575 = vld [vmem:[#allocation11 + $0x3c8] sm:$0xff]
    %v576 = vld [vmem:[#allocation11 + $0x3d0] sm:$0xff]
    %v577 = vld [vmem:[#allocation11 + $0x3d8] sm:$0xff]
    %v578 = vld [vmem:[#allocation11 + $0x3e0] sm:$0xff]
    %v579 = vld [vmem:[#allocation11 + $0x3e8] sm:$0xff]
    %v580 = vld [vmem:[#allocation11 + $0x3f0] sm:$0xff]
    %v581 = vld [vmem:[#allocation11 + $0x3f8] sm:$0xff]
    %v582 = vld [vmem:[#allocation11 + $0x400] sm:$0xff]
    %v583 = vld [vmem:[#allocation11 + $0x408] sm:$0xff]
    %v584 = vld [vmem:[#allocation11 + $0x410] sm:$0xff]
    %v585 = vld [vmem:[#allocation11 + $0x418] sm:$0xff]
    %v586 = vld [vmem:[#allocation11 + $0x420] sm:$0xff]
    %v587 = vld [vmem:[#allocation11 + $0x428] sm:$0xff]
    %v588 = vld [vmem:[#allocation11 + $0x430] sm:$0xff]
    %v589 = vld [vmem:[#allocation11 + $0x438] sm:$0xff]
    %v590 = vld [vmem:[#allocation11 + $0x440] sm:$0xff]
    %v591 = vld [vmem:[#allocation11 + $0x448] sm:$0xff]
    %v592 = vld [vmem:[#allocation11 + $0x450] sm:$0xff]
    %v593 = vld [vmem:[#allocation11 + $0x458] sm:$0xff]
    %v594 = vld [vmem:[#allocation11 + $0x460] sm:$0xff]
    %v595 = vld [vmem:[#allocation11 + $0x468] sm:$0xff]
    %v596 = vld [vmem:[#allocation11 + $0x470] sm:$0xff]
    %v597 = vld [vmem:[#allocation11 + $0x478] sm:$0xff]
    %v598 = vld [vmem:[#allocation11 + $0x480] sm:$0xff]
    %v599 = vld [vmem:[#allocation11 + $0x488] sm:$0xff]
    %v600 = vld [vmem:[#allocation11 + $0x490] sm:$0xff]
    %v601 = vld [vmem:[#allocation11 + $0x498] sm:$0xff]
    %v602 = vld [vmem:[#allocation11 + $0x4a0] sm:$0xff]
    %v603 = vld [vmem:[#allocation11 + $0x4a8] sm:$0xff]
    %v604 = vld [vmem:[#allocation11 + $0x4b0] sm:$0xff]
    %v605 = vld [vmem:[#allocation11 + $0x4b8] sm:$0xff]
    %v606 = vld [vmem:[#allocation11 + $0x4c0] sm:$0xff]
    %v607 = vld [vmem:[#allocation11 + $0x4c8] sm:$0xff]
    %v608 = vld [vmem:[#allocation11 + $0x4d0] sm:$0xff]
    %v609 = vld [vmem:[#allocation11 + $0x4d8] sm:$0xff]
    %v610 = vld [vmem:[#allocation11 + $0x4e0] sm:$0xff]
    %v611 = vld [vmem:[#allocation11 + $0x4e8] sm:$0xff]
    %v612 = vld [vmem:[#allocation11 + $0x4f0] sm:$0xff]
    %v613 = vld [vmem:[#allocation11 + $0x4f8] sm:$0xff]
    %v614 = vld [vmem:[#allocation11 + $0x500] sm:$0xff]
    %v615 = vld [vmem:[#allocation11 + $0x508] sm:$0xff]
    %v616 = vld [vmem:[#allocation11 + $0x510] sm:$0xff]
    %v617 = vld [vmem:[#allocation11 + $0x518] sm:$0xff]
    %v618 = vld [vmem:[#allocation11 + $0x520] sm:$0xff]
    %v619 = vld [vmem:[#allocation11 + $0x528] sm:$0xff]
    %v620 = vld [vmem:[#allocation11 + $0x530] sm:$0xff]
    %v621 = vld [vmem:[#allocation11 + $0x538] sm:$0xff]
    %v622 = vld [vmem:[#allocation11 + $0x540] sm:$0xff]
    %v623 = vld [vmem:[#allocation11 + $0x548] sm:$0xff]
    %v624 = vld [vmem:[#allocation11 + $0x550] sm:$0xff]
    %v625 = vld [vmem:[#allocation11 + $0x558] sm:$0xff]
    %v626 = vld [vmem:[#allocation11 + $0x560] sm:$0xff]
    %v627 = vld [vmem:[#allocation11 + $0x568] sm:$0xff]
    %v628 = vld [vmem:[#allocation11 + $0x570] sm:$0xff]
    %v629 = vld [vmem:[#allocation11 + $0x578] sm:$0xff]
    %v630 = vld [vmem:[#allocation11 + $0x580] sm:$0xff]
    %v631 = vld [vmem:[#allocation11 + $0x588] sm:$0xff]
    %v632 = vld [vmem:[#allocation11 + $0x590] sm:$0xff]
    %v633 = vld [vmem:[#allocation11 + $0x598] sm:$0xff]
    %v634 = vld [vmem:[#allocation11 + $0x5a0] sm:$0xff]
    %v635 = vld [vmem:[#allocation11 + $0x5a8] sm:$0xff]
    %v636 = vld [vmem:[#allocation11 + $0x5b0] sm:$0xff]
    %v637 = vld [vmem:[#allocation11 + $0x5b8] sm:$0xff]
    %v638 = vld [vmem:[#allocation11 + $0x5c0] sm:$0xff]
    %v639 = vld [vmem:[#allocation11 + $0x5c8] sm:$0xff]
    %v640 = vld [vmem:[#allocation11 + $0x5d0] sm:$0xff]
    %v641 = vld [vmem:[#allocation11 + $0x5d8] sm:$0xff]
    %v642 = vld [vmem:[#allocation11 + $0x5e0] sm:$0xff]
    %v643 = vld [vmem:[#allocation11 + $0x5e8] sm:$0xff]
    %v644 = vld [vmem:[#allocation11 + $0x5f0] sm:$0xff]
    %v645 = vld [vmem:[#allocation11 + $0x5f8] sm:$0xff]
    %v646 = vld [vmem:[#allocation11 + $0x600] sm:$0xff]
    %v647 = vld [vmem:[#allocation11 + $0x608] sm:$0xff]
    %v648 = vld [vmem:[#allocation11 + $0x610] sm:$0xff]
    %v649 = vld [vmem:[#allocation11 + $0x618] sm:$0xff]
    %v650 = vld [vmem:[#allocation11 + $0x620] sm:$0xff]
    %v651 = vld [vmem:[#allocation11 + $0x628] sm:$0xff]
    %v652 = vld [vmem:[#allocation11 + $0x630] sm:$0xff]
    %v653 = vld [vmem:[#allocation11 + $0x638] sm:$0xff]
    %v654 = vld [vmem:[#allocation11 + $0x640] sm:$0xff]
    %v655 = vld [vmem:[#allocation11 + $0x648] sm:$0xff]
    %v656 = vld [vmem:[#allocation11 + $0x650] sm:$0xff]
    %v657 = vld [vmem:[#allocation11 + $0x658] sm:$0xff]
    %v658 = vld [vmem:[#allocation11 + $0x660] sm:$0xff]
    %v659 = vld [vmem:[#allocation11 + $0x668] sm:$0xff]
    %v660 = vld [vmem:[#allocation11 + $0x670] sm:$0xff]
    %v661 = vld [vmem:[#allocation11 + $0x678] sm:$0xff]
    %v662 = vld [vmem:[#allocation11 + $0x680] sm:$0xff]
    %v663 = vld [vmem:[#allocation11 + $0x688] sm:$0xff]
    %v664 = vld [vmem:[#allocation11 + $0x690] sm:$0xff]
    %v665 = vld [vmem:[#allocation11 + $0x698] sm:$0xff]
    %v666 = vld [vmem:[#allocation11 + $0x6a0] sm:$0xff]
    %v667 = vld [vmem:[#allocation11 + $0x6a8] sm:$0xff]
    %v668 = vld [vmem:[#allocation11 + $0x6b0] sm:$0xff]
    %v669 = vld [vmem:[#allocation11 + $0x6b8] sm:$0xff]
    %v670 = vld [vmem:[#allocation11 + $0x6c0] sm:$0xff]
    %v671 = vld [vmem:[#allocation11 + $0x6c8] sm:$0xff]
    %v672 = vld [vmem:[#allocation11 + $0x6d0] sm:$0xff]
    %v673 = vld [vmem:[#allocation11 + $0x6d8] sm:$0xff]
    %v674 = vld [vmem:[#allocation11 + $0x6e0] sm:$0xff]
    %v675 = vld [vmem:[#allocation11 + $0x6e8] sm:$0xff]
    %v676 = vld [vmem:[#allocation11 + $0x6f0] sm:$0xff]
    %v677 = vld [vmem:[#allocation11 + $0x6f8] sm:$0xff]
    %v678 = vld [vmem:[#allocation11 + $0x700] sm:$0xff]
    %v679 = vld [vmem:[#allocation11 + $0x708] sm:$0xff]
    %v680 = vld [vmem:[#allocation11 + $0x710] sm:$0xff]
    %v681 = vld [vmem:[#allocation11 + $0x718] sm:$0xff]
    %v682 = vld [vmem:[#allocation11 + $0x720] sm:$0xff]
    %v683 = vld [vmem:[#allocation11 + $0x728] sm:$0xff]
    %v684 = vld [vmem:[#allocation11 + $0x730] sm:$0xff]
    %v685 = vld [vmem:[#allocation11 + $0x738] sm:$0xff]
    %v686 = vld [vmem:[#allocation11 + $0x740] sm:$0xff]
    %v687 = vld [vmem:[#allocation11 + $0x748] sm:$0xff]
    %v688 = vld [vmem:[#allocation11 + $0x750] sm:$0xff]
    %v689 = vld [vmem:[#allocation11 + $0x758] sm:$0xff]
    %v690 = vld [vmem:[#allocation11 + $0x760] sm:$0xff]
    %v691 = vld [vmem:[#allocation11 + $0x768] sm:$0xff]
    %v692 = vld [vmem:[#allocation11 + $0x770] sm:$0xff]
    %v693 = vld [vmem:[#allocation11 + $0x778] sm:$0xff]
    %v694 = vld [vmem:[#allocation11 + $0x780] sm:$0xff]
    %v695 = vld [vmem:[#allocation11 + $0x788] sm:$0xff]
    %v696 = vld [vmem:[#allocation11 + $0x790] sm:$0xff]
    %v697 = vld [vmem:[#allocation11 + $0x798] sm:$0xff]
    %v698 = vld [vmem:[#allocation11 + $0x7a0] sm:$0xff]
    %v699 = vld [vmem:[#allocation11 + $0x7a8] sm:$0xff]
    %v700 = vld [vmem:[#allocation11 + $0x7b0] sm:$0xff]
    %v701 = vld [vmem:[#allocation11 + $0x7b8] sm:$0xff]
    %v702 = vld [vmem:[#allocation11 + $0x7c0] sm:$0xff]
    %v703 = vld [vmem:[#allocation11 + $0x7c8] sm:$0xff]
    %v704 = vld [vmem:[#allocation11 + $0x7d0] sm:$0xff]
    %v705 = vld [vmem:[#allocation11 + $0x7d8] sm:$0xff]
    %v706 = vld [vmem:[#allocation11 + $0x7e0] sm:$0xff]
    %v707 = vld [vmem:[#allocation11 + $0x7e8] sm:$0xff]
    %v708 = vld [vmem:[#allocation11 + $0x7f0] sm:$0xff]
    %v709 = vld [vmem:[#allocation11 + $0x7f8] sm:$0xff]
    %v710 = vld [vmem:[#allocation11 + $0x800] sm:$0xff]
    %v711 = vld [vmem:[#allocation11 + $0x808] sm:$0xff]
    %v712 = vld [vmem:[#allocation11 + $0x810] sm:$0xff]
    %v713 = vld [vmem:[#allocation11 + $0x818] sm:$0xff]
    %v714 = vld [vmem:[#allocation11 + $0x820] sm:$0xff]
    %v715 = vld [vmem:[#allocation11 + $0x828] sm:$0xff]
    %v716 = vld [vmem:[#allocation11 + $0x830] sm:$0xff]
    %v717 = vld [vmem:[#allocation11 + $0x838] sm:$0xff]
    %v718 = vld [vmem:[#allocation11 + $0x840] sm:$0xff]
    %v719 = vld [vmem:[#allocation11 + $0x848] sm:$0xff]
    %v720 = vld [vmem:[#allocation11 + $0x850] sm:$0xff]
    %v721 = vld [vmem:[#allocation11 + $0x858] sm:$0xff]
    %v722 = vld [vmem:[#allocation11 + $0x860] sm:$0xff]
    %v723 = vld [vmem:[#allocation11 + $0x868] sm:$0xff]
    %v724 = vld [vmem:[#allocation11 + $0x870] sm:$0xff]
    %v725 = vld [vmem:[#allocation11 + $0x878] sm:$0xff]
    %v726 = vld [vmem:[#allocation11 + $0x880] sm:$0xff]
    %v727 = vld [vmem:[#allocation11 + $0x888] sm:$0xff]
    %v728 = vld [vmem:[#allocation11 + $0x890] sm:$0xff]
    %v729 = vld [vmem:[#allocation11 + $0x898] sm:$0xff]
    %v730 = vld [vmem:[#allocation11 + $0x8a0] sm:$0xff]
    %v731 = vld [vmem:[#allocation11 + $0x8a8] sm:$0xff]
    %v732 = vld [vmem:[#allocation11 + $0x8b0] sm:$0xff]
    %v733 = vld [vmem:[#allocation11 + $0x8b8] sm:$0xff]
    %v734 = vld [vmem:[#allocation11 + $0x8c0] sm:$0xff]
    %v735 = vld [vmem:[#allocation11 + $0x8c8] sm:$0xff]
    %v736 = vld [vmem:[#allocation11 + $0x8d0] sm:$0xff]
    %v737 = vld [vmem:[#allocation11 + $0x8d8] sm:$0xff]
    %v738 = vld [vmem:[#allocation11 + $0x8e0] sm:$0xff]
    %v739 = vld [vmem:[#allocation11 + $0x8e8] sm:$0xff]
    %v740 = vld [vmem:[#allocation11 + $0x8f0] sm:$0xff]
    %v741 = vld [vmem:[#allocation11 + $0x8f8] sm:$0xff]
    %v748 = vunpack.c.l.b16 %v160
    %v749 = vunpack.c.h.b16 %v160
    %v750 = vunpack.c.l.b16 %v161
    %v751 = vunpack.c.h.b16 %v161
    %v752 = vunpack.c.l.b16 %v162
    %v753 = vunpack.c.h.b16 %v162
    %v754 = vunpack.c.l.b16 %v163
    %v755 = vunpack.c.h.b16 %v163
    %v756 = vunpack.c.l.b16 %v164
    %v757 = vunpack.c.h.b16 %v164
    %v758 = vunpack.c.l.b16 %v165
    %v759 = vunpack.c.h.b16 %v165
    %v760 = vpack.c.b16 %v754, %v748
    %v761 = vpack.c.b16 %v755, %v749
    %v762 = vpack.c.b16 %v756, %v750
    %v763 = vpack.c.b16 %v757, %v751
    %v764 = vpack.c.b16 %v758, %v752
    %v765 = vpack.c.b16 %v759, %v753
    %v1060 = vunpack.c.l.b16 %v454
    %v1061 = vunpack.c.h.b16 %v454
    %v1062 = vunpack.c.l.b16 %v455
    %v1063 = vunpack.c.h.b16 %v455
    %v1064 = vunpack.c.l.b16 %v456
    %v1065 = vunpack.c.h.b16 %v456
    %v1066 = vunpack.c.l.b16 %v457
    %v1067 = vunpack.c.h.b16 %v457
    %v1068 = vunpack.c.l.b16 %v458
    %v1069 = vunpack.c.h.b16 %v458
    %v1070 = vunpack.c.l.b16 %v459
    %v1071 = vunpack.c.h.b16 %v459
    %v1072 = vunpack.c.l.b16 %v460
    %v1073 = vunpack.c.h.b16 %v460
    %v1074 = vunpack.c.l.b16 %v461
    %v1075 = vunpack.c.h.b16 %v461
    %v1076 = vunpack.c.l.b16 %v462
    %v1077 = vunpack.c.h.b16 %v462
    %v1078 = vunpack.c.l.b16 %v463
    %v1079 = vunpack.c.h.b16 %v463
    %v1080 = vunpack.c.l.b16 %v464
    %v1081 = vunpack.c.h.b16 %v464
    %v1082 = vunpack.c.l.b16 %v465
    %v1083 = vunpack.c.h.b16 %v465
    %v1084 = vunpack.c.l.b16 %v466
    %v1085 = vunpack.c.h.b16 %v466
    %v1086 = vunpack.c.l.b16 %v467
    %v1087 = vunpack.c.h.b16 %v467
    %v1088 = vunpack.c.l.b16 %v468
    %v1089 = vunpack.c.h.b16 %v468
    %v1090 = vunpack.c.l.b16 %v469
    %v1091 = vunpack.c.h.b16 %v469
    %v1092 = vunpack.c.l.b16 %v470
    %v1093 = vunpack.c.h.b16 %v470
    %v1094 = vunpack.c.l.b16 %v471
    %v1095 = vunpack.c.h.b16 %v471
    %v1096 = vunpack.c.l.b16 %v472
    %v1097 = vunpack.c.h.b16 %v472
    %v1098 = vunpack.c.l.b16 %v473
    %v1099 = vunpack.c.h.b16 %v473
    %v1100 = vunpack.c.l.b16 %v474
    %v1101 = vunpack.c.h.b16 %v474
    %v1102 = vunpack.c.l.b16 %v475
    %v1103 = vunpack.c.h.b16 %v475
    %v1104 = vunpack.c.l.b16 %v476
    %v1105 = vunpack.c.h.b16 %v476
    %v1106 = vunpack.c.l.b16 %v477
    %v1107 = vunpack.c.h.b16 %v477
    %v1108 = vunpack.c.l.b16 %v478
    %v1109 = vunpack.c.h.b16 %v478
    %v1110 = vunpack.c.l.b16 %v479
    %v1111 = vunpack.c.h.b16 %v479
    %v1112 = vunpack.c.l.b16 %v480
    %v1113 = vunpack.c.h.b16 %v480
    %v1114 = vunpack.c.l.b16 %v481
    %v1115 = vunpack.c.h.b16 %v481
    %v1116 = vunpack.c.l.b16 %v482
    %v1117 = vunpack.c.h.b16 %v482
    %v1118 = vunpack.c.l.b16 %v483
    %v1119 = vunpack.c.h.b16 %v483
    %v1120 = vunpack.c.l.b16 %v484
    %v1121 = vunpack.c.h.b16 %v484
    %v1122 = vunpack.c.l.b16 %v485
    %v1123 = vunpack.c.h.b16 %v485
    %v1124 = vunpack.c.l.b16 %v486
    %v1125 = vunpack.c.h.b16 %v486
    %v1126 = vunpack.c.l.b16 %v487
    %v1127 = vunpack.c.h.b16 %v487
    %v1128 = vunpack.c.l.b16 %v488
    %v1129 = vunpack.c.h.b16 %v488
    %v1130 = vunpack.c.l.b16 %v489
    %v1131 = vunpack.c.h.b16 %v489
    %v1132 = vunpack.c.l.b16 %v490
    %v1133 = vunpack.c.h.b16 %v490
    %v1134 = vunpack.c.l.b16 %v491
    %v1135 = vunpack.c.h.b16 %v491
    %v1136 = vunpack.c.l.b16 %v492
    %v1137 = vunpack.c.h.b16 %v492
    %v1138 = vunpack.c.l.b16 %v493
    %v1139 = vunpack.c.h.b16 %v493
    %v1140 = vunpack.c.l.b16 %v494
    %v1141 = vunpack.c.h.b16 %v494
    %v1142 = vunpack.c.l.b16 %v495
    %v1143 = vunpack.c.h.b16 %v495
    %v1144 = vunpack.c.l.b16 %v496
    %v1145 = vunpack.c.h.b16 %v496
    %v1146 = vunpack.c.l.b16 %v497
    %v1147 = vunpack.c.h.b16 %v497
    %v1148 = vunpack.c.l.b16 %v498
    %v1149 = vunpack.c.h.b16 %v498
    %v1150 = vunpack.c.l.b16 %v499
    %v1151 = vunpack.c.h.b16 %v499
    %v1152 = vunpack.c.l.b16 %v500
    %v1153 = vunpack.c.h.b16 %v500
    %v1154 = vunpack.c.l.b16 %v501
    %v1155 = vunpack.c.h.b16 %v501
    %v1156 = vunpack.c.l.b16 %v502
    %v1157 = vunpack.c.h.b16 %v502
    %v1158 = vunpack.c.l.b16 %v503
    %v1159 = vunpack.c.h.b16 %v503
    %v1160 = vunpack.c.l.b16 %v504
    %v1161 = vunpack.c.h.b16 %v504
    %v1162 = vunpack.c.l.b16 %v505
    %v1163 = vunpack.c.h.b16 %v505
    %v1164 = vunpack.c.l.b16 %v506
    %v1165 = vunpack.c.h.b16 %v506
    %v1166 = vunpack.c.l.b16 %v507
    %v1167 = vunpack.c.h.b16 %v507
    %v1168 = vunpack.c.l.b16 %v508
    %v1169 = vunpack.c.h.b16 %v508
    %v1170 = vunpack.c.l.b16 %v509
    %v1171 = vunpack.c.h.b16 %v509
    %v1172 = vunpack.c.l.b16 %v510
    %v1173 = vunpack.c.h.b16 %v510
    %v1174 = vunpack.c.l.b16 %v511
    %v1175 = vunpack.c.h.b16 %v511
    %v1176 = vunpack.c.l.b16 %v512
    %v1177 = vunpack.c.h.b16 %v512
    %v1178 = vunpack.c.l.b16 %v513
    %v1179 = vunpack.c.h.b16 %v513
    %v1180 = vunpack.c.l.b16 %v514
    %v1181 = vunpack.c.h.b16 %v514
    %v1182 = vunpack.c.l.b16 %v515
    %v1183 = vunpack.c.h.b16 %v515
    %v1184 = vunpack.c.l.b16 %v516
    %v1185 = vunpack.c.h.b16 %v516
    %v1186 = vunpack.c.l.b16 %v517
    %v1187 = vunpack.c.h.b16 %v517
    %v1188 = vunpack.c.l.b16 %v518
    %v1189 = vunpack.c.h.b16 %v518
    %v1190 = vunpack.c.l.b16 %v519
    %v1191 = vunpack.c.h.b16 %v519
    %v1192 = vunpack.c.l.b16 %v520
    %v1193 = vunpack.c.h.b16 %v520
    %v1194 = vunpack.c.l.b16 %v521
    %v1195 = vunpack.c.h.b16 %v521
    %v1196 = vunpack.c.l.b16 %v522
    %v1197 = vunpack.c.h.b16 %v522
    %v1198 = vunpack.c.l.b16 %v523
    %v1199 = vunpack.c.h.b16 %v523
    %v1200 = vunpack.c.l.b16 %v524
    %v1201 = vunpack.c.h.b16 %v524
    %v1202 = vunpack.c.l.b16 %v525
    %v1203 = vunpack.c.h.b16 %v525
    %v1204 = vunpack.c.l.b16 %v526
    %v1205 = vunpack.c.h.b16 %v526
    %v1206 = vunpack.c.l.b16 %v527
    %v1207 = vunpack.c.h.b16 %v527
    %v1208 = vunpack.c.l.b16 %v528
    %v1209 = vunpack.c.h.b16 %v528
    %v1210 = vunpack.c.l.b16 %v529
    %v1211 = vunpack.c.h.b16 %v529
    %v1212 = vunpack.c.l.b16 %v530
    %v1213 = vunpack.c.h.b16 %v530
    %v1214 = vunpack.c.l.b16 %v531
    %v1215 = vunpack.c.h.b16 %v531
    %v1216 = vunpack.c.l.b16 %v532
    %v1217 = vunpack.c.h.b16 %v532
    %v1218 = vunpack.c.l.b16 %v533
    %v1219 = vunpack.c.h.b16 %v533
    %v1220 = vunpack.c.l.b16 %v534
    %v1221 = vunpack.c.h.b16 %v534
    %v1222 = vunpack.c.l.b16 %v535
    %v1223 = vunpack.c.h.b16 %v535
    %v1224 = vunpack.c.l.b16 %v536
    %v1225 = vunpack.c.h.b16 %v536
    %v1226 = vunpack.c.l.b16 %v537
    %v1227 = vunpack.c.h.b16 %v537
    %v1228 = vunpack.c.l.b16 %v538
    %v1229 = vunpack.c.h.b16 %v538
    %v1230 = vunpack.c.l.b16 %v539
    %v1231 = vunpack.c.h.b16 %v539
    %v1232 = vunpack.c.l.b16 %v540
    %v1233 = vunpack.c.h.b16 %v540
    %v1234 = vunpack.c.l.b16 %v541
    %v1235 = vunpack.c.h.b16 %v541
    %v1236 = vunpack.c.l.b16 %v542
    %v1237 = vunpack.c.h.b16 %v542
    %v1238 = vunpack.c.l.b16 %v543
    %v1239 = vunpack.c.h.b16 %v543
    %v1240 = vunpack.c.l.b16 %v544
    %v1241 = vunpack.c.h.b16 %v544
    %v1242 = vunpack.c.l.b16 %v545
    %v1243 = vunpack.c.h.b16 %v545
    %v1244 = vunpack.c.l.b16 %v546
    %v1245 = vunpack.c.h.b16 %v546
    %v1246 = vunpack.c.l.b16 %v547
    %v1247 = vunpack.c.h.b16 %v547
    %v1248 = vunpack.c.l.b16 %v548
    %v1249 = vunpack.c.h.b16 %v548
    %v1250 = vunpack.c.l.b16 %v549
    %v1251 = vunpack.c.h.b16 %v549
    %v1252 = vunpack.c.l.b16 %v550
    %v1253 = vunpack.c.h.b16 %v550
    %v1254 = vunpack.c.l.b16 %v551
    %v1255 = vunpack.c.h.b16 %v551
    %v1256 = vunpack.c.l.b16 %v552
    %v1257 = vunpack.c.h.b16 %v552
    %v1258 = vunpack.c.l.b16 %v553
    %v1259 = vunpack.c.h.b16 %v553
    %v1260 = vunpack.c.l.b16 %v554
    %v1261 = vunpack.c.h.b16 %v554
    %v1262 = vunpack.c.l.b16 %v555
    %v1263 = vunpack.c.h.b16 %v555
    %v1264 = vunpack.c.l.b16 %v556
    %v1265 = vunpack.c.h.b16 %v556
    %v1266 = vunpack.c.l.b16 %v557
    %v1267 = vunpack.c.h.b16 %v557
    %v1268 = vunpack.c.l.b16 %v558
    %v1269 = vunpack.c.h.b16 %v558
    %v1270 = vunpack.c.l.b16 %v559
    %v1271 = vunpack.c.h.b16 %v559
    %v1272 = vunpack.c.l.b16 %v560
    %v1273 = vunpack.c.h.b16 %v560
    %v1274 = vunpack.c.l.b16 %v561
    %v1275 = vunpack.c.h.b16 %v561
    %v1276 = vunpack.c.l.b16 %v562
    %v1277 = vunpack.c.h.b16 %v562
    %v1278 = vunpack.c.l.b16 %v563
    %v1279 = vunpack.c.h.b16 %v563
    %v1280 = vunpack.c.l.b16 %v564
    %v1281 = vunpack.c.h.b16 %v564
    %v1282 = vunpack.c.l.b16 %v565
    %v1283 = vunpack.c.h.b16 %v565
    %v1284 = vunpack.c.l.b16 %v566
    %v1285 = vunpack.c.h.b16 %v566
    %v1286 = vunpack.c.l.b16 %v567
    %v1287 = vunpack.c.h.b16 %v567
    %v1288 = vunpack.c.l.b16 %v568
    %v1289 = vunpack.c.h.b16 %v568
    %v1290 = vunpack.c.l.b16 %v569
    %v1291 = vunpack.c.h.b16 %v569
    %v1292 = vunpack.c.l.b16 %v570
    %v1293 = vunpack.c.h.b16 %v570
    %v1294 = vunpack.c.l.b16 %v571
    %v1295 = vunpack.c.h.b16 %v571
    %v1296 = vunpack.c.l.b16 %v572
    %v1297 = vunpack.c.h.b16 %v572
    %v1298 = vunpack.c.l.b16 %v573
    %v1299 = vunpack.c.h.b16 %v573
    %v1300 = vunpack.c.l.b16 %v574
    %v1301 = vunpack.c.h.b16 %v574
    %v1302 = vunpack.c.l.b16 %v575
    %v1303 = vunpack.c.h.b16 %v575
    %v1304 = vunpack.c.l.b16 %v576
    %v1305 = vunpack.c.h.b16 %v576
    %v1306 = vunpack.c.l.b16 %v577
    %v1307 = vunpack.c.h.b16 %v577
    %v1308 = vunpack.c.l.b16 %v578
    %v1309 = vunpack.c.h.b16 %v578
    %v1310 = vunpack.c.l.b16 %v579
    %v1311 = vunpack.c.h.b16 %v579
    %v1312 = vunpack.c.l.b16 %v580
    %v1313 = vunpack.c.h.b16 %v580
    %v1314 = vunpack.c.l.b16 %v581
    %v1315 = vunpack.c.h.b16 %v581
    %v1316 = vunpack.c.l.b16 %v582
    %v1317 = vunpack.c.h.b16 %v582
    %v1318 = vunpack.c.l.b16 %v583
    %v1319 = vunpack.c.h.b16 %v583
    %v1320 = vunpack.c.l.b16 %v584
    %v1321 = vunpack.c.h.b16 %v584
    %v1322 = vunpack.c.l.b16 %v585
    %v1323 = vunpack.c.h.b16 %v585
    %v1324 = vunpack.c.l.b16 %v586
    %v1325 = vunpack.c.h.b16 %v586
    %v1326 = vunpack.c.l.b16 %v587
    %v1327 = vunpack.c.h.b16 %v587
    %v1328 = vunpack.c.l.b16 %v588
    %v1329 = vunpack.c.h.b16 %v588
    %v1330 = vunpack.c.l.b16 %v589
    %v1331 = vunpack.c.h.b16 %v589
    %v1332 = vunpack.c.l.b16 %v590
    %v1333 = vunpack.c.h.b16 %v590
    %v1334 = vunpack.c.l.b16 %v591
    %v1335 = vunpack.c.h.b16 %v591
    %v1336 = vunpack.c.l.b16 %v592
    %v1337 = vunpack.c.h.b16 %v592
    %v1338 = vunpack.c.l.b16 %v593
    %v1339 = vunpack.c.h.b16 %v593
    %v1340 = vunpack.c.l.b16 %v594
    %v1341 = vunpack.c.h.b16 %v594
    %v1342 = vunpack.c.l.b16 %v595
    %v1343 = vunpack.c.h.b16 %v595
    %v1344 = vunpack.c.l.b16 %v596
    %v1345 = vunpack.c.h.b16 %v596
    %v1346 = vunpack.c.l.b16 %v597
    %v1347 = vunpack.c.h.b16 %v597
    %v1348 = vunpack.c.l.b16 %v598
    %v1349 = vunpack.c.h.b16 %v598
    %v1350 = vunpack.c.l.b16 %v599
    %v1351 = vunpack.c.h.b16 %v599
    %v1352 = vunpack.c.l.b16 %v600
    %v1353 = vunpack.c.h.b16 %v600
    %v1354 = vunpack.c.l.b16 %v601
    %v1355 = vunpack.c.h.b16 %v601
    %v1356 = vunpack.c.l.b16 %v602
    %v1357 = vunpack.c.h.b16 %v602
    %v1358 = vunpack.c.l.b16 %v603
    %v1359 = vunpack.c.h.b16 %v603
    %v1360 = vunpack.c.l.b16 %v604
    %v1361 = vunpack.c.h.b16 %v604
    %v1362 = vunpack.c.l.b16 %v605
    %v1363 = vunpack.c.h.b16 %v605
    %v1364 = vunpack.c.l.b16 %v606
    %v1365 = vunpack.c.h.b16 %v606
    %v1366 = vunpack.c.l.b16 %v607
    %v1367 = vunpack.c.h.b16 %v607
    %v1368 = vunpack.c.l.b16 %v608
    %v1369 = vunpack.c.h.b16 %v608
    %v1370 = vunpack.c.l.b16 %v609
    %v1371 = vunpack.c.h.b16 %v609
    %v1372 = vunpack.c.l.b16 %v610
    %v1373 = vunpack.c.h.b16 %v610
    %v1374 = vunpack.c.l.b16 %v611
    %v1375 = vunpack.c.h.b16 %v611
    %v1376 = vunpack.c.l.b16 %v612
    %v1377 = vunpack.c.h.b16 %v612
    %v1378 = vunpack.c.l.b16 %v613
    %v1379 = vunpack.c.h.b16 %v613
    %v1380 = vunpack.c.l.b16 %v614
    %v1381 = vunpack.c.h.b16 %v614
    %v1382 = vunpack.c.l.b16 %v615
    %v1383 = vunpack.c.h.b16 %v615
    %v1384 = vunpack.c.l.b16 %v616
    %v1385 = vunpack.c.h.b16 %v616
    %v1386 = vunpack.c.l.b16 %v617
    %v1387 = vunpack.c.h.b16 %v617
    %v1388 = vunpack.c.l.b16 %v618
    %v1389 = vunpack.c.h.b16 %v618
    %v1390 = vunpack.c.l.b16 %v619
    %v1391 = vunpack.c.h.b16 %v619
    %v1392 = vunpack.c.l.b16 %v620
    %v1393 = vunpack.c.h.b16 %v620
    %v1394 = vunpack.c.l.b16 %v621
    %v1395 = vunpack.c.h.b16 %v621
    %v1396 = vunpack.c.l.b16 %v622
    %v1397 = vunpack.c.h.b16 %v622
    %v1398 = vunpack.c.l.b16 %v623
    %v1399 = vunpack.c.h.b16 %v623
    %v1400 = vunpack.c.l.b16 %v624
    %v1401 = vunpack.c.h.b16 %v624
    %v1402 = vunpack.c.l.b16 %v625
    %v1403 = vunpack.c.h.b16 %v625
    %v1404 = vunpack.c.l.b16 %v626
    %v1405 = vunpack.c.h.b16 %v626
    %v1406 = vunpack.c.l.b16 %v627
    %v1407 = vunpack.c.h.b16 %v627
    %v1408 = vunpack.c.l.b16 %v628
    %v1409 = vunpack.c.h.b16 %v628
    %v1410 = vunpack.c.l.b16 %v629
    %v1411 = vunpack.c.h.b16 %v629
    %v1412 = vunpack.c.l.b16 %v630
    %v1413 = vunpack.c.h.b16 %v630
    %v1414 = vunpack.c.l.b16 %v631
    %v1415 = vunpack.c.h.b16 %v631
    %v1416 = vunpack.c.l.b16 %v632
    %v1417 = vunpack.c.h.b16 %v632
    %v1418 = vunpack.c.l.b16 %v633
    %v1419 = vunpack.c.h.b16 %v633
    %v1420 = vunpack.c.l.b16 %v634
    %v1421 = vunpack.c.h.b16 %v634
    %v1422 = vunpack.c.l.b16 %v635
    %v1423 = vunpack.c.h.b16 %v635
    %v1424 = vunpack.c.l.b16 %v636
    %v1425 = vunpack.c.h.b16 %v636
    %v1426 = vunpack.c.l.b16 %v637
    %v1427 = vunpack.c.h.b16 %v637
    %v1428 = vunpack.c.l.b16 %v638
    %v1429 = vunpack.c.h.b16 %v638
    %v1430 = vunpack.c.l.b16 %v639
    %v1431 = vunpack.c.h.b16 %v639
    %v1432 = vunpack.c.l.b16 %v640
    %v1433 = vunpack.c.h.b16 %v640
    %v1434 = vunpack.c.l.b16 %v641
    %v1435 = vunpack.c.h.b16 %v641
    %v1436 = vunpack.c.l.b16 %v642
    %v1437 = vunpack.c.h.b16 %v642
    %v1438 = vunpack.c.l.b16 %v643
    %v1439 = vunpack.c.h.b16 %v643
    %v1440 = vunpack.c.l.b16 %v644
    %v1441 = vunpack.c.h.b16 %v644
    %v1442 = vunpack.c.l.b16 %v645
    %v1443 = vunpack.c.h.b16 %v645
    %v1444 = vunpack.c.l.b16 %v646
    %v1445 = vunpack.c.h.b16 %v646
    %v1446 = vunpack.c.l.b16 %v647
    %v1447 = vunpack.c.h.b16 %v647
    %v1448 = vunpack.c.l.b16 %v648
    %v1449 = vunpack.c.h.b16 %v648
    %v1450 = vunpack.c.l.b16 %v649
    %v1451 = vunpack.c.h.b16 %v649
    %v1452 = vunpack.c.l.b16 %v650
    %v1453 = vunpack.c.h.b16 %v650
    %v1454 = vunpack.c.l.b16 %v651
    %v1455 = vunpack.c.h.b16 %v651
    %v1456 = vunpack.c.l.b16 %v652
    %v1457 = vunpack.c.h.b16 %v652
    %v1458 = vunpack.c.l.b16 %v653
    %v1459 = vunpack.c.h.b16 %v653
    %v1460 = vunpack.c.l.b16 %v654
    %v1461 = vunpack.c.h.b16 %v654
    %v1462 = vunpack.c.l.b16 %v655
    %v1463 = vunpack.c.h.b16 %v655
    %v1464 = vunpack.c.l.b16 %v656
    %v1465 = vunpack.c.h.b16 %v656
    %v1466 = vunpack.c.l.b16 %v657
    %v1467 = vunpack.c.h.b16 %v657
    %v1468 = vunpack.c.l.b16 %v658
    %v1469 = vunpack.c.h.b16 %v658
    %v1470 = vunpack.c.l.b16 %v659
    %v1471 = vunpack.c.h.b16 %v659
    %v1472 = vunpack.c.l.b16 %v660
    %v1473 = vunpack.c.h.b16 %v660
    %v1474 = vunpack.c.l.b16 %v661
    %v1475 = vunpack.c.h.b16 %v661
    %v1476 = vunpack.c.l.b16 %v662
    %v1477 = vunpack.c.h.b16 %v662
    %v1478 = vunpack.c.l.b16 %v663
    %v1479 = vunpack.c.h.b16 %v663
    %v1480 = vunpack.c.l.b16 %v664
    %v1481 = vunpack.c.h.b16 %v664
    %v1482 = vunpack.c.l.b16 %v665
    %v1483 = vunpack.c.h.b16 %v665
    %v1484 = vunpack.c.l.b16 %v666
    %v1485 = vunpack.c.h.b16 %v666
    %v1486 = vunpack.c.l.b16 %v667
    %v1487 = vunpack.c.h.b16 %v667
    %v1488 = vunpack.c.l.b16 %v668
    %v1489 = vunpack.c.h.b16 %v668
    %v1490 = vunpack.c.l.b16 %v669
    %v1491 = vunpack.c.h.b16 %v669
    %v1492 = vunpack.c.l.b16 %v670
    %v1493 = vunpack.c.h.b16 %v670
    %v1494 = vunpack.c.l.b16 %v671
    %v1495 = vunpack.c.h.b16 %v671
    %v1496 = vunpack.c.l.b16 %v672
    %v1497 = vunpack.c.h.b16 %v672
    %v1498 = vunpack.c.l.b16 %v673
    %v1499 = vunpack.c.h.b16 %v673
    %v1500 = vunpack.c.l.b16 %v674
    %v1501 = vunpack.c.h.b16 %v674
    %v1502 = vunpack.c.l.b16 %v675
    %v1503 = vunpack.c.h.b16 %v675
    %v1504 = vunpack.c.l.b16 %v676
    %v1505 = vunpack.c.h.b16 %v676
    %v1506 = vunpack.c.l.b16 %v677
    %v1507 = vunpack.c.h.b16 %v677
    %v1508 = vunpack.c.l.b16 %v678
    %v1509 = vunpack.c.h.b16 %v678
    %v1510 = vunpack.c.l.b16 %v679
    %v1511 = vunpack.c.h.b16 %v679
    %v1512 = vunpack.c.l.b16 %v680
    %v1513 = vunpack.c.h.b16 %v680
    %v1514 = vunpack.c.l.b16 %v681
    %v1515 = vunpack.c.h.b16 %v681
    %v1516 = vunpack.c.l.b16 %v682
    %v1517 = vunpack.c.h.b16 %v682
    %v1518 = vunpack.c.l.b16 %v683
    %v1519 = vunpack.c.h.b16 %v683
    %v1520 = vunpack.c.l.b16 %v684
    %v1521 = vunpack.c.h.b16 %v684
    %v1522 = vunpack.c.l.b16 %v685
    %v1523 = vunpack.c.h.b16 %v685
    %v1524 = vunpack.c.l.b16 %v686
    %v1525 = vunpack.c.h.b16 %v686
    %v1526 = vunpack.c.l.b16 %v687
    %v1527 = vunpack.c.h.b16 %v687
    %v1528 = vunpack.c.l.b16 %v688
    %v1529 = vunpack.c.h.b16 %v688
    %v1530 = vunpack.c.l.b16 %v689
    %v1531 = vunpack.c.h.b16 %v689
    %v1532 = vunpack.c.l.b16 %v690
    %v1533 = vunpack.c.h.b16 %v690
    %v1534 = vunpack.c.l.b16 %v691
    %v1535 = vunpack.c.h.b16 %v691
    %v1536 = vunpack.c.l.b16 %v692
    %v1537 = vunpack.c.h.b16 %v692
    %v1538 = vunpack.c.l.b16 %v693
    %v1539 = vunpack.c.h.b16 %v693
    %v1540 = vunpack.c.l.b16 %v694
    %v1541 = vunpack.c.h.b16 %v694
    %v1542 = vunpack.c.l.b16 %v695
    %v1543 = vunpack.c.h.b16 %v695
    %v1544 = vunpack.c.l.b16 %v696
    %v1545 = vunpack.c.h.b16 %v696
    %v1546 = vunpack.c.l.b16 %v697
    %v1547 = vunpack.c.h.b16 %v697
    %v1548 = vunpack.c.l.b16 %v698
    %v1549 = vunpack.c.h.b16 %v698
    %v1550 = vunpack.c.l.b16 %v699
    %v1551 = vunpack.c.h.b16 %v699
    %v1552 = vunpack.c.l.b16 %v700
    %v1553 = vunpack.c.h.b16 %v700
    %v1554 = vunpack.c.l.b16 %v701
    %v1555 = vunpack.c.h.b16 %v701
    %v1556 = vunpack.c.l.b16 %v702
    %v1557 = vunpack.c.h.b16 %v702
    %v1558 = vunpack.c.l.b16 %v703
    %v1559 = vunpack.c.h.b16 %v703
    %v1560 = vunpack.c.l.b16 %v704
    %v1561 = vunpack.c.h.b16 %v704
    %v1562 = vunpack.c.l.b16 %v705
    %v1563 = vunpack.c.h.b16 %v705
    %v1564 = vunpack.c.l.b16 %v706
    %v1565 = vunpack.c.h.b16 %v706
    %v1566 = vunpack.c.l.b16 %v707
    %v1567 = vunpack.c.h.b16 %v707
    %v1568 = vunpack.c.l.b16 %v708
    %v1569 = vunpack.c.h.b16 %v708
    %v1570 = vunpack.c.l.b16 %v709
    %v1571 = vunpack.c.h.b16 %v709
    %v1572 = vunpack.c.l.b16 %v710
    %v1573 = vunpack.c.h.b16 %v710
    %v1574 = vunpack.c.l.b16 %v711
    %v1575 = vunpack.c.h.b16 %v711
    %v1576 = vunpack.c.l.b16 %v712
    %v1577 = vunpack.c.h.b16 %v712
    %v1578 = vunpack.c.l.b16 %v713
    %v1579 = vunpack.c.h.b16 %v713
    %v1580 = vunpack.c.l.b16 %v714
    %v1581 = vunpack.c.h.b16 %v714
    %v1582 = vunpack.c.l.b16 %v715
    %v1583 = vunpack.c.h.b16 %v715
    %v1584 = vunpack.c.l.b16 %v716
    %v1585 = vunpack.c.h.b16 %v716
    %v1586 = vunpack.c.l.b16 %v717
    %v1587 = vunpack.c.h.b16 %v717
    %v1588 = vunpack.c.l.b16 %v718
    %v1589 = vunpack.c.h.b16 %v718
    %v1590 = vunpack.c.l.b16 %v719
    %v1591 = vunpack.c.h.b16 %v719
    %v1592 = vunpack.c.l.b16 %v720
    %v1593 = vunpack.c.h.b16 %v720
    %v1594 = vunpack.c.l.b16 %v721
    %v1595 = vunpack.c.h.b16 %v721
    %v1596 = vunpack.c.l.b16 %v722
    %v1597 = vunpack.c.h.b16 %v722
    %v1598 = vunpack.c.l.b16 %v723
    %v1599 = vunpack.c.h.b16 %v723
    %v1600 = vunpack.c.l.b16 %v724
    %v1601 = vunpack.c.h.b16 %v724
    %v1602 = vunpack.c.l.b16 %v725
    %v1603 = vunpack.c.h.b16 %v725
    %v1604 = vunpack.c.l.b16 %v726
    %v1605 = vunpack.c.h.b16 %v726
    %v1606 = vunpack.c.l.b16 %v727
    %v1607 = vunpack.c.h.b16 %v727
    %v1608 = vunpack.c.l.b16 %v728
    %v1609 = vunpack.c.h.b16 %v728
    %v1610 = vunpack.c.l.b16 %v729
    %v1611 = vunpack.c.h.b16 %v729
    %v1612 = vunpack.c.l.b16 %v730
    %v1613 = vunpack.c.h.b16 %v730
    %v1614 = vunpack.c.l.b16 %v731
    %v1615 = vunpack.c.h.b16 %v731
    %v1616 = vunpack.c.l.b16 %v732
    %v1617 = vunpack.c.h.b16 %v732
    %v1618 = vunpack.c.l.b16 %v733
    %v1619 = vunpack.c.h.b16 %v733
    %v1620 = vunpack.c.l.b16 %v734
    %v1621 = vunpack.c.h.b16 %v734
    %v1622 = vunpack.c.l.b16 %v735
    %v1623 = vunpack.c.h.b16 %v735
    %v1624 = vunpack.c.l.b16 %v736
    %v1625 = vunpack.c.h.b16 %v736
    %v1626 = vunpack.c.l.b16 %v737
    %v1627 = vunpack.c.h.b16 %v737
    %v1628 = vunpack.c.l.b16 %v738
    %v1629 = vunpack.c.h.b16 %v738
    %v1630 = vunpack.c.l.b16 %v739
    %v1631 = vunpack.c.h.b16 %v739
    %v1632 = vunpack.c.l.b16 %v740
    %v1633 = vunpack.c.h.b16 %v740
    %v1634 = vunpack.c.l.b16 %v741
    %v1635 = vunpack.c.h.b16 %v741
    %v1636 = vpack.c.b16 %v1066, %v1060
    %v1637 = vpack.c.b16 %v1067, %v1061
    %v1638 = vpack.c.b16 %v1068, %v1062
    %v1639 = vpack.c.b16 %v1069, %v1063
    %v1640 = vpack.c.b16 %v1070, %v1064
    %v1641 = vpack.c.b16 %v1071, %v1065
    %v1642 = vpack.c.b16 %v1078, %v1072
    %v1643 = vpack.c.b16 %v1079, %v1073
    %v1644 = vpack.c.b16 %v1080, %v1074
    %v1645 = vpack.c.b16 %v1081, %v1075
    %v1646 = vpack.c.b16 %v1082, %v1076
    %v1647 = vpack.c.b16 %v1083, %v1077
    %v1648 = vpack.c.b16 %v1090, %v1084
    %v1649 = vpack.c.b16 %v1091, %v1085
    %v1650 = vpack.c.b16 %v1092, %v1086
    %v1651 = vpack.c.b16 %v1093, %v1087
    %v1652 = vpack.c.b16 %v1094, %v1088
    %v1653 = vpack.c.b16 %v1095, %v1089
    %v1654 = vpack.c.b16 %v1102, %v1096
    %v1655 = vpack.c.b16 %v1103, %v1097
    %v1656 = vpack.c.b16 %v1104, %v1098
    %v1657 = vpack.c.b16 %v1105, %v1099
    %v1658 = vpack.c.b16 %v1106, %v1100
    %v1659 = vpack.c.b16 %v1107, %v1101
    %v1660 = vpack.c.b16 %v1114, %v1108
    %v1661 = vpack.c.b16 %v1115, %v1109
    %v1662 = vpack.c.b16 %v1116, %v1110
    %v1663 = vpack.c.b16 %v1117, %v1111
    %v1664 = vpack.c.b16 %v1118, %v1112
    %v1665 = vpack.c.b16 %v1119, %v1113
    %v1666 = vpack.c.b16 %v1126, %v1120
    %v1667 = vpack.c.b16 %v1127, %v1121
    %v1668 = vpack.c.b16 %v1128, %v1122
    %v1669 = vpack.c.b16 %v1129, %v1123
    %v1670 = vpack.c.b16 %v1130, %v1124
    %v1671 = vpack.c.b16 %v1131, %v1125
    %v1672 = vpack.c.b16 %v1138, %v1132
    %v1673 = vpack.c.b16 %v1139, %v1133
    %v1674 = vpack.c.b16 %v1140, %v1134
    %v1675 = vpack.c.b16 %v1141, %v1135
    %v1676 = vpack.c.b16 %v1142, %v1136
    %v1677 = vpack.c.b16 %v1143, %v1137
    %v1678 = vpack.c.b16 %v1150, %v1144
    %v1679 = vpack.c.b16 %v1151, %v1145
    %v1680 = vpack.c.b16 %v1152, %v1146
    %v1681 = vpack.c.b16 %v1153, %v1147
    %v1682 = vpack.c.b16 %v1154, %v1148
    %v1683 = vpack.c.b16 %v1155, %v1149
    %v1684 = vpack.c.b16 %v1162, %v1156
    %v1685 = vpack.c.b16 %v1163, %v1157
    %v1686 = vpack.c.b16 %v1164, %v1158
    %v1687 = vpack.c.b16 %v1165, %v1159
    %v1688 = vpack.c.b16 %v1166, %v1160
    %v1689 = vpack.c.b16 %v1167, %v1161
    %v1690 = vpack.c.b16 %v1174, %v1168
    %v1691 = vpack.c.b16 %v1175, %v1169
    %v1692 = vpack.c.b16 %v1176, %v1170
    %v1693 = vpack.c.b16 %v1177, %v1171
    %v1694 = vpack.c.b16 %v1178, %v1172
    %v1695 = vpack.c.b16 %v1179, %v1173
    %v1696 = vpack.c.b16 %v1186, %v1180
    %v1697 = vpack.c.b16 %v1187, %v1181
    %v1698 = vpack.c.b16 %v1188, %v1182
    %v1699 = vpack.c.b16 %v1189, %v1183
    %v1700 = vpack.c.b16 %v1190, %v1184
    %v1701 = vpack.c.b16 %v1191, %v1185
    %v1702 = vpack.c.b16 %v1198, %v1192
    %v1703 = vpack.c.b16 %v1199, %v1193
    %v1704 = vpack.c.b16 %v1200, %v1194
    %v1705 = vpack.c.b16 %v1201, %v1195
    %v1706 = vpack.c.b16 %v1202, %v1196
    %v1707 = vpack.c.b16 %v1203, %v1197
    %v1708 = vpack.c.b16 %v1210, %v1204
    %v1709 = vpack.c.b16 %v1211, %v1205
    %v1710 = vpack.c.b16 %v1212, %v1206
    %v1711 = vpack.c.b16 %v1213, %v1207
    %v1712 = vpack.c.b16 %v1214, %v1208
    %v1713 = vpack.c.b16 %v1215, %v1209
    %v1714 = vpack.c.b16 %v1222, %v1216
    %v1715 = vpack.c.b16 %v1223, %v1217
    %v1716 = vpack.c.b16 %v1224, %v1218
    %v1717 = vpack.c.b16 %v1225, %v1219
    %v1718 = vpack.c.b16 %v1226, %v1220
    %v1719 = vpack.c.b16 %v1227, %v1221
    %v1720 = vpack.c.b16 %v1234, %v1228
    %v1721 = vpack.c.b16 %v1235, %v1229
    %v1722 = vpack.c.b16 %v1236, %v1230
    %v1723 = vpack.c.b16 %v1237, %v1231
    %v1724 = vpack.c.b16 %v1238, %v1232
    %v1725 = vpack.c.b16 %v1239, %v1233
    %v1726 = vpack.c.b16 %v1246, %v1240
    %v1727 = vpack.c.b16 %v1247, %v1241
    %v1728 = vpack.c.b16 %v1248, %v1242
    %v1729 = vpack.c.b16 %v1249, %v1243
    %v1730 = vpack.c.b16 %v1250, %v1244
    %v1731 = vpack.c.b16 %v1251, %v1245
    %v1732 = vpack.c.b16 %v1258, %v1252
    %v1733 = vpack.c.b16 %v1259, %v1253
    %v1734 = vpack.c.b16 %v1260, %v1254
    %v1735 = vpack.c.b16 %v1261, %v1255
    %v1736 = vpack.c.b16 %v1262, %v1256
    %v1737 = vpack.c.b16 %v1263, %v1257
    %v1738 = vpack.c.b16 %v1270, %v1264
    %v1739 = vpack.c.b16 %v1271, %v1265
    %v1740 = vpack.c.b16 %v1272, %v1266
    %v1741 = vpack.c.b16 %v1273, %v1267
    %v1742 = vpack.c.b16 %v1274, %v1268
    %v1743 = vpack.c.b16 %v1275, %v1269
    %v1744 = vpack.c.b16 %v1282, %v1276
    %v1745 = vpack.c.b16 %v1283, %v1277
    %v1746 = vpack.c.b16 %v1284, %v1278
    %v1747 = vpack.c.b16 %v1285, %v1279
    %v1748 = vpack.c.b16 %v1286, %v1280
    %v1749 = vpack.c.b16 %v1287, %v1281
    %v1750 = vpack.c.b16 %v1294, %v1288
    %v1751 = vpack.c.b16 %v1295, %v1289
    %v1752 = vpack.c.b16 %v1296, %v1290
    %v1753 = vpack.c.b16 %v1297, %v1291
    %v1754 = vpack.c.b16 %v1298, %v1292
    %v1755 = vpack.c.b16 %v1299, %v1293
    %v1756 = vpack.c.b16 %v1306, %v1300
    %v1757 = vpack.c.b16 %v1307, %v1301
    %v1758 = vpack.c.b16 %v1308, %v1302
    %v1759 = vpack.c.b16 %v1309, %v1303
    %v1760 = vpack.c.b16 %v1310, %v1304
    %v1761 = vpack.c.b16 %v1311, %v1305
    %v1762 = vpack.c.b16 %v1318, %v1312
    %v1763 = vpack.c.b16 %v1319, %v1313
    %v1764 = vpack.c.b16 %v1320, %v1314
    %v1765 = vpack.c.b16 %v1321, %v1315
    %v1766 = vpack.c.b16 %v1322, %v1316
    %v1767 = vpack.c.b16 %v1323, %v1317
    %v1768 = vpack.c.b16 %v1330, %v1324
    %v1769 = vpack.c.b16 %v1331, %v1325
    %v1770 = vpack.c.b16 %v1332, %v1326
    %v1771 = vpack.c.b16 %v1333, %v1327
    %v1772 = vpack.c.b16 %v1334, %v1328
    %v1773 = vpack.c.b16 %v1335, %v1329
    %v1774 = vpack.c.b16 %v1342, %v1336
    %v1775 = vpack.c.b16 %v1343, %v1337
    %v1776 = vpack.c.b16 %v1344, %v1338
    %v1777 = vpack.c.b16 %v1345, %v1339
    %v1778 = vpack.c.b16 %v1346, %v1340
    %v1779 = vpack.c.b16 %v1347, %v1341
    %v1780 = vpack.c.b16 %v1354, %v1348
    %v1781 = vpack.c.b16 %v1355, %v1349
    %v1782 = vpack.c.b16 %v1356, %v1350
    %v1783 = vpack.c.b16 %v1357, %v1351
    %v1784 = vpack.c.b16 %v1358, %v1352
    %v1785 = vpack.c.b16 %v1359, %v1353
    %v1786 = vpack.c.b16 %v1366, %v1360
    %v1787 = vpack.c.b16 %v1367, %v1361
    %v1788 = vpack.c.b16 %v1368, %v1362
    %v1789 = vpack.c.b16 %v1369, %v1363
    %v1790 = vpack.c.b16 %v1370, %v1364
    %v1791 = vpack.c.b16 %v1371, %v1365
    %v1792 = vpack.c.b16 %v1378, %v1372
    %v1793 = vpack.c.b16 %v1379, %v1373
    %v1794 = vpack.c.b16 %v1380, %v1374
    %v1795 = vpack.c.b16 %v1381, %v1375
    %v1796 = vpack.c.b16 %v1382, %v1376
    %v1797 = vpack.c.b16 %v1383, %v1377
    %v1798 = vpack.c.b16 %v1390, %v1384
    %v1799 = vpack.c.b16 %v1391, %v1385
    %v1800 = vpack.c.b16 %v1392, %v1386
    %v1801 = vpack.c.b16 %v1393, %v1387
    %v1802 = vpack.c.b16 %v1394, %v1388
    %v1803 = vpack.c.b16 %v1395, %v1389
    %v1804 = vpack.c.b16 %v1402, %v1396
    %v1805 = vpack.c.b16 %v1403, %v1397
    %v1806 = vpack.c.b16 %v1404, %v1398
    %v1807 = vpack.c.b16 %v1405, %v1399
    %v1808 = vpack.c.b16 %v1406, %v1400
    %v1809 = vpack.c.b16 %v1407, %v1401
    %v1810 = vpack.c.b16 %v1414, %v1408
    %v1811 = vpack.c.b16 %v1415, %v1409
    %v1812 = vpack.c.b16 %v1416, %v1410
    %v1813 = vpack.c.b16 %v1417, %v1411
    %v1814 = vpack.c.b16 %v1418, %v1412
    %v1815 = vpack.c.b16 %v1419, %v1413
    %v1816 = vpack.c.b16 %v1426, %v1420
    %v1817 = vpack.c.b16 %v1427, %v1421
    %v1818 = vpack.c.b16 %v1428, %v1422
    %v1819 = vpack.c.b16 %v1429, %v1423
    %v1820 = vpack.c.b16 %v1430, %v1424
    %v1821 = vpack.c.b16 %v1431, %v1425
    %v1822 = vpack.c.b16 %v1438, %v1432
    %v1823 = vpack.c.b16 %v1439, %v1433
    %v1824 = vpack.c.b16 %v1440, %v1434
    %v1825 = vpack.c.b16 %v1441, %v1435
    %v1826 = vpack.c.b16 %v1442, %v1436
    %v1827 = vpack.c.b16 %v1443, %v1437
    %v1828 = vpack.c.b16 %v1450, %v1444
    %v1829 = vpack.c.b16 %v1451, %v1445
    %v1830 = vpack.c.b16 %v1452, %v1446
    %v1831 = vpack.c.b16 %v1453, %v1447
    %v1832 = vpack.c.b16 %v1454, %v1448
    %v1833 = vpack.c.b16 %v1455, %v1449
    %v1834 = vpack.c.b16 %v1462, %v1456
    %v1835 = vpack.c.b16 %v1463, %v1457
    %v1836 = vpack.c.b16 %v1464, %v1458
    %v1837 = vpack.c.b16 %v1465, %v1459
    %v1838 = vpack.c.b16 %v1466, %v1460
    %v1839 = vpack.c.b16 %v1467, %v1461
    %v1840 = vpack.c.b16 %v1474, %v1468
    %v1841 = vpack.c.b16 %v1475, %v1469
    %v1842 = vpack.c.b16 %v1476, %v1470
    %v1843 = vpack.c.b16 %v1477, %v1471
    %v1844 = vpack.c.b16 %v1478, %v1472
    %v1845 = vpack.c.b16 %v1479, %v1473
    %v1846 = vpack.c.b16 %v1486, %v1480
    %v1847 = vpack.c.b16 %v1487, %v1481
    %v1848 = vpack.c.b16 %v1488, %v1482
    %v1849 = vpack.c.b16 %v1489, %v1483
    %v1850 = vpack.c.b16 %v1490, %v1484
    %v1851 = vpack.c.b16 %v1491, %v1485
    %v1852 = vpack.c.b16 %v1498, %v1492
    %v1853 = vpack.c.b16 %v1499, %v1493
    %v1854 = vpack.c.b16 %v1500, %v1494
    %v1855 = vpack.c.b16 %v1501, %v1495
    %v1856 = vpack.c.b16 %v1502, %v1496
    %v1857 = vpack.c.b16 %v1503, %v1497
    %v1858 = vpack.c.b16 %v1510, %v1504
    %v1859 = vpack.c.b16 %v1511, %v1505
    %v1860 = vpack.c.b16 %v1512, %v1506
    %v1861 = vpack.c.b16 %v1513, %v1507
    %v1862 = vpack.c.b16 %v1514, %v1508
    %v1863 = vpack.c.b16 %v1515, %v1509
    %v1864 = vpack.c.b16 %v1522, %v1516
    %v1865 = vpack.c.b16 %v1523, %v1517
    %v1866 = vpack.c.b16 %v1524, %v1518
    %v1867 = vpack.c.b16 %v1525, %v1519
    %v1868 = vpack.c.b16 %v1526, %v1520
    %v1869 = vpack.c.b16 %v1527, %v1521
    %v1870 = vpack.c.b16 %v1534, %v1528
    %v1871 = vpack.c.b16 %v1535, %v1529
    %v1872 = vpack.c.b16 %v1536, %v1530
    %v1873 = vpack.c.b16 %v1537, %v1531
    %v1874 = vpack.c.b16 %v1538, %v1532
    %v1875 = vpack.c.b16 %v1539, %v1533
    %v1876 = vpack.c.b16 %v1546, %v1540
    %v1877 = vpack.c.b16 %v1547, %v1541
    %v1878 = vpack.c.b16 %v1548, %v1542
    %v1879 = vpack.c.b16 %v1549, %v1543
    %v1880 = vpack.c.b16 %v1550, %v1544
    %v1881 = vpack.c.b16 %v1551, %v1545
    %v1882 = vpack.c.b16 %v1558, %v1552
    %v1883 = vpack.c.b16 %v1559, %v1553
    %v1884 = vpack.c.b16 %v1560, %v1554
    %v1885 = vpack.c.b16 %v1561, %v1555
    %v1886 = vpack.c.b16 %v1562, %v1556
    %v1887 = vpack.c.b16 %v1563, %v1557
    %v1888 = vpack.c.b16 %v1570, %v1564
    %v1889 = vpack.c.b16 %v1571, %v1565
    %v1890 = vpack.c.b16 %v1572, %v1566
    %v1891 = vpack.c.b16 %v1573, %v1567
    %v1892 = vpack.c.b16 %v1574, %v1568
    %v1893 = vpack.c.b16 %v1575, %v1569
    %v1894 = vpack.c.b16 %v1582, %v1576
    %v1895 = vpack.c.b16 %v1583, %v1577
    %v1896 = vpack.c.b16 %v1584, %v1578
    %v1897 = vpack.c.b16 %v1585, %v1579
    %v1898 = vpack.c.b16 %v1586, %v1580
    %v1899 = vpack.c.b16 %v1587, %v1581
    %v1900 = vpack.c.b16 %v1594, %v1588
    %v1901 = vpack.c.b16 %v1595, %v1589
    %v1902 = vpack.c.b16 %v1596, %v1590
    %v1903 = vpack.c.b16 %v1597, %v1591
    %v1904 = vpack.c.b16 %v1598, %v1592
    %v1905 = vpack.c.b16 %v1599, %v1593
    %v1906 = vpack.c.b16 %v1606, %v1600
    %v1907 = vpack.c.b16 %v1607, %v1601
    %v1908 = vpack.c.b16 %v1608, %v1602
    %v1909 = vpack.c.b16 %v1609, %v1603
    %v1910 = vpack.c.b16 %v1610, %v1604
    %v1911 = vpack.c.b16 %v1611, %v1605
    %v1912 = vpack.c.b16 %v1618, %v1612
    %v1913 = vpack.c.b16 %v1619, %v1613
    %v1914 = vpack.c.b16 %v1620, %v1614
    %v1915 = vpack.c.b16 %v1621, %v1615
    %v1916 = vpack.c.b16 %v1622, %v1616
    %v1917 = vpack.c.b16 %v1623, %v1617
    %v1918 = vpack.c.b16 %v1630, %v1624
    %v1919 = vpack.c.b16 %v1631, %v1625
    %v1920 = vpack.c.b16 %v1632, %v1626
    %v1921 = vpack.c.b16 %v1633, %v1627
    %v1922 = vpack.c.b16 %v1634, %v1628
    %v1923 = vpack.c.b16 %v1635, %v1629
    %2212 = vmatprep.subr.bf16.mxu0 %v1637
    %2213 = vmatpush1.bf16.msra.mxu0 %v1636
    %2214 = vmatprep.subr.bf16.mxu0 %v1643
    %2215 = vmatpush1.bf16.msra.mxu0 %v1642
    %2216 = vmatprep.subr.bf16.mxu0 %v1649
    %2217 = vmatpush1.bf16.msra.mxu0 %v1648
    %2218 = vmatprep.subr.bf16.mxu0 %v1655
    %2219 = vmatpush1.bf16.msra.mxu0 %v1654
    %2220 = vmatprep.subr.bf16.mxu0 %v1661
    %2221 = vmatpush1.bf16.msra.mxu0 %v1660
    %2222 = vmatprep.subr.bf16.mxu0 %v1667
    %2223 = vmatpush1.bf16.msra.mxu0 %v1666
    %2224 = vmatprep.subr.bf16.mxu0 %v1673
    %2225 = vmatpush1.bf16.msra.mxu0 %v1672
    %2226 = vmatprep.subr.bf16.mxu0 %v1679
    %2227 = vmatpush1.bf16.msra.mxu0 %v1678
    %2228 = vmatprep.subr.bf16.mxu0 %v1685
    %2229 = vmatpush1.bf16.msra.mxu0 %v1684
    %2230 = vmatprep.subr.bf16.mxu0 %v1691
    %2231 = vmatpush1.bf16.msra.mxu0 %v1690
    %2232 = vmatprep.subr.bf16.mxu0 %v1697
    %2233 = vmatpush1.bf16.msra.mxu0 %v1696
    %2234 = vmatprep.subr.bf16.mxu0 %v1703
    %2235 = vmatpush1.bf16.msra.mxu0 %v1702
    %2236 = vmatprep.subr.bf16.mxu0 %v1709
    %2237 = vmatpush1.bf16.msra.mxu0 %v1708
    %2238 = vmatprep.subr.bf16.mxu0 %v1715
    %2239 = vmatpush1.bf16.msra.mxu0 %v1714
    %2240 = vmatprep.subr.bf16.mxu0 %v1721
    %2241 = vmatpush1.bf16.msra.mxu0 %v1720
    %2242 = vmatprep.subr.bf16.mxu0 %v1727
    %2243 = vmatpush1.bf16.msra.mxu0 %v1726
    %2244 = vmatprep.mubr.bf16.mxu0 %v761
    %2245 = vmatmul.mubr.bf16.gmra.mrb[0].mxu0 %v760
    %v2246 = vpop.f32.mrb[0].mxu0
    %v2247 = vadd.f32 0.0, %v2246
    %v2248 = vpop.f32.mrb[0].mxu0
    %v2249 = vadd.f32 0.0, %v2248
    %v2250 = vpop.f32.mrb[0].mxu0
    %v2251 = vadd.f32 0.0, %v2250
    %v2252 = vpop.f32.mrb[0].mxu0
    %v2253 = vadd.f32 0.0, %v2252
    %2254 = vdwg.mxu0
    %2255 = vmatprep.subr.bf16.mxu0 %v1733
    %2256 = vmatpush1.bf16.msra.mxu0 %v1732
    %2257 = vmatprep.subr.bf16.mxu0 %v1739
    %2258 = vmatpush1.bf16.msra.mxu0 %v1738
    %2259 = vmatprep.subr.bf16.mxu0 %v1745
    %2260 = vmatpush1.bf16.msra.mxu0 %v1744
    %2261 = vmatprep.subr.bf16.mxu0 %v1751
    %2262 = vmatpush1.bf16.msra.mxu0 %v1750
    %2263 = vmatprep.subr.bf16.mxu0 %v1757
    %2264 = vmatpush1.bf16.msra.mxu0 %v1756
    %2265 = vmatprep.subr.bf16.mxu0 %v1763
    %2266 = vmatpush1.bf16.msra.mxu0 %v1762
    %2267 = vmatprep.subr.bf16.mxu0 %v1769
    %2268 = vmatpush1.bf16.msra.mxu0 %v1768
    %2269 = vmatprep.subr.bf16.mxu0 %v1775
    %2270 = vmatpush1.bf16.msra.mxu0 %v1774
    %2271 = vmatprep.subr.bf16.mxu0 %v1781
    %2272 = vmatpush1.bf16.msra.mxu0 %v1780
    %2273 = vmatprep.subr.bf16.mxu0 %v1787
    %2274 = vmatpush1.bf16.msra.mxu0 %v1786
    %2275 = vmatprep.subr.bf16.mxu0 %v1793
    %2276 = vmatpush1.bf16.msra.mxu0 %v1792
    %2277 = vmatprep.subr.bf16.mxu0 %v1799
    %2278 = vmatpush1.bf16.msra.mxu0 %v1798
    %2279 = vmatprep.subr.bf16.mxu0 %v1805
    %2280 = vmatpush1.bf16.msra.mxu0 %v1804
    %2281 = vmatprep.subr.bf16.mxu0 %v1811
    %2282 = vmatpush1.bf16.msra.mxu0 %v1810
    %2283 = vmatprep.subr.bf16.mxu0 %v1817
    %2284 = vmatpush1.bf16.msra.mxu0 %v1816
    %2285 = vmatprep.subr.bf16.mxu0 %v1823
    %2286 = vmatpush1.bf16.msra.mxu0 %v1822
    %2287 = vmatprep.mubr.bf16.mxu0 %v763
    %2288 = vmatmul.mubr.bf16.gmra.mrb[0].mxu0 %v762
    %v2289 = vpop.f32.mrb[0].mxu0
    %v2290 = vadd.f32 %v2247, %v2289
    %v2291 = vpop.f32.mrb[0].mxu0
    %v2292 = vadd.f32 %v2249, %v2291
    %v2293 = vpop.f32.mrb[0].mxu0
    %v2294 = vadd.f32 %v2251, %v2293
    %v2295 = vpop.f32.mrb[0].mxu0
    %v2296 = vadd.f32 %v2253, %v2295
    %2297 = vdwg.mxu0
    %2298 = vmatprep.subr.bf16.mxu0 %v1829
    %2299 = vmatpush1.bf16.msra.mxu0 %v1828
    %2300 = vmatprep.subr.bf16.mxu0 %v1835
    %2301 = vmatpush1.bf16.msra.mxu0 %v1834
    %2302 = vmatprep.subr.bf16.mxu0 %v1841
    %2303 = vmatpush1.bf16.msra.mxu0 %v1840
    %2304 = vmatprep.subr.bf16.mxu0 %v1847
    %2305 = vmatpush1.bf16.msra.mxu0 %v1846
    %2306 = vmatprep.subr.bf16.mxu0 %v1853
    %2307 = vmatpush1.bf16.msra.mxu0 %v1852
    %2308 = vmatprep.subr.bf16.mxu0 %v1859
    %2309 = vmatpush1.bf16.msra.mxu0 %v1858
    %2310 = vmatprep.subr.bf16.mxu0 %v1865
    %2311 = vmatpush1.bf16.msra.mxu0 %v1864
    %2312 = vmatprep.subr.bf16.mxu0 %v1871
    %2313 = vmatpush1.bf16.msra.mxu0 %v1870
    %2314 = vmatprep.subr.bf16.mxu0 %v1877
    %2315 = vmatpush1.bf16.msra.mxu0 %v1876
    %2316 = vmatprep.subr.bf16.mxu0 %v1883
    %2317 = vmatpush1.bf16.msra.mxu0 %v1882
    %2318 = vmatprep.subr.bf16.mxu0 %v1889
    %2319 = vmatpush1.bf16.msra.mxu0 %v1888
    %2320 = vmatprep.subr.bf16.mxu0 %v1895
    %2321 = vmatpush1.bf16.msra.mxu0 %v1894
    %2322 = vmatprep.subr.bf16.mxu0 %v1901
    %2323 = vmatpush1.bf16.msra.mxu0 %v1900
    %2324 = vmatprep.subr.bf16.mxu0 %v1907
    %2325 = vmatpush1.bf16.msra.mxu0 %v1906
    %2326 = vmatprep.subr.bf16.mxu0 %v1913
    %2327 = vmatpush1.bf16.msra.mxu0 %v1912
    %2328 = vmatprep.subr.bf16.mxu0 %v1919
    %2329 = vmatpush1.bf16.msra.mxu0 %v1918
    %2330 = vmatprep.mubr.bf16.mxu0 %v765
    %2331 = vmatmul.mubr.bf16.gmra.mrb[0].mxu0 %v764
    %v2332 = vpop.f32.mrb[0].mxu0
    %v2333 = vadd.f32 %v2290, %v2332
    %v2334 = vpop.f32.mrb[0].mxu0
    %v2335 = vadd.f32 %v2292, %v2334
    %v2336 = vpop.f32.mrb[0].mxu0
    %v2337 = vadd.f32 %v2294, %v2336
    %v2338 = vpop.f32.mrb[0].mxu0
    %v2339 = vadd.f32 %v2296, %v2338
    %2340 = vdwg.mxu0
    %2341 = vmatprep.subr.bf16.mxu0 %v1639
    %2342 = vmatpush1.bf16.msra.mxu0 %v1638
    %2343 = vmatprep.subr.bf16.mxu0 %v1645
    %2344 = vmatpush1.bf16.msra.mxu0 %v1644
    %2345 = vmatprep.subr.bf16.mxu0 %v1651
    %2346 = vmatpush1.bf16.msra.mxu0 %v1650
    %2347 = vmatprep.subr.bf16.mxu0 %v1657
    %2348 = vmatpush1.bf16.msra.mxu0 %v1656
    %2349 = vmatprep.subr.bf16.mxu0 %v1663
    %2350 = vmatpush1.bf16.msra.mxu0 %v1662
    %2351 = vmatprep.subr.bf16.mxu0 %v1669
    %2352 = vmatpush1.bf16.msra.mxu0 %v1668
    %2353 = vmatprep.subr.bf16.mxu0 %v1675
    %2354 = vmatpush1.bf16.msra.mxu0 %v1674
    %2355 = vmatprep.subr.bf16.mxu0 %v1681
    %2356 = vmatpush1.bf16.msra.mxu0 %v1680
    %2357 = vmatprep.subr.bf16.mxu0 %v1687
    %2358 = vmatpush1.bf16.msra.mxu0 %v1686
    %2359 = vmatprep.subr.bf16.mxu0 %v1693
    %2360 = vmatpush1.bf16.msra.mxu0 %v1692
    %2361 = vmatprep.subr.bf16.mxu0 %v1699
    %2362 = vmatpush1.bf16.msra.mxu0 %v1698
    %2363 = vmatprep.subr.bf16.mxu0 %v1705
    %2364 = vmatpush1.bf16.msra.mxu0 %v1704
    %2365 = vmatprep.subr.bf16.mxu0 %v1711
    %2366 = vmatpush1.bf16.msra.mxu0 %v1710
    %2367 = vmatprep.subr.bf16.mxu0 %v1717
    %2368 = vmatpush1.bf16.msra.mxu0 %v1716
    %2369 = vmatprep.subr.bf16.mxu0 %v1723
    %2370 = vmatpush1.bf16.msra.mxu0 %v1722
    %2371 = vmatprep.subr.bf16.mxu0 %v1729
    %2372 = vmatpush1.bf16.msra.mxu0 %v1728
    %2373 = vmatprep.mubr.bf16.mxu0 %v761
    %2374 = vmatmul.mubr.bf16.gmra.mrb[0].mxu0 %v760
    %v2375 = vpop.f32.mrb[0].mxu0
    %v2376 = vadd.f32 0.0, %v2375
    %v2377 = vpop.f32.mrb[0].mxu0
    %v2378 = vadd.f32 0.0, %v2377
    %v2379 = vpop.f32.mrb[0].mxu0
    %v2380 = vadd.f32 0.0, %v2379
    %v2381 = vpop.f32.mrb[0].mxu0
    %v2382 = vadd.f32 0.0, %v2381
    %2383 = vdwg.mxu0
    %2384 = vmatprep.subr.bf16.mxu0 %v1735
    %2385 = vmatpush1.bf16.msra.mxu0 %v1734
    %2386 = vmatprep.subr.bf16.mxu0 %v1741
    %2387 = vmatpush1.bf16.msra.mxu0 %v1740
    %2388 = vmatprep.subr.bf16.mxu0 %v1747
    %2389 = vmatpush1.bf16.msra.mxu0 %v1746
    %2390 = vmatprep.subr.bf16.mxu0 %v1753
    %2391 = vmatpush1.bf16.msra.mxu0 %v1752
    %2392 = vmatprep.subr.bf16.mxu0 %v1759
    %2393 = vmatpush1.bf16.msra.mxu0 %v1758
    %2394 = vmatprep.subr.bf16.mxu0 %v1765
    %2395 = vmatpush1.bf16.msra.mxu0 %v1764
    %2396 = vmatprep.subr.bf16.mxu0 %v1771
    %2397 = vmatpush1.bf16.msra.mxu0 %v1770
    %2398 = vmatprep.subr.bf16.mxu0 %v1777
    %2399 = vmatpush1.bf16.msra.mxu0 %v1776
    %2400 = vmatprep.subr.bf16.mxu0 %v1783
    %2401 = vmatpush1.bf16.msra.mxu0 %v1782
    %2402 = vmatprep.subr.bf16.mxu0 %v1789
    %2403 = vmatpush1.bf16.msra.mxu0 %v1788
    %2404 = vmatprep.subr.bf16.mxu0 %v1795
    %2405 = vmatpush1.bf16.msra.mxu0 %v1794
    %2406 = vmatprep.subr.bf16.mxu0 %v1801
    %2407 = vmatpush1.bf16.msra.mxu0 %v1800
    %2408 = vmatprep.subr.bf16.mxu0 %v1807
    %2409 = vmatpush1.bf16.msra.mxu0 %v1806
    %2410 = vmatprep.subr.bf16.mxu0 %v1813
    %2411 = vmatpush1.bf16.msra.mxu0 %v1812
    %2412 = vmatprep.subr.bf16.mxu0 %v1819
    %2413 = vmatpush1.bf16.msra.mxu0 %v1818
    %2414 = vmatprep.subr.bf16.mxu0 %v1825
    %2415 = vmatpush1.bf16.msra.mxu0 %v1824
    %2416 = vmatprep.mubr.bf16.mxu0 %v763
    %2417 = vmatmul.mubr.bf16.gmra.mrb[0].mxu0 %v762
    %v2418 = vpop.f32.mrb[0].mxu0
    %v2419 = vadd.f32 %v2376, %v2418
    %v2420 = vpop.f32.mrb[0].mxu0
    %v2421 = vadd.f32 %v2378, %v2420
    %v2422 = vpop.f32.mrb[0].mxu0
    %v2423 = vadd.f32 %v2380, %v2422
    %v2424 = vpop.f32.mrb[0].mxu0
    %v2425 = vadd.f32 %v2382, %v2424
    %2426 = vdwg.mxu0
    %2427 = vmatprep.subr.bf16.mxu0 %v1831
    %2428 = vmatpush1.bf16.msra.mxu0 %v1830
    %2429 = vmatprep.subr.bf16.mxu0 %v1837
    %2430 = vmatpush1.bf16.msra.mxu0 %v1836
    %2431 = vmatprep.subr.bf16.mxu0 %v1843
    %2432 = vmatpush1.bf16.msra.mxu0 %v1842
    %2433 = vmatprep.subr.bf16.mxu0 %v1849
    %2434 = vmatpush1.bf16.msra.mxu0 %v1848
    %2435 = vmatprep.subr.bf16.mxu0 %v1855
    %2436 = vmatpush1.bf16.msra.mxu0 %v1854
    %2437 = vmatprep.subr.bf16.mxu0 %v1861
    %2438 = vmatpush1.bf16.msra.mxu0 %v1860
    %2439 = vmatprep.subr.bf16.mxu0 %v1867
    %2440 = vmatpush1.bf16.msra.mxu0 %v1866
    %2441 = vmatprep.subr.bf16.mxu0 %v1873
    %2442 = vmatpush1.bf16.msra.mxu0 %v1872
    %2443 = vmatprep.subr.bf16.mxu0 %v1879
    %2444 = vmatpush1.bf16.msra.mxu0 %v1878
    %2445 = vmatprep.subr.bf16.mxu0 %v1885
    %2446 = vmatpush1.bf16.msra.mxu0 %v1884
    %2447 = vmatprep.subr.bf16.mxu0 %v1891
    %2448 = vmatpush1.bf16.msra.mxu0 %v1890
    %2449 = vmatprep.subr.bf16.mxu0 %v1897
    %2450 = vmatpush1.bf16.msra.mxu0 %v1896
    %2451 = vmatprep.subr.bf16.mxu0 %v1903
    %2452 = vmatpush1.bf16.msra.mxu0 %v1902
    %2453 = vmatprep.subr.bf16.mxu0 %v1909
    %2454 = vmatpush1.bf16.msra.mxu0 %v1908
    %2455 = vmatprep.subr.bf16.mxu0 %v1915
    %2456 = vmatpush1.bf16.msra.mxu0 %v1914
    %2457 = vmatprep.subr.bf16.mxu0 %v1921
    %2458 = vmatpush1.bf16.msra.mxu0 %v1920
    %2459 = vmatprep.mubr.bf16.mxu0 %v765
    %2460 = vmatmul.mubr.bf16.gmra.mrb[0].mxu0 %v764
    %v2461 = vpop.f32.mrb[0].mxu0
    %v2462 = vadd.f32 %v2419, %v2461
    %v2463 = vpop.f32.mrb[0].mxu0
    %v2464 = vadd.f32 %v2421, %v2463
    %v2465 = vpop.f32.mrb[0].mxu0
    %v2466 = vadd.f32 %v2423, %v2465
    %v2467 = vpop.f32.mrb[0].mxu0
    %v2468 = vadd.f32 %v2425, %v2467
    %2469 = vdwg.mxu0
    %2470 = vmatprep.subr.bf16.mxu0 %v1641
    %2471 = vmatpush1.bf16.msra.mxu0 %v1640
    %2472 = vmatprep.subr.bf16.mxu0 %v1647
    %2473 = vmatpush1.bf16.msra.mxu0 %v1646
    %2474 = vmatprep.subr.bf16.mxu0 %v1653
    %2475 = vmatpush1.bf16.msra.mxu0 %v1652
    %2476 = vmatprep.subr.bf16.mxu0 %v1659
    %2477 = vmatpush1.bf16.msra.mxu0 %v1658
    %2478 = vmatprep.subr.bf16.mxu0 %v1665
    %2479 = vmatpush1.bf16.msra.mxu0 %v1664
    %2480 = vmatprep.subr.bf16.mxu0 %v1671
    %2481 = vmatpush1.bf16.msra.mxu0 %v1670
    %2482 = vmatprep.subr.bf16.mxu0 %v1677
    %2483 = vmatpush1.bf16.msra.mxu0 %v1676
    %2484 = vmatprep.subr.bf16.mxu0 %v1683
    %2485 = vmatpush1.bf16.msra.mxu0 %v1682
    %2486 = vmatprep.subr.bf16.mxu0 %v1689
    %2487 = vmatpush1.bf16.msra.mxu0 %v1688
    %2488 = vmatprep.subr.bf16.mxu0 %v1695
    %2489 = vmatpush1.bf16.msra.mxu0 %v1694
    %2490 = vmatprep.subr.bf16.mxu0 %v1701
    %2491 = vmatpush1.bf16.msra.mxu0 %v1700
    %2492 = vmatprep.subr.bf16.mxu0 %v1707
    %2493 = vmatpush1.bf16.msra.mxu0 %v1706
    %2494 = vmatprep.subr.bf16.mxu0 %v1713
    %2495 = vmatpush1.bf16.msra.mxu0 %v1712
    %2496 = vmatprep.subr.bf16.mxu0 %v1719
    %2497 = vmatpush1.bf16.msra.mxu0 %v1718
    %2498 = vmatprep.subr.bf16.mxu0 %v1725
    %2499 = vmatpush1.bf16.msra.mxu0 %v1724
    %2500 = vmatprep.subr.bf16.mxu0 %v1731
    %2501 = vmatpush1.bf16.msra.mxu0 %v1730
    %2502 = vmatprep.mubr.bf16.mxu0 %v761
    %2503 = vmatmul.mubr.bf16.gmra.mrb[0].mxu0 %v760
    %v2504 = vpop.f32.mrb[0].mxu0
    %v2505 = vadd.f32 0.0, %v2504
    %v2506 = vpop.f32.mrb[0].mxu0
    %v2507 = vadd.f32 0.0, %v2506
    %v2508 = vpop.f32.mrb[0].mxu0
    %v2509 = vadd.f32 0.0, %v2508
    %v2510 = vpop.f32.mrb[0].mxu0
    %v2511 = vadd.f32 0.0, %v2510
    %2512 = vdwg.mxu0
    %2513 = vmatprep.subr.bf16.mxu0 %v1737
    %2514 = vmatpush1.bf16.msra.mxu0 %v1736
    %2515 = vmatprep.subr.bf16.mxu0 %v1743
    %2516 = vmatpush1.bf16.msra.mxu0 %v1742
    %2517 = vmatprep.subr.bf16.mxu0 %v1749
    %2518 = vmatpush1.bf16.msra.mxu0 %v1748
    %2519 = vmatprep.subr.bf16.mxu0 %v1755
    %2520 = vmatpush1.bf16.msra.mxu0 %v1754
    %2521 = vmatprep.subr.bf16.mxu0 %v1761
    %2522 = vmatpush1.bf16.msra.mxu0 %v1760
    %2523 = vmatprep.subr.bf16.mxu0 %v1767
    %2524 = vmatpush1.bf16.msra.mxu0 %v1766
    %2525 = vmatprep.subr.bf16.mxu0 %v1773
    %2526 = vmatpush1.bf16.msra.mxu0 %v1772
    %2527 = vmatprep.subr.bf16.mxu0 %v1779
    %2528 = vmatpush1.bf16.msra.mxu0 %v1778
    %2529 = vmatprep.subr.bf16.mxu0 %v1785
    %2530 = vmatpush1.bf16.msra.mxu0 %v1784
    %2531 = vmatprep.subr.bf16.mxu0 %v1791
    %2532 = vmatpush1.bf16.msra.mxu0 %v1790
    %2533 = vmatprep.subr.bf16.mxu0 %v1797
    %2534 = vmatpush1.bf16.msra.mxu0 %v1796
    %2535 = vmatprep.subr.bf16.mxu0 %v1803
    %2536 = vmatpush1.bf16.msra.mxu0 %v1802
    %2537 = vmatprep.subr.bf16.mxu0 %v1809
    %2538 = vmatpush1.bf16.msra.mxu0 %v1808
    %2539 = vmatprep.subr.bf16.mxu0 %v1815
    %2540 = vmatpush1.bf16.msra.mxu0 %v1814
    %2541 = vmatprep.subr.bf16.mxu0 %v1821
    %2542 = vmatpush1.bf16.msra.mxu0 %v1820
    %2543 = vmatprep.subr.bf16.mxu0 %v1827
    %2544 = vmatpush1.bf16.msra.mxu0 %v1826
    %2545 = vmatprep.mubr.bf16.mxu0 %v763
    %2546 = vmatmul.mubr.bf16.gmra.mrb[0].mxu0 %v762
    %v2547 = vpop.f32.mrb[0].mxu0
    %v2548 = vadd.f32 %v2505, %v2547
    %v2549 = vpop.f32.mrb[0].mxu0
    %v2550 = vadd.f32 %v2507, %v2549
    %v2551 = vpop.f32.mrb[0].mxu0
    %v2552 = vadd.f32 %v2509, %v2551
    %v2553 = vpop.f32.mrb[0].mxu0
    %v2554 = vadd.f32 %v2511, %v2553
    %2555 = vdwg.mxu0
    %2556 = vmatprep.subr.bf16.mxu0 %v1833
    %2557 = vmatpush1.bf16.msra.mxu0 %v1832
    %2558 = vmatprep.subr.bf16.mxu0 %v1839
    %2559 = vmatpush1.bf16.msra.mxu0 %v1838
    %2560 = vmatprep.subr.bf16.mxu0 %v1845
    %2561 = vmatpush1.bf16.msra.mxu0 %v1844
    %2562 = vmatprep.subr.bf16.mxu0 %v1851
    %2563 = vmatpush1.bf16.msra.mxu0 %v1850
    %2564 = vmatprep.subr.bf16.mxu0 %v1857
    %2565 = vmatpush1.bf16.msra.mxu0 %v1856
    %2566 = vmatprep.subr.bf16.mxu0 %v1863
    %2567 = vmatpush1.bf16.msra.mxu0 %v1862
    %2568 = vmatprep.subr.bf16.mxu0 %v1869
    %2569 = vmatpush1.bf16.msra.mxu0 %v1868
    %2570 = vmatprep.subr.bf16.mxu0 %v1875
    %2571 = vmatpush1.bf16.msra.mxu0 %v1874
    %2572 = vmatprep.subr.bf16.mxu0 %v1881
    %2573 = vmatpush1.bf16.msra.mxu0 %v1880
    %2574 = vmatprep.subr.bf16.mxu0 %v1887
    %2575 = vmatpush1.bf16.msra.mxu0 %v1886
    %2576 = vmatprep.subr.bf16.mxu0 %v1893
    %2577 = vmatpush1.bf16.msra.mxu0 %v1892
    %2578 = vmatprep.subr.bf16.mxu0 %v1899
    %2579 = vmatpush1.bf16.msra.mxu0 %v1898
    %2580 = vmatprep.subr.bf16.mxu0 %v1905
    %2581 = vmatpush1.bf16.msra.mxu0 %v1904
    %2582 = vmatprep.subr.bf16.mxu0 %v1911
    %2583 = vmatpush1.bf16.msra.mxu0 %v1910
    %2584 = vmatprep.subr.bf16.mxu0 %v1917
    %2585 = vmatpush1.bf16.msra.mxu0 %v1916
    %2586 = vmatprep.subr.bf16.mxu0 %v1923
    %2587 = vmatpush1.bf16.msra.mxu0 %v1922
    %2588 = vmatprep.mubr.bf16.mxu0 %v765
    %2589 = vmatmul.mubr.bf16.gmra.mrb[0].mxu0 %v764
    %v2590 = vpop.f32.mrb[0].mxu0
    %v2591 = vadd.f32 %v2548, %v2590
    %v2592 = vpop.f32.mrb[0].mxu0
    %v2593 = vadd.f32 %v2550, %v2592
    %v2594 = vpop.f32.mrb[0].mxu0
    %v2595 = vadd.f32 %v2552, %v2594
    %v2596 = vpop.f32.mrb[0].mxu0
    %v2597 = vadd.f32 %v2554, %v2596
    %2598 = vdwg.mxu0
    %v2605 = vunpack.c.l.b16 %v154
    %v2606 = vunpack.c.h.b16 %v154
    %v2607 = vunpack.c.l.b16 %v155
    %v2608 = vunpack.c.h.b16 %v155
    %v2609 = vunpack.c.l.b16 %v156
    %v2610 = vunpack.c.h.b16 %v156
    %v2611 = vunpack.c.l.b16 %v157
    %v2612 = vunpack.c.h.b16 %v157
    %v2613 = vunpack.c.l.b16 %v158
    %v2614 = vunpack.c.h.b16 %v158
    %v2615 = vunpack.c.l.b16 %v159
    %v2616 = vunpack.c.h.b16 %v159
    %v2617 = vpack.c.b16 %v2611, %v2605
    %v2618 = vpack.c.b16 %v2612, %v2606
    %v2619 = vpack.c.b16 %v2613, %v2607
    %v2620 = vpack.c.b16 %v2614, %v2608
    %v2621 = vpack.c.b16 %v2615, %v2609
    %v2622 = vpack.c.b16 %v2616, %v2610
    %v2917 = vunpack.c.l.b16 %v166
    %v2918 = vunpack.c.h.b16 %v166
    %v2919 = vunpack.c.l.b16 %v167
    %v2920 = vunpack.c.h.b16 %v167
    %v2921 = vunpack.c.l.b16 %v168
    %v2922 = vunpack.c.h.b16 %v168
    %v2923 = vunpack.c.l.b16 %v169
    %v2924 = vunpack.c.h.b16 %v169
    %v2925 = vunpack.c.l.b16 %v170
    %v2926 = vunpack.c.h.b16 %v170
    %v2927 = vunpack.c.l.b16 %v171
    %v2928 = vunpack.c.h.b16 %v171
    %v2929 = vunpack.c.l.b16 %v172
    %v2930 = vunpack.c.h.b16 %v172
    %v2931 = vunpack.c.l.b16 %v173
    %v2932 = vunpack.c.h.b16 %v173
    %v2933 = vunpack.c.l.b16 %v174
    %v2934 = vunpack.c.h.b16 %v174
    %v2935 = vunpack.c.l.b16 %v175
    %v2936 = vunpack.c.h.b16 %v175
    %v2937 = vunpack.c.l.b16 %v176
    %v2938 = vunpack.c.h.b16 %v176
    %v2939 = vunpack.c.l.b16 %v177
    %v2940 = vunpack.c.h.b16 %v177
    %v2941 = vunpack.c.l.b16 %v178
    %v2942 = vunpack.c.h.b16 %v178
    %v2943 = vunpack.c.l.b16 %v179
    %v2944 = vunpack.c.h.b16 %v179
    %v2945 = vunpack.c.l.b16 %v180
    %v2946 = vunpack.c.h.b16 %v180
    %v2947 = vunpack.c.l.b16 %v181
    %v2948 = vunpack.c.h.b16 %v181
    %v2949 = vunpack.c.l.b16 %v182
    %v2950 = vunpack.c.h.b16 %v182
    %v2951 = vunpack.c.l.b16 %v183
    %v2952 = vunpack.c.h.b16 %v183
    %v2953 = vunpack.c.l.b16 %v184
    %v2954 = vunpack.c.h.b16 %v184
    %v2955 = vunpack.c.l.b16 %v185
    %v2956 = vunpack.c.h.b16 %v185
    %v2957 = vunpack.c.l.b16 %v186
    %v2958 = vunpack.c.h.b16 %v186
    %v2959 = vunpack.c.l.b16 %v187
    %v2960 = vunpack.c.h.b16 %v187
    %v2961 = vunpack.c.l.b16 %v188
    %v2962 = vunpack.c.h.b16 %v188
    %v2963 = vunpack.c.l.b16 %v189
    %v2964 = vunpack.c.h.b16 %v189
    %v2965 = vunpack.c.l.b16 %v190
    %v2966 = vunpack.c.h.b16 %v190
    %v2967 = vunpack.c.l.b16 %v191
    %v2968 = vunpack.c.h.b16 %v191
    %v2969 = vunpack.c.l.b16 %v192
    %v2970 = vunpack.c.h.b16 %v192
    %v2971 = vunpack.c.l.b16 %v193
    %v2972 = vunpack.c.h.b16 %v193
    %v2973 = vunpack.c.l.b16 %v194
    %v2974 = vunpack.c.h.b16 %v194
    %v2975 = vunpack.c.l.b16 %v195
    %v2976 = vunpack.c.h.b16 %v195
    %v2977 = vunpack.c.l.b16 %v196
    %v2978 = vunpack.c.h.b16 %v196
    %v2979 = vunpack.c.l.b16 %v197
    %v2980 = vunpack.c.h.b16 %v197
    %v2981 = vunpack.c.l.b16 %v198
    %v2982 = vunpack.c.h.b16 %v198
    %v2983 = vunpack.c.l.b16 %v199
    %v2984 = vunpack.c.h.b16 %v199
    %v2985 = vunpack.c.l.b16 %v200
    %v2986 = vunpack.c.h.b16 %v200
    %v2987 = vunpack.c.l.b16 %v201
    %v2988 = vunpack.c.h.b16 %v201
    %v2989 = vunpack.c.l.b16 %v202
    %v2990 = vunpack.c.h.b16 %v202
    %v2991 = vunpack.c.l.b16 %v203
    %v2992 = vunpack.c.h.b16 %v203
    %v2993 = vunpack.c.l.b16 %v204
    %v2994 = vunpack.c.h.b16 %v204
    %v2995 = vunpack.c.l.b16 %v205
    %v2996 = vunpack.c.h.b16 %v205
    %v2997 = vunpack.c.l.b16 %v206
    %v2998 = vunpack.c.h.b16 %v206
    %v2999 = vunpack.c.l.b16 %v207
    %v3000 = vunpack.c.h.b16 %v207
    %v3001 = vunpack.c.l.b16 %v208
    %v3002 = vunpack.c.h.b16 %v208
    %v3003 = vunpack.c.l.b16 %v209
    %v3004 = vunpack.c.h.b16 %v209
    %v3005 = vunpack.c.l.b16 %v210
    %v3006 = vunpack.c.h.b16 %v210
    %v3007 = vunpack.c.l.b16 %v211
    %v3008 = vunpack.c.h.b16 %v211
    %v3009 = vunpack.c.l.b16 %v212
    %v3010 = vunpack.c.h.b16 %v212
    %v3011 = vunpack.c.l.b16 %v213
    %v3012 = vunpack.c.h.b16 %v213
    %v3013 = vunpack.c.l.b16 %v214
    %v3014 = vunpack.c.h.b16 %v214
    %v3015 = vunpack.c.l.b16 %v215
    %v3016 = vunpack.c.h.b16 %v215
    %v3017 = vunpack.c.l.b16 %v216
    %v3018 = vunpack.c.h.b16 %v216
    %v3019 = vunpack.c.l.b16 %v217
    %v3020 = vunpack.c.h.b16 %v217
    %v3021 = vunpack.c.l.b16 %v218
    %v3022 = vunpack.c.h.b16 %v218
    %v3023 = vunpack.c.l.b16 %v219
    %v3024 = vunpack.c.h.b16 %v219
    %v3025 = vunpack.c.l.b16 %v220
    %v3026 = vunpack.c.h.b16 %v220
    %v3027 = vunpack.c.l.b16 %v221
    %v3028 = vunpack.c.h.b16 %v221
    %v3029 = vunpack.c.l.b16 %v222
    %v3030 = vunpack.c.h.b16 %v222
    %v3031 = vunpack.c.l.b16 %v223
    %v3032 = vunpack.c.h.b16 %v223
    %v3033 = vunpack.c.l.b16 %v224
    %v3034 = vunpack.c.h.b16 %v224
    %v3035 = vunpack.c.l.b16 %v225
    %v3036 = vunpack.c.h.b16 %v225
    %v3037 = vunpack.c.l.b16 %v226
    %v3038 = vunpack.c.h.b16 %v226
    %v3039 = vunpack.c.l.b16 %v227
    %v3040 = vunpack.c.h.b16 %v227
    %v3041 = vunpack.c.l.b16 %v228
    %v3042 = vunpack.c.h.b16 %v228
    %v3043 = vunpack.c.l.b16 %v229
    %v3044 = vunpack.c.h.b16 %v229
    %v3045 = vunpack.c.l.b16 %v230
    %v3046 = vunpack.c.h.b16 %v230
    %v3047 = vunpack.c.l.b16 %v231
    %v3048 = vunpack.c.h.b16 %v231
    %v3049 = vunpack.c.l.b16 %v232
    %v3050 = vunpack.c.h.b16 %v232
    %v3051 = vunpack.c.l.b16 %v233
    %v3052 = vunpack.c.h.b16 %v233
    %v3053 = vunpack.c.l.b16 %v234
    %v3054 = vunpack.c.h.b16 %v234
    %v3055 = vunpack.c.l.b16 %v235
    %v3056 = vunpack.c.h.b16 %v235
    %v3057 = vunpack.c.l.b16 %v236
    %v3058 = vunpack.c.h.b16 %v236
    %v3059 = vunpack.c.l.b16 %v237
    %v3060 = vunpack.c.h.b16 %v237
    %v3061 = vunpack.c.l.b16 %v238
    %v3062 = vunpack.c.h.b16 %v238
    %v3063 = vunpack.c.l.b16 %v239
    %v3064 = vunpack.c.h.b16 %v239
    %v3065 = vunpack.c.l.b16 %v240
    %v3066 = vunpack.c.h.b16 %v240
    %v3067 = vunpack.c.l.b16 %v241
    %v3068 = vunpack.c.h.b16 %v241
    %v3069 = vunpack.c.l.b16 %v242
    %v3070 = vunpack.c.h.b16 %v242
    %v3071 = vunpack.c.l.b16 %v243
    %v3072 = vunpack.c.h.b16 %v243
    %v3073 = vunpack.c.l.b16 %v244
    %v3074 = vunpack.c.h.b16 %v244
    %v3075 = vunpack.c.l.b16 %v245
    %v3076 = vunpack.c.h.b16 %v245
    %v3077 = vunpack.c.l.b16 %v246
    %v3078 = vunpack.c.h.b16 %v246
    %v3079 = vunpack.c.l.b16 %v247
    %v3080 = vunpack.c.h.b16 %v247
    %v3081 = vunpack.c.l.b16 %v248
    %v3082 = vunpack.c.h.b16 %v248
    %v3083 = vunpack.c.l.b16 %v249
    %v3084 = vunpack.c.h.b16 %v249
    %v3085 = vunpack.c.l.b16 %v250
    %v3086 = vunpack.c.h.b16 %v250
    %v3087 = vunpack.c.l.b16 %v251
    %v3088 = vunpack.c.h.b16 %v251
    %v3089 = vunpack.c.l.b16 %v252
    %v3090 = vunpack.c.h.b16 %v252
    %v3091 = vunpack.c.l.b16 %v253
    %v3092 = vunpack.c.h.b16 %v253
    %v3093 = vunpack.c.l.b16 %v254
    %v3094 = vunpack.c.h.b16 %v254
    %v3095 = vunpack.c.l.b16 %v255
    %v3096 = vunpack.c.h.b16 %v255
    %v3097 = vunpack.c.l.b16 %v256
    %v3098 = vunpack.c.h.b16 %v256
    %v3099 = vunpack.c.l.b16 %v257
    %v3100 = vunpack.c.h.b16 %v257
    %v3101 = vunpack.c.l.b16 %v258
    %v3102 = vunpack.c.h.b16 %v258
    %v3103 = vunpack.c.l.b16 %v259
    %v3104 = vunpack.c.h.b16 %v259
    %v3105 = vunpack.c.l.b16 %v260
    %v3106 = vunpack.c.h.b16 %v260
    %v3107 = vunpack.c.l.b16 %v261
    %v3108 = vunpack.c.h.b16 %v261
    %v3109 = vunpack.c.l.b16 %v262
    %v3110 = vunpack.c.h.b16 %v262
    %v3111 = vunpack.c.l.b16 %v263
    %v3112 = vunpack.c.h.b16 %v263
    %v3113 = vunpack.c.l.b16 %v264
    %v3114 = vunpack.c.h.b16 %v264
    %v3115 = vunpack.c.l.b16 %v265
    %v3116 = vunpack.c.h.b16 %v265
    %v3117 = vunpack.c.l.b16 %v266
    %v3118 = vunpack.c.h.b16 %v266
    %v3119 = vunpack.c.l.b16 %v267
    %v3120 = vunpack.c.h.b16 %v267
    %v3121 = vunpack.c.l.b16 %v268
    %v3122 = vunpack.c.h.b16 %v268
    %v3123 = vunpack.c.l.b16 %v269
    %v3124 = vunpack.c.h.b16 %v269
    %v3125 = vunpack.c.l.b16 %v270
    %v3126 = vunpack.c.h.b16 %v270
    %v3127 = vunpack.c.l.b16 %v271
    %v3128 = vunpack.c.h.b16 %v271
    %v3129 = vunpack.c.l.b16 %v272
    %v3130 = vunpack.c.h.b16 %v272
    %v3131 = vunpack.c.l.b16 %v273
    %v3132 = vunpack.c.h.b16 %v273
    %v3133 = vunpack.c.l.b16 %v274
    %v3134 = vunpack.c.h.b16 %v274
    %v3135 = vunpack.c.l.b16 %v275
    %v3136 = vunpack.c.h.b16 %v275
    %v3137 = vunpack.c.l.b16 %v276
    %v3138 = vunpack.c.h.b16 %v276
    %v3139 = vunpack.c.l.b16 %v277
    %v3140 = vunpack.c.h.b16 %v277
    %v3141 = vunpack.c.l.b16 %v278
    %v3142 = vunpack.c.h.b16 %v278
    %v3143 = vunpack.c.l.b16 %v279
    %v3144 = vunpack.c.h.b16 %v279
    %v3145 = vunpack.c.l.b16 %v280
    %v3146 = vunpack.c.h.b16 %v280
    %v3147 = vunpack.c.l.b16 %v281
    %v3148 = vunpack.c.h.b16 %v281
    %v3149 = vunpack.c.l.b16 %v282
    %v3150 = vunpack.c.h.b16 %v282
    %v3151 = vunpack.c.l.b16 %v283
    %v3152 = vunpack.c.h.b16 %v283
    %v3153 = vunpack.c.l.b16 %v284
    %v3154 = vunpack.c.h.b16 %v284
    %v3155 = vunpack.c.l.b16 %v285
    %v3156 = vunpack.c.h.b16 %v285
    %v3157 = vunpack.c.l.b16 %v286
    %v3158 = vunpack.c.h.b16 %v286
    %v3159 = vunpack.c.l.b16 %v287
    %v3160 = vunpack.c.h.b16 %v287
    %v3161 = vunpack.c.l.b16 %v288
    %v3162 = vunpack.c.h.b16 %v288
    %v3163 = vunpack.c.l.b16 %v289
    %v3164 = vunpack.c.h.b16 %v289
    %v3165 = vunpack.c.l.b16 %v290
    %v3166 = vunpack.c.h.b16 %v290
    %v3167 = vunpack.c.l.b16 %v291
    %v3168 = vunpack.c.h.b16 %v291
    %v3169 = vunpack.c.l.b16 %v292
    %v3170 = vunpack.c.h.b16 %v292
    %v3171 = vunpack.c.l.b16 %v293
    %v3172 = vunpack.c.h.b16 %v293
    %v3173 = vunpack.c.l.b16 %v294
    %v3174 = vunpack.c.h.b16 %v294
    %v3175 = vunpack.c.l.b16 %v295
    %v3176 = vunpack.c.h.b16 %v295
    %v3177 = vunpack.c.l.b16 %v296
    %v3178 = vunpack.c.h.b16 %v296
    %v3179 = vunpack.c.l.b16 %v297
    %v3180 = vunpack.c.h.b16 %v297
    %v3181 = vunpack.c.l.b16 %v298
    %v3182 = vunpack.c.h.b16 %v298
    %v3183 = vunpack.c.l.b16 %v299
    %v3184 = vunpack.c.h.b16 %v299
    %v3185 = vunpack.c.l.b16 %v300
    %v3186 = vunpack.c.h.b16 %v300
    %v3187 = vunpack.c.l.b16 %v301
    %v3188 = vunpack.c.h.b16 %v301
    %v3189 = vunpack.c.l.b16 %v302
    %v3190 = vunpack.c.h.b16 %v302
    %v3191 = vunpack.c.l.b16 %v303
    %v3192 = vunpack.c.h.b16 %v303
    %v3193 = vunpack.c.l.b16 %v304
    %v3194 = vunpack.c.h.b16 %v304
    %v3195 = vunpack.c.l.b16 %v305
    %v3196 = vunpack.c.h.b16 %v305
    %v3197 = vunpack.c.l.b16 %v306
    %v3198 = vunpack.c.h.b16 %v306
    %v3199 = vunpack.c.l.b16 %v307
    %v3200 = vunpack.c.h.b16 %v307
    %v3201 = vunpack.c.l.b16 %v308
    %v3202 = vunpack.c.h.b16 %v308
    %v3203 = vunpack.c.l.b16 %v309
    %v3204 = vunpack.c.h.b16 %v309
    %v3205 = vunpack.c.l.b16 %v310
    %v3206 = vunpack.c.h.b16 %v310
    %v3207 = vunpack.c.l.b16 %v311
    %v3208 = vunpack.c.h.b16 %v311
    %v3209 = vunpack.c.l.b16 %v312
    %v3210 = vunpack.c.h.b16 %v312
    %v3211 = vunpack.c.l.b16 %v313
    %v3212 = vunpack.c.h.b16 %v313
    %v3213 = vunpack.c.l.b16 %v314
    %v3214 = vunpack.c.h.b16 %v314
    %v3215 = vunpack.c.l.b16 %v315
    %v3216 = vunpack.c.h.b16 %v315
    %v3217 = vunpack.c.l.b16 %v316
    %v3218 = vunpack.c.h.b16 %v316
    %v3219 = vunpack.c.l.b16 %v317
    %v3220 = vunpack.c.h.b16 %v317
    %v3221 = vunpack.c.l.b16 %v318
    %v3222 = vunpack.c.h.b16 %v318
    %v3223 = vunpack.c.l.b16 %v319
    %v3224 = vunpack.c.h.b16 %v319
    %v3225 = vunpack.c.l.b16 %v320
    %v3226 = vunpack.c.h.b16 %v320
    %v3227 = vunpack.c.l.b16 %v321
    %v3228 = vunpack.c.h.b16 %v321
    %v3229 = vunpack.c.l.b16 %v322
    %v3230 = vunpack.c.h.b16 %v322
    %v3231 = vunpack.c.l.b16 %v323
    %v3232 = vunpack.c.h.b16 %v323
    %v3233 = vunpack.c.l.b16 %v324
    %v3234 = vunpack.c.h.b16 %v324
    %v3235 = vunpack.c.l.b16 %v325
    %v3236 = vunpack.c.h.b16 %v325
    %v3237 = vunpack.c.l.b16 %v326
    %v3238 = vunpack.c.h.b16 %v326
    %v3239 = vunpack.c.l.b16 %v327
    %v3240 = vunpack.c.h.b16 %v327
    %v3241 = vunpack.c.l.b16 %v328
    %v3242 = vunpack.c.h.b16 %v328
    %v3243 = vunpack.c.l.b16 %v329
    %v3244 = vunpack.c.h.b16 %v329
    %v3245 = vunpack.c.l.b16 %v330
    %v3246 = vunpack.c.h.b16 %v330
    %v3247 = vunpack.c.l.b16 %v331
    %v3248 = vunpack.c.h.b16 %v331
    %v3249 = vunpack.c.l.b16 %v332
    %v3250 = vunpack.c.h.b16 %v332
    %v3251 = vunpack.c.l.b16 %v333
    %v3252 = vunpack.c.h.b16 %v333
    %v3253 = vunpack.c.l.b16 %v334
    %v3254 = vunpack.c.h.b16 %v334
    %v3255 = vunpack.c.l.b16 %v335
    %v3256 = vunpack.c.h.b16 %v335
    %v3257 = vunpack.c.l.b16 %v336
    %v3258 = vunpack.c.h.b16 %v336
    %v3259 = vunpack.c.l.b16 %v337
    %v3260 = vunpack.c.h.b16 %v337
    %v3261 = vunpack.c.l.b16 %v338
    %v3262 = vunpack.c.h.b16 %v338
    %v3263 = vunpack.c.l.b16 %v339
    %v3264 = vunpack.c.h.b16 %v339
    %v3265 = vunpack.c.l.b16 %v340
    %v3266 = vunpack.c.h.b16 %v340
    %v3267 = vunpack.c.l.b16 %v341
    %v3268 = vunpack.c.h.b16 %v341
    %v3269 = vunpack.c.l.b16 %v342
    %v3270 = vunpack.c.h.b16 %v342
    %v3271 = vunpack.c.l.b16 %v343
    %v3272 = vunpack.c.h.b16 %v343
    %v3273 = vunpack.c.l.b16 %v344
    %v3274 = vunpack.c.h.b16 %v344
    %v3275 = vunpack.c.l.b16 %v345
    %v3276 = vunpack.c.h.b16 %v345
    %v3277 = vunpack.c.l.b16 %v346
    %v3278 = vunpack.c.h.b16 %v346
    %v3279 = vunpack.c.l.b16 %v347
    %v3280 = vunpack.c.h.b16 %v347
    %v3281 = vunpack.c.l.b16 %v348
    %v3282 = vunpack.c.h.b16 %v348
    %v3283 = vunpack.c.l.b16 %v349
    %v3284 = vunpack.c.h.b16 %v349
    %v3285 = vunpack.c.l.b16 %v350
    %v3286 = vunpack.c.h.b16 %v350
    %v3287 = vunpack.c.l.b16 %v351
    %v3288 = vunpack.c.h.b16 %v351
    %v3289 = vunpack.c.l.b16 %v352
    %v3290 = vunpack.c.h.b16 %v352
    %v3291 = vunpack.c.l.b16 %v353
    %v3292 = vunpack.c.h.b16 %v353
    %v3293 = vunpack.c.l.b16 %v354
    %v3294 = vunpack.c.h.b16 %v354
    %v3295 = vunpack.c.l.b16 %v355
    %v3296 = vunpack.c.h.b16 %v355
    %v3297 = vunpack.c.l.b16 %v356
    %v3298 = vunpack.c.h.b16 %v356
    %v3299 = vunpack.c.l.b16 %v357
    %v3300 = vunpack.c.h.b16 %v357
    %v3301 = vunpack.c.l.b16 %v358
    %v3302 = vunpack.c.h.b16 %v358
    %v3303 = vunpack.c.l.b16 %v359
    %v3304 = vunpack.c.h.b16 %v359
    %v3305 = vunpack.c.l.b16 %v360
    %v3306 = vunpack.c.h.b16 %v360
    %v3307 = vunpack.c.l.b16 %v361
    %v3308 = vunpack.c.h.b16 %v361
    %v3309 = vunpack.c.l.b16 %v362
    %v3310 = vunpack.c.h.b16 %v362
    %v3311 = vunpack.c.l.b16 %v363
    %v3312 = vunpack.c.h.b16 %v363
    %v3313 = vunpack.c.l.b16 %v364
    %v3314 = vunpack.c.h.b16 %v364
    %v3315 = vunpack.c.l.b16 %v365
    %v3316 = vunpack.c.h.b16 %v365
    %v3317 = vunpack.c.l.b16 %v366
    %v3318 = vunpack.c.h.b16 %v366
    %v3319 = vunpack.c.l.b16 %v367
    %v3320 = vunpack.c.h.b16 %v367
    %v3321 = vunpack.c.l.b16 %v368
    %v3322 = vunpack.c.h.b16 %v368
    %v3323 = vunpack.c.l.b16 %v369
    %v3324 = vunpack.c.h.b16 %v369
    %v3325 = vunpack.c.l.b16 %v370
    %v3326 = vunpack.c.h.b16 %v370
    %v3327 = vunpack.c.l.b16 %v371
    %v3328 = vunpack.c.h.b16 %v371
    %v3329 = vunpack.c.l.b16 %v372
    %v3330 = vunpack.c.h.b16 %v372
    %v3331 = vunpack.c.l.b16 %v373
    %v3332 = vunpack.c.h.b16 %v373
    %v3333 = vunpack.c.l.b16 %v374
    %v3334 = vunpack.c.h.b16 %v374
    %v3335 = vunpack.c.l.b16 %v375
    %v3336 = vunpack.c.h.b16 %v375
    %v3337 = vunpack.c.l.b16 %v376
    %v3338 = vunpack.c.h.b16 %v376
    %v3339 = vunpack.c.l.b16 %v377
    %v3340 = vunpack.c.h.b16 %v377
    %v3341 = vunpack.c.l.b16 %v378
    %v3342 = vunpack.c.h.b16 %v378
    %v3343 = vunpack.c.l.b16 %v379
    %v3344 = vunpack.c.h.b16 %v379
    %v3345 = vunpack.c.l.b16 %v380
    %v3346 = vunpack.c.h.b16 %v380
    %v3347 = vunpack.c.l.b16 %v381
    %v3348 = vunpack.c.h.b16 %v381
    %v3349 = vunpack.c.l.b16 %v382
    %v3350 = vunpack.c.h.b16 %v382
    %v3351 = vunpack.c.l.b16 %v383
    %v3352 = vunpack.c.h.b16 %v383
    %v3353 = vunpack.c.l.b16 %v384
    %v3354 = vunpack.c.h.b16 %v384
    %v3355 = vunpack.c.l.b16 %v385
    %v3356 = vunpack.c.h.b16 %v385
    %v3357 = vunpack.c.l.b16 %v386
    %v3358 = vunpack.c.h.b16 %v386
    %v3359 = vunpack.c.l.b16 %v387
    %v3360 = vunpack.c.h.b16 %v387
    %v3361 = vunpack.c.l.b16 %v388
    %v3362 = vunpack.c.h.b16 %v388
    %v3363 = vunpack.c.l.b16 %v389
    %v3364 = vunpack.c.h.b16 %v389
    %v3365 = vunpack.c.l.b16 %v390
    %v3366 = vunpack.c.h.b16 %v390
    %v3367 = vunpack.c.l.b16 %v391
    %v3368 = vunpack.c.h.b16 %v391
    %v3369 = vunpack.c.l.b16 %v392
    %v3370 = vunpack.c.h.b16 %v392
    %v3371 = vunpack.c.l.b16 %v393
    %v3372 = vunpack.c.h.b16 %v393
    %v3373 = vunpack.c.l.b16 %v394
    %v3374 = vunpack.c.h.b16 %v394
    %v3375 = vunpack.c.l.b16 %v395
    %v3376 = vunpack.c.h.b16 %v395
    %v3377 = vunpack.c.l.b16 %v396
    %v3378 = vunpack.c.h.b16 %v396
    %v3379 = vunpack.c.l.b16 %v397
    %v3380 = vunpack.c.h.b16 %v397
    %v3381 = vunpack.c.l.b16 %v398
    %v3382 = vunpack.c.h.b16 %v398
    %v3383 = vunpack.c.l.b16 %v399
    %v3384 = vunpack.c.h.b16 %v399
    %v3385 = vunpack.c.l.b16 %v400
    %v3386 = vunpack.c.h.b16 %v400
    %v3387 = vunpack.c.l.b16 %v401
    %v3388 = vunpack.c.h.b16 %v401
    %v3389 = vunpack.c.l.b16 %v402
    %v3390 = vunpack.c.h.b16 %v402
    %v3391 = vunpack.c.l.b16 %v403
    %v3392 = vunpack.c.h.b16 %v403
    %v3393 = vunpack.c.l.b16 %v404
    %v3394 = vunpack.c.h.b16 %v404
    %v3395 = vunpack.c.l.b16 %v405
    %v3396 = vunpack.c.h.b16 %v405
    %v3397 = vunpack.c.l.b16 %v406
    %v3398 = vunpack.c.h.b16 %v406
    %v3399 = vunpack.c.l.b16 %v407
    %v3400 = vunpack.c.h.b16 %v407
    %v3401 = vunpack.c.l.b16 %v408
    %v3402 = vunpack.c.h.b16 %v408
    %v3403 = vunpack.c.l.b16 %v409
    %v3404 = vunpack.c.h.b16 %v409
    %v3405 = vunpack.c.l.b16 %v410
    %v3406 = vunpack.c.h.b16 %v410
    %v3407 = vunpack.c.l.b16 %v411
    %v3408 = vunpack.c.h.b16 %v411
    %v3409 = vunpack.c.l.b16 %v412
    %v3410 = vunpack.c.h.b16 %v412
    %v3411 = vunpack.c.l.b16 %v413
    %v3412 = vunpack.c.h.b16 %v413
    %v3413 = vunpack.c.l.b16 %v414
    %v3414 = vunpack.c.h.b16 %v414
    %v3415 = vunpack.c.l.b16 %v415
    %v3416 = vunpack.c.h.b16 %v415
    %v3417 = vunpack.c.l.b16 %v416
    %v3418 = vunpack.c.h.b16 %v416
    %v3419 = vunpack.c.l.b16 %v417
    %v3420 = vunpack.c.h.b16 %v417
    %v3421 = vunpack.c.l.b16 %v418
    %v3422 = vunpack.c.h.b16 %v418
    %v3423 = vunpack.c.l.b16 %v419
    %v3424 = vunpack.c.h.b16 %v419
    %v3425 = vunpack.c.l.b16 %v420
    %v3426 = vunpack.c.h.b16 %v420
    %v3427 = vunpack.c.l.b16 %v421
    %v3428 = vunpack.c.h.b16 %v421
    %v3429 = vunpack.c.l.b16 %v422
    %v3430 = vunpack.c.h.b16 %v422
    %v3431 = vunpack.c.l.b16 %v423
    %v3432 = vunpack.c.h.b16 %v423
    %v3433 = vunpack.c.l.b16 %v424
    %v3434 = vunpack.c.h.b16 %v424
    %v3435 = vunpack.c.l.b16 %v425
    %v3436 = vunpack.c.h.b16 %v425
    %v3437 = vunpack.c.l.b16 %v426
    %v3438 = vunpack.c.h.b16 %v426
    %v3439 = vunpack.c.l.b16 %v427
    %v3440 = vunpack.c.h.b16 %v427
    %v3441 = vunpack.c.l.b16 %v428
    %v3442 = vunpack.c.h.b16 %v428
    %v3443 = vunpack.c.l.b16 %v429
    %v3444 = vunpack.c.h.b16 %v429
    %v3445 = vunpack.c.l.b16 %v430
    %v3446 = vunpack.c.h.b16 %v430
    %v3447 = vunpack.c.l.b16 %v431
    %v3448 = vunpack.c.h.b16 %v431
    %v3449 = vunpack.c.l.b16 %v432
    %v3450 = vunpack.c.h.b16 %v432
    %v3451 = vunpack.c.l.b16 %v433
    %v3452 = vunpack.c.h.b16 %v433
    %v3453 = vunpack.c.l.b16 %v434
    %v3454 = vunpack.c.h.b16 %v434
    %v3455 = vunpack.c.l.b16 %v435
    %v3456 = vunpack.c.h.b16 %v435
    %v3457 = vunpack.c.l.b16 %v436
    %v3458 = vunpack.c.h.b16 %v436
    %v3459 = vunpack.c.l.b16 %v437
    %v3460 = vunpack.c.h.b16 %v437
    %v3461 = vunpack.c.l.b16 %v438
    %v3462 = vunpack.c.h.b16 %v438
    %v3463 = vunpack.c.l.b16 %v439
    %v3464 = vunpack.c.h.b16 %v439
    %v3465 = vunpack.c.l.b16 %v440
    %v3466 = vunpack.c.h.b16 %v440
    %v3467 = vunpack.c.l.b16 %v441
    %v3468 = vunpack.c.h.b16 %v441
    %v3469 = vunpack.c.l.b16 %v442
    %v3470 = vunpack.c.h.b16 %v442
    %v3471 = vunpack.c.l.b16 %v443
    %v3472 = vunpack.c.h.b16 %v443
    %v3473 = vunpack.c.l.b16 %v444
    %v3474 = vunpack.c.h.b16 %v444
    %v3475 = vunpack.c.l.b16 %v445
    %v3476 = vunpack.c.h.b16 %v445
    %v3477 = vunpack.c.l.b16 %v446
    %v3478 = vunpack.c.h.b16 %v446
    %v3479 = vunpack.c.l.b16 %v447
    %v3480 = vunpack.c.h.b16 %v447
    %v3481 = vunpack.c.l.b16 %v448
    %v3482 = vunpack.c.h.b16 %v448
    %v3483 = vunpack.c.l.b16 %v449
    %v3484 = vunpack.c.h.b16 %v449
    %v3485 = vunpack.c.l.b16 %v450
    %v3486 = vunpack.c.h.b16 %v450
    %v3487 = vunpack.c.l.b16 %v451
    %v3488 = vunpack.c.h.b16 %v451
    %v3489 = vunpack.c.l.b16 %v452
    %v3490 = vunpack.c.h.b16 %v452
    %v3491 = vunpack.c.l.b16 %v453
    %v3492 = vunpack.c.h.b16 %v453
    %v3493 = vpack.c.b16 %v2923, %v2917
    %v3494 = vpack.c.b16 %v2924, %v2918
    %v3495 = vpack.c.b16 %v2925, %v2919
    %v3496 = vpack.c.b16 %v2926, %v2920
    %v3497 = vpack.c.b16 %v2927, %v2921
    %v3498 = vpack.c.b16 %v2928, %v2922
    %v3499 = vpack.c.b16 %v2935, %v2929
    %v3500 = vpack.c.b16 %v2936, %v2930
    %v3501 = vpack.c.b16 %v2937, %v2931
    %v3502 = vpack.c.b16 %v2938, %v2932
    %v3503 = vpack.c.b16 %v2939, %v2933
    %v3504 = vpack.c.b16 %v2940, %v2934
    %v3505 = vpack.c.b16 %v2947, %v2941
    %v3506 = vpack.c.b16 %v2948, %v2942
    %v3507 = vpack.c.b16 %v2949, %v2943
    %v3508 = vpack.c.b16 %v2950, %v2944
    %v3509 = vpack.c.b16 %v2951, %v2945
    %v3510 = vpack.c.b16 %v2952, %v2946
    %v3511 = vpack.c.b16 %v2959, %v2953
    %v3512 = vpack.c.b16 %v2960, %v2954
    %v3513 = vpack.c.b16 %v2961, %v2955
    %v3514 = vpack.c.b16 %v2962, %v2956
    %v3515 = vpack.c.b16 %v2963, %v2957
    %v3516 = vpack.c.b16 %v2964, %v2958
    %v3517 = vpack.c.b16 %v2971, %v2965
    %v3518 = vpack.c.b16 %v2972, %v2966
    %v3519 = vpack.c.b16 %v2973, %v2967
    %v3520 = vpack.c.b16 %v2974, %v2968
    %v3521 = vpack.c.b16 %v2975, %v2969
    %v3522 = vpack.c.b16 %v2976, %v2970
    %v3523 = vpack.c.b16 %v2983, %v2977
    %v3524 = vpack.c.b16 %v2984, %v2978
    %v3525 = vpack.c.b16 %v2985, %v2979
    %v3526 = vpack.c.b16 %v2986, %v2980
    %v3527 = vpack.c.b16 %v2987, %v2981
    %v3528 = vpack.c.b16 %v2988, %v2982
    %v3529 = vpack.c.b16 %v2995, %v2989
    %v3530 = vpack.c.b16 %v2996, %v2990
    %v3531 = vpack.c.b16 %v2997, %v2991
    %v3532 = vpack.c.b16 %v2998, %v2992
    %v3533 = vpack.c.b16 %v2999, %v2993
    %v3534 = vpack.c.b16 %v3000, %v2994
    %v3535 = vpack.c.b16 %v3007, %v3001
    %v3536 = vpack.c.b16 %v3008, %v3002
    %v3537 = vpack.c.b16 %v3009, %v3003
    %v3538 = vpack.c.b16 %v3010, %v3004
    %v3539 = vpack.c.b16 %v3011, %v3005
    %v3540 = vpack.c.b16 %v3012, %v3006
    %v3541 = vpack.c.b16 %v3019, %v3013
    %v3542 = vpack.c.b16 %v3020, %v3014
    %v3543 = vpack.c.b16 %v3021, %v3015
    %v3544 = vpack.c.b16 %v3022, %v3016
    %v3545 = vpack.c.b16 %v3023, %v3017
    %v3546 = vpack.c.b16 %v3024, %v3018
    %v3547 = vpack.c.b16 %v3031, %v3025
    %v3548 = vpack.c.b16 %v3032, %v3026
    %v3549 = vpack.c.b16 %v3033, %v3027
    %v3550 = vpack.c.b16 %v3034, %v3028
    %v3551 = vpack.c.b16 %v3035, %v3029
    %v3552 = vpack.c.b16 %v3036, %v3030
    %v3553 = vpack.c.b16 %v3043, %v3037
    %v3554 = vpack.c.b16 %v3044, %v3038
    %v3555 = vpack.c.b16 %v3045, %v3039
    %v3556 = vpack.c.b16 %v3046, %v3040
    %v3557 = vpack.c.b16 %v3047, %v3041
    %v3558 = vpack.c.b16 %v3048, %v3042
    %v3559 = vpack.c.b16 %v3055, %v3049
    %v3560 = vpack.c.b16 %v3056, %v3050
    %v3561 = vpack.c.b16 %v3057, %v3051
    %v3562 = vpack.c.b16 %v3058, %v3052
    %v3563 = vpack.c.b16 %v3059, %v3053
    %v3564 = vpack.c.b16 %v3060, %v3054
    %v3565 = vpack.c.b16 %v3067, %v3061
    %v3566 = vpack.c.b16 %v3068, %v3062
    %v3567 = vpack.c.b16 %v3069, %v3063
    %v3568 = vpack.c.b16 %v3070, %v3064
    %v3569 = vpack.c.b16 %v3071, %v3065
    %v3570 = vpack.c.b16 %v3072, %v3066
    %v3571 = vpack.c.b16 %v3079, %v3073
    %v3572 = vpack.c.b16 %v3080, %v3074
    %v3573 = vpack.c.b16 %v3081, %v3075
    %v3574 = vpack.c.b16 %v3082, %v3076
    %v3575 = vpack.c.b16 %v3083, %v3077
    %v3576 = vpack.c.b16 %v3084, %v3078
    %v3577 = vpack.c.b16 %v3091, %v3085
    %v3578 = vpack.c.b16 %v3092, %v3086
    %v3579 = vpack.c.b16 %v3093, %v3087
    %v3580 = vpack.c.b16 %v3094, %v3088
    %v3581 = vpack.c.b16 %v3095, %v3089
    %v3582 = vpack.c.b16 %v3096, %v3090
    %v3583 = vpack.c.b16 %v3103, %v3097
    %v3584 = vpack.c.b16 %v3104, %v3098
    %v3585 = vpack.c.b16 %v3105, %v3099
    %v3586 = vpack.c.b16 %v3106, %v3100
    %v3587 = vpack.c.b16 %v3107, %v3101
    %v3588 = vpack.c.b16 %v3108, %v3102
    %v3589 = vpack.c.b16 %v3115, %v3109
    %v3590 = vpack.c.b16 %v3116, %v3110
    %v3591 = vpack.c.b16 %v3117, %v3111
    %v3592 = vpack.c.b16 %v3118, %v3112
    %v3593 = vpack.c.b16 %v3119, %v3113
    %v3594 = vpack.c.b16 %v3120, %v3114
    %v3595 = vpack.c.b16 %v3127, %v3121
    %v3596 = vpack.c.b16 %v3128, %v3122
    %v3597 = vpack.c.b16 %v3129, %v3123
    %v3598 = vpack.c.b16 %v3130, %v3124
    %v3599 = vpack.c.b16 %v3131, %v3125
    %v3600 = vpack.c.b16 %v3132, %v3126
    %v3601 = vpack.c.b16 %v3139, %v3133
    %v3602 = vpack.c.b16 %v3140, %v3134
    %v3603 = vpack.c.b16 %v3141, %v3135
    %v3604 = vpack.c.b16 %v3142, %v3136
    %v3605 = vpack.c.b16 %v3143, %v3137
    %v3606 = vpack.c.b16 %v3144, %v3138
    %v3607 = vpack.c.b16 %v3151, %v3145
    %v3608 = vpack.c.b16 %v3152, %v3146
    %v3609 = vpack.c.b16 %v3153, %v3147
    %v3610 = vpack.c.b16 %v3154, %v3148
    %v3611 = vpack.c.b16 %v3155, %v3149
    %v3612 = vpack.c.b16 %v3156, %v3150
    %v3613 = vpack.c.b16 %v3163, %v3157
    %v3614 = vpack.c.b16 %v3164, %v3158
    %v3615 = vpack.c.b16 %v3165, %v3159
    %v3616 = vpack.c.b16 %v3166, %v3160
    %v3617 = vpack.c.b16 %v3167, %v3161
    %v3618 = vpack.c.b16 %v3168, %v3162
    %v3619 = vpack.c.b16 %v3175, %v3169
    %v3620 = vpack.c.b16 %v3176, %v3170
    %v3621 = vpack.c.b16 %v3177, %v3171
    %v3622 = vpack.c.b16 %v3178, %v3172
    %v3623 = vpack.c.b16 %v3179, %v3173
    %v3624 = vpack.c.b16 %v3180, %v3174
    %v3625 = vpack.c.b16 %v3187, %v3181
    %v3626 = vpack.c.b16 %v3188, %v3182
    %v3627 = vpack.c.b16 %v3189, %v3183
    %v3628 = vpack.c.b16 %v3190, %v3184
    %v3629 = vpack.c.b16 %v3191, %v3185
    %v3630 = vpack.c.b16 %v3192, %v3186
    %v3631 = vpack.c.b16 %v3199, %v3193
    %v3632 = vpack.c.b16 %v3200, %v3194
    %v3633 = vpack.c.b16 %v3201, %v3195
    %v3634 = vpack.c.b16 %v3202, %v3196
    %v3635 = vpack.c.b16 %v3203, %v3197
    %v3636 = vpack.c.b16 %v3204, %v3198
    %v3637 = vpack.c.b16 %v3211, %v3205
    %v3638 = vpack.c.b16 %v3212, %v3206
    %v3639 = vpack.c.b16 %v3213, %v3207
    %v3640 = vpack.c.b16 %v3214, %v3208
    %v3641 = vpack.c.b16 %v3215, %v3209
    %v3642 = vpack.c.b16 %v3216, %v3210
    %v3643 = vpack.c.b16 %v3223, %v3217
    %v3644 = vpack.c.b16 %v3224, %v3218
    %v3645 = vpack.c.b16 %v3225, %v3219
    %v3646 = vpack.c.b16 %v3226, %v3220
    %v3647 = vpack.c.b16 %v3227, %v3221
    %v3648 = vpack.c.b16 %v3228, %v3222
    %v3649 = vpack.c.b16 %v3235, %v3229
    %v3650 = vpack.c.b16 %v3236, %v3230
    %v3651 = vpack.c.b16 %v3237, %v3231
    %v3652 = vpack.c.b16 %v3238, %v3232
    %v3653 = vpack.c.b16 %v3239, %v3233
    %v3654 = vpack.c.b16 %v3240, %v3234
    %v3655 = vpack.c.b16 %v3247, %v3241
    %v3656 = vpack.c.b16 %v3248, %v3242
    %v3657 = vpack.c.b16 %v3249, %v3243
    %v3658 = vpack.c.b16 %v3250, %v3244
    %v3659 = vpack.c.b16 %v3251, %v3245
    %v3660 = vpack.c.b16 %v3252, %v3246
    %v3661 = vpack.c.b16 %v3259, %v3253
    %v3662 = vpack.c.b16 %v3260, %v3254
    %v3663 = vpack.c.b16 %v3261, %v3255
    %v3664 = vpack.c.b16 %v3262, %v3256
    %v3665 = vpack.c.b16 %v3263, %v3257
    %v3666 = vpack.c.b16 %v3264, %v3258
    %v3667 = vpack.c.b16 %v3271, %v3265
    %v3668 = vpack.c.b16 %v3272, %v3266
    %v3669 = vpack.c.b16 %v3273, %v3267
    %v3670 = vpack.c.b16 %v3274, %v3268
    %v3671 = vpack.c.b16 %v3275, %v3269
    %v3672 = vpack.c.b16 %v3276, %v3270
    %v3673 = vpack.c.b16 %v3283, %v3277
    %v3674 = vpack.c.b16 %v3284, %v3278
    %v3675 = vpack.c.b16 %v3285, %v3279
    %v3676 = vpack.c.b16 %v3286, %v3280
    %v3677 = vpack.c.b16 %v3287, %v3281
    %v3678 = vpack.c.b16 %v3288, %v3282
    %v3679 = vpack.c.b16 %v3295, %v3289
    %v3680 = vpack.c.b16 %v3296, %v3290
    %v3681 = vpack.c.b16 %v3297, %v3291
    %v3682 = vpack.c.b16 %v3298, %v3292
    %v3683 = vpack.c.b16 %v3299, %v3293
    %v3684 = vpack.c.b16 %v3300, %v3294
    %v3685 = vpack.c.b16 %v3307, %v3301
    %v3686 = vpack.c.b16 %v3308, %v3302
    %v3687 = vpack.c.b16 %v3309, %v3303
    %v3688 = vpack.c.b16 %v3310, %v3304
    %v3689 = vpack.c.b16 %v3311, %v3305
    %v3690 = vpack.c.b16 %v3312, %v3306
    %v3691 = vpack.c.b16 %v3319, %v3313
    %v3692 = vpack.c.b16 %v3320, %v3314
    %v3693 = vpack.c.b16 %v3321, %v3315
    %v3694 = vpack.c.b16 %v3322, %v3316
    %v3695 = vpack.c.b16 %v3323, %v3317
    %v3696 = vpack.c.b16 %v3324, %v3318
    %v3697 = vpack.c.b16 %v3331, %v3325
    %v3698 = vpack.c.b16 %v3332, %v3326
    %v3699 = vpack.c.b16 %v3333, %v3327
    %v3700 = vpack.c.b16 %v3334, %v3328
    %v3701 = vpack.c.b16 %v3335, %v3329
    %v3702 = vpack.c.b16 %v3336, %v3330
    %v3703 = vpack.c.b16 %v3343, %v3337
    %v3704 = vpack.c.b16 %v3344, %v3338
    %v3705 = vpack.c.b16 %v3345, %v3339
    %v3706 = vpack.c.b16 %v3346, %v3340
    %v3707 = vpack.c.b16 %v3347, %v3341
    %v3708 = vpack.c.b16 %v3348, %v3342
    %v3709 = vpack.c.b16 %v3355, %v3349
    %v3710 = vpack.c.b16 %v3356, %v3350
    %v3711 = vpack.c.b16 %v3357, %v3351
    %v3712 = vpack.c.b16 %v3358, %v3352
    %v3713 = vpack.c.b16 %v3359, %v3353
    %v3714 = vpack.c.b16 %v3360, %v3354
    %v3715 = vpack.c.b16 %v3367, %v3361
    %v3716 = vpack.c.b16 %v3368, %v3362
    %v3717 = vpack.c.b16 %v3369, %v3363
    %v3718 = vpack.c.b16 %v3370, %v3364
    %v3719 = vpack.c.b16 %v3371, %v3365
    %v3720 = vpack.c.b16 %v3372, %v3366
    %v3721 = vpack.c.b16 %v3379, %v3373
    %v3722 = vpack.c.b16 %v3380, %v3374
    %v3723 = vpack.c.b16 %v3381, %v3375
    %v3724 = vpack.c.b16 %v3382, %v3376
    %v3725 = vpack.c.b16 %v3383, %v3377
    %v3726 = vpack.c.b16 %v3384, %v3378
    %v3727 = vpack.c.b16 %v3391, %v3385
    %v3728 = vpack.c.b16 %v3392, %v3386
    %v3729 = vpack.c.b16 %v3393, %v3387
    %v3730 = vpack.c.b16 %v3394, %v3388
    %v3731 = vpack.c.b16 %v3395, %v3389
    %v3732 = vpack.c.b16 %v3396, %v3390
    %v3733 = vpack.c.b16 %v3403, %v3397
    %v3734 = vpack.c.b16 %v3404, %v3398
    %v3735 = vpack.c.b16 %v3405, %v3399
    %v3736 = vpack.c.b16 %v3406, %v3400
    %v3737 = vpack.c.b16 %v3407, %v3401
    %v3738 = vpack.c.b16 %v3408, %v3402
    %v3739 = vpack.c.b16 %v3415, %v3409
    %v3740 = vpack.c.b16 %v3416, %v3410
    %v3741 = vpack.c.b16 %v3417, %v3411
    %v3742 = vpack.c.b16 %v3418, %v3412
    %v3743 = vpack.c.b16 %v3419, %v3413
    %v3744 = vpack.c.b16 %v3420, %v3414
    %v3745 = vpack.c.b16 %v3427, %v3421
    %v3746 = vpack.c.b16 %v3428, %v3422
    %v3747 = vpack.c.b16 %v3429, %v3423
    %v3748 = vpack.c.b16 %v3430, %v3424
    %v3749 = vpack.c.b16 %v3431, %v3425
    %v3750 = vpack.c.b16 %v3432, %v3426
    %v3751 = vpack.c.b16 %v3439, %v3433
    %v3752 = vpack.c.b16 %v3440, %v3434
    %v3753 = vpack.c.b16 %v3441, %v3435
    %v3754 = vpack.c.b16 %v3442, %v3436
    %v3755 = vpack.c.b16 %v3443, %v3437
    %v3756 = vpack.c.b16 %v3444, %v3438
    %v3757 = vpack.c.b16 %v3451, %v3445
    %v3758 = vpack.c.b16 %v3452, %v3446
    %v3759 = vpack.c.b16 %v3453, %v3447
    %v3760 = vpack.c.b16 %v3454, %v3448
    %v3761 = vpack.c.b16 %v3455, %v3449
    %v3762 = vpack.c.b16 %v3456, %v3450
    %v3763 = vpack.c.b16 %v3463, %v3457
    %v3764 = vpack.c.b16 %v3464, %v3458
    %v3765 = vpack.c.b16 %v3465, %v3459
    %v3766 = vpack.c.b16 %v3466, %v3460
    %v3767 = vpack.c.b16 %v3467, %v3461
    %v3768 = vpack.c.b16 %v3468, %v3462
    %v3769 = vpack.c.b16 %v3475, %v3469
    %v3770 = vpack.c.b16 %v3476, %v3470
    %v3771 = vpack.c.b16 %v3477, %v3471
    %v3772 = vpack.c.b16 %v3478, %v3472
    %v3773 = vpack.c.b16 %v3479, %v3473
    %v3774 = vpack.c.b16 %v3480, %v3474
    %v3775 = vpack.c.b16 %v3487, %v3481
    %v3776 = vpack.c.b16 %v3488, %v3482
    %v3777 = vpack.c.b16 %v3489, %v3483
    %v3778 = vpack.c.b16 %v3490, %v3484
    %v3779 = vpack.c.b16 %v3491, %v3485
    %v3780 = vpack.c.b16 %v3492, %v3486
    %4069 = vmatprep.subr.bf16.mxu0 %v3494
    %4070 = vmatpush1.bf16.msra.mxu0 %v3493
    %4071 = vmatprep.subr.bf16.mxu0 %v3500
    %4072 = vmatpush1.bf16.msra.mxu0 %v3499
    %4073 = vmatprep.subr.bf16.mxu0 %v3506
    %4074 = vmatpush1.bf16.msra.mxu0 %v3505
    %4075 = vmatprep.subr.bf16.mxu0 %v3512
    %4076 = vmatpush1.bf16.msra.mxu0 %v3511
    %4077 = vmatprep.subr.bf16.mxu0 %v3518
    %4078 = vmatpush1.bf16.msra.mxu0 %v3517
    %4079 = vmatprep.subr.bf16.mxu0 %v3524
    %4080 = vmatpush1.bf16.msra.mxu0 %v3523
    %4081 = vmatprep.subr.bf16.mxu0 %v3530
    %4082 = vmatpush1.bf16.msra.mxu0 %v3529
    %4083 = vmatprep.subr.bf16.mxu0 %v3536
    %4084 = vmatpush1.bf16.msra.mxu0 %v3535
    %4085 = vmatprep.subr.bf16.mxu0 %v3542
    %4086 = vmatpush1.bf16.msra.mxu0 %v3541
    %4087 = vmatprep.subr.bf16.mxu0 %v3548
    %4088 = vmatpush1.bf16.msra.mxu0 %v3547
    %4089 = vmatprep.subr.bf16.mxu0 %v3554
    %4090 = vmatpush1.bf16.msra.mxu0 %v3553
    %4091 = vmatprep.subr.bf16.mxu0 %v3560
    %4092 = vmatpush1.bf16.msra.mxu0 %v3559
    %4093 = vmatprep.subr.bf16.mxu0 %v3566
    %4094 = vmatpush1.bf16.msra.mxu0 %v3565
    %4095 = vmatprep.subr.bf16.mxu0 %v3572
    %4096 = vmatpush1.bf16.msra.mxu0 %v3571
    %4097 = vmatprep.subr.bf16.mxu0 %v3578
    %4098 = vmatpush1.bf16.msra.mxu0 %v3577
    %4099 = vmatprep.subr.bf16.mxu0 %v3584
    %4100 = vmatpush1.bf16.msra.mxu0 %v3583
    %4101 = vmatprep.mubr.bf16.mxu0 %v2618
    %4102 = vmatmul.mubr.bf16.gmra.mrb[0].mxu0 %v2617
    %v4103 = vpop.f32.mrb[0].mxu0
    %v4104 = vadd.f32 %v2333, %v4103
    %v4105 = vpop.f32.mrb[0].mxu0
    %v4106 = vadd.f32 %v2335, %v4105
    %v4107 = vpop.f32.mrb[0].mxu0
    %v4108 = vadd.f32 %v2337, %v4107
    %v4109 = vpop.f32.mrb[0].mxu0
    %v4110 = vadd.f32 %v2339, %v4109
    %4111 = vdwg.mxu0
    %4112 = vmatprep.subr.bf16.mxu0 %v3590
    %4113 = vmatpush1.bf16.msra.mxu0 %v3589
    %4114 = vmatprep.subr.bf16.mxu0 %v3596
    %4115 = vmatpush1.bf16.msra.mxu0 %v3595
    %4116 = vmatprep.subr.bf16.mxu0 %v3602
    %4117 = vmatpush1.bf16.msra.mxu0 %v3601
    %4118 = vmatprep.subr.bf16.mxu0 %v3608
    %4119 = vmatpush1.bf16.msra.mxu0 %v3607
    %4120 = vmatprep.subr.bf16.mxu0 %v3614
    %4121 = vmatpush1.bf16.msra.mxu0 %v3613
    %4122 = vmatprep.subr.bf16.mxu0 %v3620
    %4123 = vmatpush1.bf16.msra.mxu0 %v3619
    %4124 = vmatprep.subr.bf16.mxu0 %v3626
    %4125 = vmatpush1.bf16.msra.mxu0 %v3625
    %4126 = vmatprep.subr.bf16.mxu0 %v3632
    %4127 = vmatpush1.bf16.msra.mxu0 %v3631
    %4128 = vmatprep.subr.bf16.mxu0 %v3638
    %4129 = vmatpush1.bf16.msra.mxu0 %v3637
    %4130 = vmatprep.subr.bf16.mxu0 %v3644
    %4131 = vmatpush1.bf16.msra.mxu0 %v3643
    %4132 = vmatprep.subr.bf16.mxu0 %v3650
    %4133 = vmatpush1.bf16.msra.mxu0 %v3649
    %4134 = vmatprep.subr.bf16.mxu0 %v3656
    %4135 = vmatpush1.bf16.msra.mxu0 %v3655
    %4136 = vmatprep.subr.bf16.mxu0 %v3662
    %4137 = vmatpush1.bf16.msra.mxu0 %v3661
    %4138 = vmatprep.subr.bf16.mxu0 %v3668
    %4139 = vmatpush1.bf16.msra.mxu0 %v3667
    %4140 = vmatprep.subr.bf16.mxu0 %v3674
    %4141 = vmatpush1.bf16.msra.mxu0 %v3673
    %4142 = vmatprep.subr.bf16.mxu0 %v3680
    %4143 = vmatpush1.bf16.msra.mxu0 %v3679
    %4144 = vmatprep.mubr.bf16.mxu0 %v2620
    %4145 = vmatmul.mubr.bf16.gmra.mrb[0].mxu0 %v2619
    %v4146 = vpop.f32.mrb[0].mxu0
    %v4147 = vadd.f32 %v4104, %v4146
    %v4148 = vpop.f32.mrb[0].mxu0
    %v4149 = vadd.f32 %v4106, %v4148
    %v4150 = vpop.f32.mrb[0].mxu0
    %v4151 = vadd.f32 %v4108, %v4150
    %v4152 = vpop.f32.mrb[0].mxu0
    %v4153 = vadd.f32 %v4110, %v4152
    %4154 = vdwg.mxu0
    %4155 = vmatprep.subr.bf16.mxu0 %v3686
    %4156 = vmatpush1.bf16.msra.mxu0 %v3685
    %4157 = vmatprep.subr.bf16.mxu0 %v3692
    %4158 = vmatpush1.bf16.msra.mxu0 %v3691
    %4159 = vmatprep.subr.bf16.mxu0 %v3698
    %4160 = vmatpush1.bf16.msra.mxu0 %v3697
    %4161 = vmatprep.subr.bf16.mxu0 %v3704
    %4162 = vmatpush1.bf16.msra.mxu0 %v3703
    %4163 = vmatprep.subr.bf16.mxu0 %v3710
    %4164 = vmatpush1.bf16.msra.mxu0 %v3709
    %4165 = vmatprep.subr.bf16.mxu0 %v3716
    %4166 = vmatpush1.bf16.msra.mxu0 %v3715
    %4167 = vmatprep.subr.bf16.mxu0 %v3722
    %4168 = vmatpush1.bf16.msra.mxu0 %v3721
    %4169 = vmatprep.subr.bf16.mxu0 %v3728
    %4170 = vmatpush1.bf16.msra.mxu0 %v3727
    %4171 = vmatprep.subr.bf16.mxu0 %v3734
    %4172 = vmatpush1.bf16.msra.mxu0 %v3733
    %4173 = vmatprep.subr.bf16.mxu0 %v3740
    %4174 = vmatpush1.bf16.msra.mxu0 %v3739
    %4175 = vmatprep.subr.bf16.mxu0 %v3746
    %4176 = vmatpush1.bf16.msra.mxu0 %v3745
    %4177 = vmatprep.subr.bf16.mxu0 %v3752
    %4178 = vmatpush1.bf16.msra.mxu0 %v3751
    %4179 = vmatprep.subr.bf16.mxu0 %v3758
    %4180 = vmatpush1.bf16.msra.mxu0 %v3757
    %4181 = vmatprep.subr.bf16.mxu0 %v3764
    %4182 = vmatpush1.bf16.msra.mxu0 %v3763
    %4183 = vmatprep.subr.bf16.mxu0 %v3770
    %4184 = vmatpush1.bf16.msra.mxu0 %v3769
    %4185 = vmatprep.subr.bf16.mxu0 %v3776
    %4186 = vmatpush1.bf16.msra.mxu0 %v3775
    %4187 = vmatprep.mubr.bf16.mxu0 %v2622
    %4188 = vmatmul.mubr.bf16.gmra.mrb[0].mxu0 %v2621
    %v4189 = vpop.f32.mrb[0].mxu0
    %v4190 = vadd.f32 %v4147, %v4189
    %v4191 = vpop.f32.mrb[0].mxu0
    %v4192 = vadd.f32 %v4149, %v4191
    %v4193 = vpop.f32.mrb[0].mxu0
    %v4194 = vadd.f32 %v4151, %v4193
    %v4195 = vpop.f32.mrb[0].mxu0
    %v4196 = vadd.f32 %v4153, %v4195
    %4197 = vdwg.mxu0
    %4198 = vmatprep.subr.bf16.mxu0 %v3496
    %4199 = vmatpush1.bf16.msra.mxu0 %v3495
    %4200 = vmatprep.subr.bf16.mxu0 %v3502
    %4201 = vmatpush1.bf16.msra.mxu0 %v3501
    %4202 = vmatprep.subr.bf16.mxu0 %v3508
    %4203 = vmatpush1.bf16.msra.mxu0 %v3507
    %4204 = vmatprep.subr.bf16.mxu0 %v3514
    %4205 = vmatpush1.bf16.msra.mxu0 %v3513
    %4206 = vmatprep.subr.bf16.mxu0 %v3520
    %4207 = vmatpush1.bf16.msra.mxu0 %v3519
    %4208 = vmatprep.subr.bf16.mxu0 %v3526
    %4209 = vmatpush1.bf16.msra.mxu0 %v3525
    %4210 = vmatprep.subr.bf16.mxu0 %v3532
    %4211 = vmatpush1.bf16.msra.mxu0 %v3531
    %4212 = vmatprep.subr.bf16.mxu0 %v3538
    %4213 = vmatpush1.bf16.msra.mxu0 %v3537
    %4214 = vmatprep.subr.bf16.mxu0 %v3544
    %4215 = vmatpush1.bf16.msra.mxu0 %v3543
    %4216 = vmatprep.subr.bf16.mxu0 %v3550
    %4217 = vmatpush1.bf16.msra.mxu0 %v3549
    %4218 = vmatprep.subr.bf16.mxu0 %v3556
    %4219 = vmatpush1.bf16.msra.mxu0 %v3555
    %4220 = vmatprep.subr.bf16.mxu0 %v3562
    %4221 = vmatpush1.bf16.msra.mxu0 %v3561
    %4222 = vmatprep.subr.bf16.mxu0 %v3568
    %4223 = vmatpush1.bf16.msra.mxu0 %v3567
    %4224 = vmatprep.subr.bf16.mxu0 %v3574
    %4225 = vmatpush1.bf16.msra.mxu0 %v3573
    %4226 = vmatprep.subr.bf16.mxu0 %v3580
    %4227 = vmatpush1.bf16.msra.mxu0 %v3579
    %4228 = vmatprep.subr.bf16.mxu0 %v3586
    %4229 = vmatpush1.bf16.msra.mxu0 %v3585
    %4230 = vmatprep.mubr.bf16.mxu0 %v2618
    %4231 = vmatmul.mubr.bf16.gmra.mrb[0].mxu0 %v2617
    %v4232 = vpop.f32.mrb[0].mxu0
    %v4233 = vadd.f32 %v2462, %v4232
    %v4234 = vpop.f32.mrb[0].mxu0
    %v4235 = vadd.f32 %v2464, %v4234
    %v4236 = vpop.f32.mrb[0].mxu0
    %v4237 = vadd.f32 %v2466, %v4236
    %v4238 = vpop.f32.mrb[0].mxu0
    %v4239 = vadd.f32 %v2468, %v4238
    %4240 = vdwg.mxu0
    %4241 = vmatprep.subr.bf16.mxu0 %v3592
    %4242 = vmatpush1.bf16.msra.mxu0 %v3591
    %4243 = vmatprep.subr.bf16.mxu0 %v3598
    %4244 = vmatpush1.bf16.msra.mxu0 %v3597
    %4245 = vmatprep.subr.bf16.mxu0 %v3604
    %4246 = vmatpush1.bf16.msra.mxu0 %v3603
    %4247 = vmatprep.subr.bf16.mxu0 %v3610
    %4248 = vmatpush1.bf16.msra.mxu0 %v3609
    %4249 = vmatprep.subr.bf16.mxu0 %v3616
    %4250 = vmatpush1.bf16.msra.mxu0 %v3615
    %4251 = vmatprep.subr.bf16.mxu0 %v3622
    %4252 = vmatpush1.bf16.msra.mxu0 %v3621
    %4253 = vmatprep.subr.bf16.mxu0 %v3628
    %4254 = vmatpush1.bf16.msra.mxu0 %v3627
    %4255 = vmatprep.subr.bf16.mxu0 %v3634
    %4256 = vmatpush1.bf16.msra.mxu0 %v3633
    %4257 = vmatprep.subr.bf16.mxu0 %v3640
    %4258 = vmatpush1.bf16.msra.mxu0 %v3639
    %4259 = vmatprep.subr.bf16.mxu0 %v3646
    %4260 = vmatpush1.bf16.msra.mxu0 %v3645
    %4261 = vmatprep.subr.bf16.mxu0 %v3652
    %4262 = vmatpush1.bf16.msra.mxu0 %v3651
    %4263 = vmatprep.subr.bf16.mxu0 %v3658
    %4264 = vmatpush1.bf16.msra.mxu0 %v3657
    %4265 = vmatprep.subr.bf16.mxu0 %v3664
    %4266 = vmatpush1.bf16.msra.mxu0 %v3663
    %4267 = vmatprep.subr.bf16.mxu0 %v3670
    %4268 = vmatpush1.bf16.msra.mxu0 %v3669
    %4269 = vmatprep.subr.bf16.mxu0 %v3676
    %4270 = vmatpush1.bf16.msra.mxu0 %v3675
    %4271 = vmatprep.subr.bf16.mxu0 %v3682
    %4272 = vmatpush1.bf16.msra.mxu0 %v3681
    %4273 = vmatprep.mubr.bf16.mxu0 %v2620
    %4274 = vmatmul.mubr.bf16.gmra.mrb[0].mxu0 %v2619
    %v4275 = vpop.f32.mrb[0].mxu0
    %v4276 = vadd.f32 %v4233, %v4275
    %v4277 = vpop.f32.mrb[0].mxu0
    %v4278 = vadd.f32 %v4235, %v4277
    %v4279 = vpop.f32.mrb[0].mxu0
    %v4280 = vadd.f32 %v4237, %v4279
    %v4281 = vpop.f32.mrb[0].mxu0
    %v4282 = vadd.f32 %v4239, %v4281
    %4283 = vdwg.mxu0
    %4284 = vmatprep.subr.bf16.mxu0 %v3688
    %4285 = vmatpush1.bf16.msra.mxu0 %v3687
    %4286 = vmatprep.subr.bf16.mxu0 %v3694
    %4287 = vmatpush1.bf16.msra.mxu0 %v3693
    %4288 = vmatprep.subr.bf16.mxu0 %v3700
    %4289 = vmatpush1.bf16.msra.mxu0 %v3699
    %4290 = vmatprep.subr.bf16.mxu0 %v3706
    %4291 = vmatpush1.bf16.msra.mxu0 %v3705
    %4292 = vmatprep.subr.bf16.mxu0 %v3712
    %4293 = vmatpush1.bf16.msra.mxu0 %v3711
    %4294 = vmatprep.subr.bf16.mxu0 %v3718
    %4295 = vmatpush1.bf16.msra.mxu0 %v3717
    %4296 = vmatprep.subr.bf16.mxu0 %v3724
    %4297 = vmatpush1.bf16.msra.mxu0 %v3723
    %4298 = vmatprep.subr.bf16.mxu0 %v3730
    %4299 = vmatpush1.bf16.msra.mxu0 %v3729
    %4300 = vmatprep.subr.bf16.mxu0 %v3736
    %4301 = vmatpush1.bf16.msra.mxu0 %v3735
    %4302 = vmatprep.subr.bf16.mxu0 %v3742
    %4303 = vmatpush1.bf16.msra.mxu0 %v3741
    %4304 = vmatprep.subr.bf16.mxu0 %v3748
    %4305 = vmatpush1.bf16.msra.mxu0 %v3747
    %4306 = vmatprep.subr.bf16.mxu0 %v3754
    %4307 = vmatpush1.bf16.msra.mxu0 %v3753
    %4308 = vmatprep.subr.bf16.mxu0 %v3760
    %4309 = vmatpush1.bf16.msra.mxu0 %v3759
    %4310 = vmatprep.subr.bf16.mxu0 %v3766
    %4311 = vmatpush1.bf16.msra.mxu0 %v3765
    %4312 = vmatprep.subr.bf16.mxu0 %v3772
    %4313 = vmatpush1.bf16.msra.mxu0 %v3771
    %4314 = vmatprep.subr.bf16.mxu0 %v3778
    %4315 = vmatpush1.bf16.msra.mxu0 %v3777
    %4316 = vmatprep.mubr.bf16.mxu0 %v2622
    %4317 = vmatmul.mubr.bf16.gmra.mrb[0].mxu0 %v2621
    %v4318 = vpop.f32.mrb[0].mxu0
    %v4319 = vadd.f32 %v4276, %v4318
    %v4320 = vpop.f32.mrb[0].mxu0
    %v4321 = vadd.f32 %v4278, %v4320
    %v4322 = vpop.f32.mrb[0].mxu0
    %v4323 = vadd.f32 %v4280, %v4322
    %v4324 = vpop.f32.mrb[0].mxu0
    %v4325 = vadd.f32 %v4282, %v4324
    %4326 = vdwg.mxu0
    %4327 = vmatprep.subr.bf16.mxu0 %v3498
    %4328 = vmatpush1.bf16.msra.mxu0 %v3497
    %4329 = vmatprep.subr.bf16.mxu0 %v3504
    %4330 = vmatpush1.bf16.msra.mxu0 %v3503
    %4331 = vmatprep.subr.bf16.mxu0 %v3510
    %4332 = vmatpush1.bf16.msra.mxu0 %v3509
    %4333 = vmatprep.subr.bf16.mxu0 %v3516
    %4334 = vmatpush1.bf16.msra.mxu0 %v3515
    %4335 = vmatprep.subr.bf16.mxu0 %v3522
    %4336 = vmatpush1.bf16.msra.mxu0 %v3521
    %4337 = vmatprep.subr.bf16.mxu0 %v3528
    %4338 = vmatpush1.bf16.msra.mxu0 %v3527
    %4339 = vmatprep.subr.bf16.mxu0 %v3534
    %4340 = vmatpush1.bf16.msra.mxu0 %v3533
    %4341 = vmatprep.subr.bf16.mxu0 %v3540
    %4342 = vmatpush1.bf16.msra.mxu0 %v3539
    %4343 = vmatprep.subr.bf16.mxu0 %v3546
    %4344 = vmatpush1.bf16.msra.mxu0 %v3545
    %4345 = vmatprep.subr.bf16.mxu0 %v3552
    %4346 = vmatpush1.bf16.msra.mxu0 %v3551
    %4347 = vmatprep.subr.bf16.mxu0 %v3558
    %4348 = vmatpush1.bf16.msra.mxu0 %v3557
    %4349 = vmatprep.subr.bf16.mxu0 %v3564
    %4350 = vmatpush1.bf16.msra.mxu0 %v3563
    %4351 = vmatprep.subr.bf16.mxu0 %v3570
    %4352 = vmatpush1.bf16.msra.mxu0 %v3569
    %4353 = vmatprep.subr.bf16.mxu0 %v3576
    %4354 = vmatpush1.bf16.msra.mxu0 %v3575
    %4355 = vmatprep.subr.bf16.mxu0 %v3582
    %4356 = vmatpush1.bf16.msra.mxu0 %v3581
    %4357 = vmatprep.subr.bf16.mxu0 %v3588
    %4358 = vmatpush1.bf16.msra.mxu0 %v3587
    %4359 = vmatprep.mubr.bf16.mxu0 %v2618
    %4360 = vmatmul.mubr.bf16.gmra.mrb[0].mxu0 %v2617
    %v4361 = vpop.f32.mrb[0].mxu0
    %v4362 = vadd.f32 %v2591, %v4361
    %v4363 = vpop.f32.mrb[0].mxu0
    %v4364 = vadd.f32 %v2593, %v4363
    %v4365 = vpop.f32.mrb[0].mxu0
    %v4366 = vadd.f32 %v2595, %v4365
    %v4367 = vpop.f32.mrb[0].mxu0
    %v4368 = vadd.f32 %v2597, %v4367
    %4369 = vdwg.mxu0
    %4370 = vmatprep.subr.bf16.mxu0 %v3594
    %4371 = vmatpush1.bf16.msra.mxu0 %v3593
    %4372 = vmatprep.subr.bf16.mxu0 %v3600
    %4373 = vmatpush1.bf16.msra.mxu0 %v3599
    %4374 = vmatprep.subr.bf16.mxu0 %v3606
    %4375 = vmatpush1.bf16.msra.mxu0 %v3605
    %4376 = vmatprep.subr.bf16.mxu0 %v3612
    %4377 = vmatpush1.bf16.msra.mxu0 %v3611
    %4378 = vmatprep.subr.bf16.mxu0 %v3618
    %4379 = vmatpush1.bf16.msra.mxu0 %v3617
    %4380 = vmatprep.subr.bf16.mxu0 %v3624
    %4381 = vmatpush1.bf16.msra.mxu0 %v3623
    %4382 = vmatprep.subr.bf16.mxu0 %v3630
    %4383 = vmatpush1.bf16.msra.mxu0 %v3629
    %4384 = vmatprep.subr.bf16.mxu0 %v3636
    %4385 = vmatpush1.bf16.msra.mxu0 %v3635
    %4386 = vmatprep.subr.bf16.mxu0 %v3642
    %4387 = vmatpush1.bf16.msra.mxu0 %v3641
    %4388 = vmatprep.subr.bf16.mxu0 %v3648
    %4389 = vmatpush1.bf16.msra.mxu0 %v3647
    %4390 = vmatprep.subr.bf16.mxu0 %v3654
    %4391 = vmatpush1.bf16.msra.mxu0 %v3653
    %4392 = vmatprep.subr.bf16.mxu0 %v3660
    %4393 = vmatpush1.bf16.msra.mxu0 %v3659
    %4394 = vmatprep.subr.bf16.mxu0 %v3666
    %4395 = vmatpush1.bf16.msra.mxu0 %v3665
    %4396 = vmatprep.subr.bf16.mxu0 %v3672
    %4397 = vmatpush1.bf16.msra.mxu0 %v3671
    %4398 = vmatprep.subr.bf16.mxu0 %v3678
    %4399 = vmatpush1.bf16.msra.mxu0 %v3677
    %4400 = vmatprep.subr.bf16.mxu0 %v3684
    %4401 = vmatpush1.bf16.msra.mxu0 %v3683
    %4402 = vmatprep.mubr.bf16.mxu0 %v2620
    %4403 = vmatmul.mubr.bf16.gmra.mrb[0].mxu0 %v2619
    %v4404 = vpop.f32.mrb[0].mxu0
    %v4405 = vadd.f32 %v4362, %v4404
    %v4406 = vpop.f32.mrb[0].mxu0
    %v4407 = vadd.f32 %v4364, %v4406
    %v4408 = vpop.f32.mrb[0].mxu0
    %v4409 = vadd.f32 %v4366, %v4408
    %v4410 = vpop.f32.mrb[0].mxu0
    %v4411 = vadd.f32 %v4368, %v4410
    %4412 = vdwg.mxu0
    %4413 = vmatprep.subr.bf16.mxu0 %v3690
    %4414 = vmatpush1.bf16.msra.mxu0 %v3689
    %4415 = vmatprep.subr.bf16.mxu0 %v3696
    %4416 = vmatpush1.bf16.msra.mxu0 %v3695
    %4417 = vmatprep.subr.bf16.mxu0 %v3702
    %4418 = vmatpush1.bf16.msra.mxu0 %v3701
    %4419 = vmatprep.subr.bf16.mxu0 %v3708
    %4420 = vmatpush1.bf16.msra.mxu0 %v3707
    %4421 = vmatprep.subr.bf16.mxu0 %v3714
    %4422 = vmatpush1.bf16.msra.mxu0 %v3713
    %4423 = vmatprep.subr.bf16.mxu0 %v3720
    %4424 = vmatpush1.bf16.msra.mxu0 %v3719
    %4425 = vmatprep.subr.bf16.mxu0 %v3726
    %4426 = vmatpush1.bf16.msra.mxu0 %v3725
    %4427 = vmatprep.subr.bf16.mxu0 %v3732
    %4428 = vmatpush1.bf16.msra.mxu0 %v3731
    %4429 = vmatprep.subr.bf16.mxu0 %v3738
    %4430 = vmatpush1.bf16.msra.mxu0 %v3737
    %4431 = vmatprep.subr.bf16.mxu0 %v3744
    %4432 = vmatpush1.bf16.msra.mxu0 %v3743
    %4433 = vmatprep.subr.bf16.mxu0 %v3750
    %4434 = vmatpush1.bf16.msra.mxu0 %v3749
    %4435 = vmatprep.subr.bf16.mxu0 %v3756
    %4436 = vmatpush1.bf16.msra.mxu0 %v3755
    %4437 = vmatprep.subr.bf16.mxu0 %v3762
    %4438 = vmatpush1.bf16.msra.mxu0 %v3761
    %4439 = vmatprep.subr.bf16.mxu0 %v3768
    %4440 = vmatpush1.bf16.msra.mxu0 %v3767
    %4441 = vmatprep.subr.bf16.mxu0 %v3774
    %4442 = vmatpush1.bf16.msra.mxu0 %v3773
    %4443 = vmatprep.subr.bf16.mxu0 %v3780
    %4444 = vmatpush1.bf16.msra.mxu0 %v3779
    %4445 = vmatprep.mubr.bf16.mxu0 %v2622
    %4446 = vmatmul.mubr.bf16.gmra.mrb[0].mxu0 %v2621
    %v4447 = vpop.f32.mrb[0].mxu0
    %v4448 = vadd.f32 %v4405, %v4447
    %v4449 = vpop.f32.mrb[0].mxu0
    %v4450 = vadd.f32 %v4407, %v4449
    %v4451 = vpop.f32.mrb[0].mxu0
    %v4452 = vadd.f32 %v4409, %v4451
    %v4453 = vpop.f32.mrb[0].mxu0
    %v4454 = vadd.f32 %v4411, %v4453
    %4455 = vdwg.mxu0
    %v4456 = vld [vmem:[#allocation13] sm:$0x3f]
    %v4458 = vlaneseq
    %v4459 = vshrl.u32 %v4458, 7
    %v4460 = vsub.s32 0, %v4459
    %v4461 = vrot.slane %v4456, %v4460
    %v4462 = vlaneseq
    %v4463 = vshrl.u32 %v4462, 7
    %v4464 = vsub.s32 1, %v4463
    %v4465 = vrot.slane %v4456, %v4464
    %v4466 = vlaneseq
    %v4467 = vshrl.u32 %v4466, 7
    %v4468 = vsub.s32 2, %v4467
    %v4469 = vrot.slane %v4456, %v4468
    %v4470 = vlaneseq
    %v4471 = vshrl.u32 %v4470, 7
    %v4472 = vsub.s32 3, %v4471
    %v4473 = vrot.slane %v4456, %v4472
    %v4474 = vlaneseq
    %v4475 = vshrl.u32 %v4474, 7
    %v4476 = vsub.s32 4, %v4475
    %v4477 = vrot.slane %v4456, %v4476
    %v4478 = vlaneseq
    %v4479 = vshrl.u32 %v4478, 7
    %v4480 = vsub.s32 5, %v4479
    %v4481 = vrot.slane %v4456, %v4480
    %v4488 = vadd.f32 %v4190, %v4461
    %v4489 = vadd.f32 %v4192, %v4465
    %v4490 = vadd.f32 %v4319, %v4469
    %v4491 = vadd.f32 %v4321, %v4473
    %v4492 = vadd.f32 %v4448, %v4477
    %v4493 = vadd.f32 %v4450, %v4481
    %v4494 = vadd.f32 %v4194, %v4461
    %v4495 = vadd.f32 %v4196, %v4465
    %v4496 = vadd.f32 %v4323, %v4469
    %v4497 = vadd.f32 %v4325, %v4473
    %v4498 = vadd.f32 %v4452, %v4477
    %v4499 = vadd.f32 %v4454, %v4481
    %v4500 = vmax.f32 %v4488, 0.0
    %v4501 = vmax.f32 %v4489, 0.0
    %v4502 = vmax.f32 %v4490, 0.0
    %v4503 = vmax.f32 %v4491, 0.0
    %v4504 = vmax.f32 %v4492, 0.0
    %v4505 = vmax.f32 %v4493, 0.0
    %v4506 = vmax.f32 %v4494, 0.0
    %v4507 = vmax.f32 %v4495, 0.0
    %v4508 = vmax.f32 %v4496, 0.0
    %v4509 = vmax.f32 %v4497, 0.0
    %v4510 = vmax.f32 %v4498, 0.0
    %v4511 = vmax.f32 %v4499, 0.0
    %v4512 = vpack.c.bf16 %v4506, %v4500
    %v4513 = vpack.c.bf16 %v4507, %v4501
    %v4514 = vpack.c.bf16 %v4508, %v4502
    %v4515 = vpack.c.bf16 %v4509, %v4503
    %v4516 = vpack.c.bf16 %v4510, %v4504
    %v4517 = vpack.c.bf16 %v4511, %v4505
    %v4518 = vld [vmem:[#allocation14] sm:$0xff]
    %v4519 = vld [vmem:[#allocation14 + $0x8] sm:$0xff]
    %v4520 = vld [vmem:[#allocation14 + $0x10] sm:$0xff]
    %v4521 = vld [vmem:[#allocation14 + $0x18] sm:$0xff]
    %v4522 = vld [vmem:[#allocation14 + $0x20] sm:$0xff]
    %v4523 = vld [vmem:[#allocation14 + $0x28] sm:$0xff]
    %v4524 = vld [vmem:[#allocation14 + $0x30] sm:$0xff]
    %v4525 = vld [vmem:[#allocation14 + $0x38] sm:$0xff]
    %v4526 = vld [vmem:[#allocation14 + $0x40] sm:$0xff]
    %v4527 = vld [vmem:[#allocation14 + $0x48] sm:$0xff]
    %v4528 = vld [vmem:[#allocation14 + $0x50] sm:$0xff]
    %v4529 = vld [vmem:[#allocation14 + $0x58] sm:$0xff]
    %v4530 = vld [vmem:[#allocation14 + $0x60] sm:$0xff]
    %v4531 = vld [vmem:[#allocation14 + $0x68] sm:$0xff]
    %v4532 = vld [vmem:[#allocation14 + $0x70] sm:$0xff]
    %v4533 = vld [vmem:[#allocation14 + $0x78] sm:$0xff]
    %v4534 = vld [vmem:[#allocation14 + $0x80] sm:$0xff]
    %v4535 = vld [vmem:[#allocation14 + $0x88] sm:$0xff]
    %v4536 = vld [vmem:[#allocation14 + $0x90] sm:$0xff]
    %v4537 = vld [vmem:[#allocation14 + $0x98] sm:$0xff]
    %v4538 = vld [vmem:[#allocation14 + $0xa0] sm:$0xff]
    %v4539 = vld [vmem:[#allocation14 + $0xa8] sm:$0xff]
    %v4540 = vld [vmem:[#allocation14 + $0xb0] sm:$0xff]
    %v4541 = vld [vmem:[#allocation14 + $0xb8] sm:$0xff]
    %v4542 = vld [vmem:[#allocation14 + $0xc0] sm:$0xff]
    %v4543 = vld [vmem:[#allocation14 + $0xc8] sm:$0xff]
    %v4544 = vld [vmem:[#allocation14 + $0xd0] sm:$0xff]
    %v4545 = vld [vmem:[#allocation14 + $0xd8] sm:$0xff]
    %v4546 = vld [vmem:[#allocation14 + $0xe0] sm:$0xff]
    %v4547 = vld [vmem:[#allocation14 + $0xe8] sm:$0xff]
    %v4548 = vld [vmem:[#allocation14 + $0xf0] sm:$0xff]
    %v4549 = vld [vmem:[#allocation14 + $0xf8] sm:$0xff]
    %v4550 = vld [vmem:[#allocation14 + $0x100] sm:$0xff]
    %v4551 = vld [vmem:[#allocation14 + $0x108] sm:$0xff]
    %v4552 = vld [vmem:[#allocation14 + $0x110] sm:$0xff]
    %v4553 = vld [vmem:[#allocation14 + $0x118] sm:$0xff]
    %v4554 = vld [vmem:[#allocation14 + $0x120] sm:$0xff]
    %v4555 = vld [vmem:[#allocation14 + $0x128] sm:$0xff]
    %v4556 = vld [vmem:[#allocation14 + $0x130] sm:$0xff]
    %v4557 = vld [vmem:[#allocation14 + $0x138] sm:$0xff]
    %v4558 = vld [vmem:[#allocation14 + $0x140] sm:$0xff]
    %v4559 = vld [vmem:[#allocation14 + $0x148] sm:$0xff]
    %v4560 = vld [vmem:[#allocation14 + $0x150] sm:$0xff]
    %v4561 = vld [vmem:[#allocation14 + $0x158] sm:$0xff]
    %v4562 = vld [vmem:[#allocation14 + $0x160] sm:$0xff]
    %v4563 = vld [vmem:[#allocation14 + $0x168] sm:$0xff]
    %v4564 = vld [vmem:[#allocation14 + $0x170] sm:$0xff]
    %v4565 = vld [vmem:[#allocation14 + $0x178] sm:$0xff]
    %v4566 = vld [vmem:[#allocation14 + $0x180] sm:$0xff]
    %v4567 = vld [vmem:[#allocation14 + $0x188] sm:$0xff]
    %v4568 = vld [vmem:[#allocation14 + $0x190] sm:$0xff]
    %v4569 = vld [vmem:[#allocation14 + $0x198] sm:$0xff]
    %v4570 = vld [vmem:[#allocation14 + $0x1a0] sm:$0xff]
    %v4571 = vld [vmem:[#allocation14 + $0x1a8] sm:$0xff]
    %v4572 = vld [vmem:[#allocation14 + $0x1b0] sm:$0xff]
    %v4573 = vld [vmem:[#allocation14 + $0x1b8] sm:$0xff]
    %v4574 = vld [vmem:[#allocation14 + $0x1c0] sm:$0xff]
    %v4575 = vld [vmem:[#allocation14 + $0x1c8] sm:$0xff]
    %v4576 = vld [vmem:[#allocation14 + $0x1d0] sm:$0xff]
    %v4577 = vld [vmem:[#allocation14 + $0x1d8] sm:$0xff]
    %v4578 = vld [vmem:[#allocation14 + $0x1e0] sm:$0xff]
    %v4579 = vld [vmem:[#allocation14 + $0x1e8] sm:$0xff]
    %v4580 = vld [vmem:[#allocation14 + $0x1f0] sm:$0xff]
    %v4581 = vld [vmem:[#allocation14 + $0x1f8] sm:$0xff]
    %v4582 = vld [vmem:[#allocation14 + $0x200] sm:$0xff]
    %v4583 = vld [vmem:[#allocation14 + $0x208] sm:$0xff]
    %v4584 = vld [vmem:[#allocation14 + $0x210] sm:$0xff]
    %v4585 = vld [vmem:[#allocation14 + $0x218] sm:$0xff]
    %v4586 = vld [vmem:[#allocation14 + $0x220] sm:$0xff]
    %v4587 = vld [vmem:[#allocation14 + $0x228] sm:$0xff]
    %v4588 = vld [vmem:[#allocation14 + $0x230] sm:$0xff]
    %v4589 = vld [vmem:[#allocation14 + $0x238] sm:$0xff]
    %v4590 = vld [vmem:[#allocation14 + $0x240] sm:$0xff]
    %v4591 = vld [vmem:[#allocation14 + $0x248] sm:$0xff]
    %v4592 = vld [vmem:[#allocation14 + $0x250] sm:$0xff]
    %v4593 = vld [vmem:[#allocation14 + $0x258] sm:$0xff]
    %v4594 = vld [vmem:[#allocation14 + $0x260] sm:$0xff]
    %v4595 = vld [vmem:[#allocation14 + $0x268] sm:$0xff]
    %v4596 = vld [vmem:[#allocation14 + $0x270] sm:$0xff]
    %v4597 = vld [vmem:[#allocation14 + $0x278] sm:$0xff]
    %v4598 = vld [vmem:[#allocation14 + $0x280] sm:$0xff]
    %v4599 = vld [vmem:[#allocation14 + $0x288] sm:$0xff]
    %v4600 = vld [vmem:[#allocation14 + $0x290] sm:$0xff]
    %v4601 = vld [vmem:[#allocation14 + $0x298] sm:$0xff]
    %v4602 = vld [vmem:[#allocation14 + $0x2a0] sm:$0xff]
    %v4603 = vld [vmem:[#allocation14 + $0x2a8] sm:$0xff]
    %v4604 = vld [vmem:[#allocation14 + $0x2b0] sm:$0xff]
    %v4605 = vld [vmem:[#allocation14 + $0x2b8] sm:$0xff]
    %v4606 = vld [vmem:[#allocation14 + $0x2c0] sm:$0xff]
    %v4607 = vld [vmem:[#allocation14 + $0x2c8] sm:$0xff]
    %v4608 = vld [vmem:[#allocation14 + $0x2d0] sm:$0xff]
    %v4609 = vld [vmem:[#allocation14 + $0x2d8] sm:$0xff]
    %v4610 = vld [vmem:[#allocation14 + $0x2e0] sm:$0xff]
    %v4611 = vld [vmem:[#allocation14 + $0x2e8] sm:$0xff]
    %v4612 = vld [vmem:[#allocation14 + $0x2f0] sm:$0xff]
    %v4613 = vld [vmem:[#allocation14 + $0x2f8] sm:$0xff]
    %v4614 = vld [vmem:[#allocation14 + $0x300] sm:$0xff]
    %v4615 = vld [vmem:[#allocation14 + $0x308] sm:$0xff]
    %v4616 = vld [vmem:[#allocation14 + $0x310] sm:$0xff]
    %v4617 = vld [vmem:[#allocation14 + $0x318] sm:$0xff]
    %v4618 = vld [vmem:[#allocation14 + $0x320] sm:$0xff]
    %v4619 = vld [vmem:[#allocation14 + $0x328] sm:$0xff]
    %v4620 = vld [vmem:[#allocation14 + $0x330] sm:$0xff]
    %v4621 = vld [vmem:[#allocation14 + $0x338] sm:$0xff]
    %v4622 = vld [vmem:[#allocation14 + $0x340] sm:$0xff]
    %v4623 = vld [vmem:[#allocation14 + $0x348] sm:$0xff]
    %v4624 = vld [vmem:[#allocation14 + $0x350] sm:$0xff]
    %v4625 = vld [vmem:[#allocation14 + $0x358] sm:$0xff]
    %v4626 = vld [vmem:[#allocation14 + $0x360] sm:$0xff]
    %v4627 = vld [vmem:[#allocation14 + $0x368] sm:$0xff]
    %v4628 = vld [vmem:[#allocation14 + $0x370] sm:$0xff]
    %v4629 = vld [vmem:[#allocation14 + $0x378] sm:$0xff]
    %v4630 = vld [vmem:[#allocation14 + $0x380] sm:$0xff]
    %v4631 = vld [vmem:[#allocation14 + $0x388] sm:$0xff]
    %v4632 = vld [vmem:[#allocation14 + $0x390] sm:$0xff]
    %v4633 = vld [vmem:[#allocation14 + $0x398] sm:$0xff]
    %v4634 = vld [vmem:[#allocation14 + $0x3a0] sm:$0xff]
    %v4635 = vld [vmem:[#allocation14 + $0x3a8] sm:$0xff]
    %v4636 = vld [vmem:[#allocation14 + $0x3b0] sm:$0xff]
    %v4637 = vld [vmem:[#allocation14 + $0x3b8] sm:$0xff]
    %v4638 = vld [vmem:[#allocation14 + $0x3c0] sm:$0xff]
    %v4639 = vld [vmem:[#allocation14 + $0x3c8] sm:$0xff]
    %v4640 = vld [vmem:[#allocation14 + $0x3d0] sm:$0xff]
    %v4641 = vld [vmem:[#allocation14 + $0x3d8] sm:$0xff]
    %v4642 = vld [vmem:[#allocation14 + $0x3e0] sm:$0xff]
    %v4643 = vld [vmem:[#allocation14 + $0x3e8] sm:$0xff]
    %v4644 = vld [vmem:[#allocation14 + $0x3f0] sm:$0xff]
    %v4645 = vld [vmem:[#allocation14 + $0x3f8] sm:$0xff]
    %v4646 = vld [vmem:[#allocation14 + $0x400] sm:$0xff]
    %v4647 = vld [vmem:[#allocation14 + $0x408] sm:$0xff]
    %v4648 = vld [vmem:[#allocation14 + $0x410] sm:$0xff]
    %v4649 = vld [vmem:[#allocation14 + $0x418] sm:$0xff]
    %v4650 = vld [vmem:[#allocation14 + $0x420] sm:$0xff]
    %v4651 = vld [vmem:[#allocation14 + $0x428] sm:$0xff]
    %v4652 = vld [vmem:[#allocation14 + $0x430] sm:$0xff]
    %v4653 = vld [vmem:[#allocation14 + $0x438] sm:$0xff]
    %v4654 = vld [vmem:[#allocation14 + $0x440] sm:$0xff]
    %v4655 = vld [vmem:[#allocation14 + $0x448] sm:$0xff]
    %v4656 = vld [vmem:[#allocation14 + $0x450] sm:$0xff]
    %v4657 = vld [vmem:[#allocation14 + $0x458] sm:$0xff]
    %v4658 = vld [vmem:[#allocation14 + $0x460] sm:$0xff]
    %v4659 = vld [vmem:[#allocation14 + $0x468] sm:$0xff]
    %v4660 = vld [vmem:[#allocation14 + $0x470] sm:$0xff]
    %v4661 = vld [vmem:[#allocation14 + $0x478] sm:$0xff]
    %v4662 = vld [vmem:[#allocation14 + $0x480] sm:$0xff]
    %v4663 = vld [vmem:[#allocation14 + $0x488] sm:$0xff]
    %v4664 = vld [vmem:[#allocation14 + $0x490] sm:$0xff]
    %v4665 = vld [vmem:[#allocation14 + $0x498] sm:$0xff]
    %v4666 = vld [vmem:[#allocation14 + $0x4a0] sm:$0xff]
    %v4667 = vld [vmem:[#allocation14 + $0x4a8] sm:$0xff]
    %v4668 = vld [vmem:[#allocation14 + $0x4b0] sm:$0xff]
    %v4669 = vld [vmem:[#allocation14 + $0x4b8] sm:$0xff]
    %v4670 = vld [vmem:[#allocation14 + $0x4c0] sm:$0xff]
    %v4671 = vld [vmem:[#allocation14 + $0x4c8] sm:$0xff]
    %v4672 = vld [vmem:[#allocation14 + $0x4d0] sm:$0xff]
    %v4673 = vld [vmem:[#allocation14 + $0x4d8] sm:$0xff]
    %v4674 = vld [vmem:[#allocation14 + $0x4e0] sm:$0xff]
    %v4675 = vld [vmem:[#allocation14 + $0x4e8] sm:$0xff]
    %v4676 = vld [vmem:[#allocation14 + $0x4f0] sm:$0xff]
    %v4677 = vld [vmem:[#allocation14 + $0x4f8] sm:$0xff]
    %v4678 = vld [vmem:[#allocation14 + $0x500] sm:$0xff]
    %v4679 = vld [vmem:[#allocation14 + $0x508] sm:$0xff]
    %v4680 = vld [vmem:[#allocation14 + $0x510] sm:$0xff]
    %v4681 = vld [vmem:[#allocation14 + $0x518] sm:$0xff]
    %v4682 = vld [vmem:[#allocation14 + $0x520] sm:$0xff]
    %v4683 = vld [vmem:[#allocation14 + $0x528] sm:$0xff]
    %v4684 = vld [vmem:[#allocation14 + $0x530] sm:$0xff]
    %v4685 = vld [vmem:[#allocation14 + $0x538] sm:$0xff]
    %v4686 = vld [vmem:[#allocation14 + $0x540] sm:$0xff]
    %v4687 = vld [vmem:[#allocation14 + $0x548] sm:$0xff]
    %v4688 = vld [vmem:[#allocation14 + $0x550] sm:$0xff]
    %v4689 = vld [vmem:[#allocation14 + $0x558] sm:$0xff]
    %v4690 = vld [vmem:[#allocation14 + $0x560] sm:$0xff]
    %v4691 = vld [vmem:[#allocation14 + $0x568] sm:$0xff]
    %v4692 = vld [vmem:[#allocation14 + $0x570] sm:$0xff]
    %v4693 = vld [vmem:[#allocation14 + $0x578] sm:$0xff]
    %v4694 = vld [vmem:[#allocation14 + $0x580] sm:$0xff]
    %v4695 = vld [vmem:[#allocation14 + $0x588] sm:$0xff]
    %v4696 = vld [vmem:[#allocation14 + $0x590] sm:$0xff]
    %v4697 = vld [vmem:[#allocation14 + $0x598] sm:$0xff]
    %v4698 = vld [vmem:[#allocation14 + $0x5a0] sm:$0xff]
    %v4699 = vld [vmem:[#allocation14 + $0x5a8] sm:$0xff]
    %v4700 = vld [vmem:[#allocation14 + $0x5b0] sm:$0xff]
    %v4701 = vld [vmem:[#allocation14 + $0x5b8] sm:$0xff]
    %v4702 = vld [vmem:[#allocation14 + $0x5c0] sm:$0xff]
    %v4703 = vld [vmem:[#allocation14 + $0x5c8] sm:$0xff]
    %v4704 = vld [vmem:[#allocation14 + $0x5d0] sm:$0xff]
    %v4705 = vld [vmem:[#allocation14 + $0x5d8] sm:$0xff]
    %v4706 = vld [vmem:[#allocation14 + $0x5e0] sm:$0xff]
    %v4707 = vld [vmem:[#allocation14 + $0x5e8] sm:$0xff]
    %v4708 = vld [vmem:[#allocation14 + $0x5f0] sm:$0xff]
    %v4709 = vld [vmem:[#allocation14 + $0x5f8] sm:$0xff]
    %v4710 = vld [vmem:[#allocation14 + $0x600] sm:$0xff]
    %v4711 = vld [vmem:[#allocation14 + $0x608] sm:$0xff]
    %v4712 = vld [vmem:[#allocation14 + $0x610] sm:$0xff]
    %v4713 = vld [vmem:[#allocation14 + $0x618] sm:$0xff]
    %v4714 = vld [vmem:[#allocation14 + $0x620] sm:$0xff]
    %v4715 = vld [vmem:[#allocation14 + $0x628] sm:$0xff]
    %v4716 = vld [vmem:[#allocation14 + $0x630] sm:$0xff]
    %v4717 = vld [vmem:[#allocation14 + $0x638] sm:$0xff]
    %v4718 = vld [vmem:[#allocation14 + $0x640] sm:$0xff]
    %v4719 = vld [vmem:[#allocation14 + $0x648] sm:$0xff]
    %v4720 = vld [vmem:[#allocation14 + $0x650] sm:$0xff]
    %v4721 = vld [vmem:[#allocation14 + $0x658] sm:$0xff]
    %v4722 = vld [vmem:[#allocation14 + $0x660] sm:$0xff]
    %v4723 = vld [vmem:[#allocation14 + $0x668] sm:$0xff]
    %v4724 = vld [vmem:[#allocation14 + $0x670] sm:$0xff]
    %v4725 = vld [vmem:[#allocation14 + $0x678] sm:$0xff]
    %v4726 = vld [vmem:[#allocation14 + $0x680] sm:$0xff]
    %v4727 = vld [vmem:[#allocation14 + $0x688] sm:$0xff]
    %v4728 = vld [vmem:[#allocation14 + $0x690] sm:$0xff]
    %v4729 = vld [vmem:[#allocation14 + $0x698] sm:$0xff]
    %v4730 = vld [vmem:[#allocation14 + $0x6a0] sm:$0xff]
    %v4731 = vld [vmem:[#allocation14 + $0x6a8] sm:$0xff]
    %v4732 = vld [vmem:[#allocation14 + $0x6b0] sm:$0xff]
    %v4733 = vld [vmem:[#allocation14 + $0x6b8] sm:$0xff]
    %v4734 = vld [vmem:[#allocation14 + $0x6c0] sm:$0xff]
    %v4735 = vld [vmem:[#allocation14 + $0x6c8] sm:$0xff]
    %v4736 = vld [vmem:[#allocation14 + $0x6d0] sm:$0xff]
    %v4737 = vld [vmem:[#allocation14 + $0x6d8] sm:$0xff]
    %v4738 = vld [vmem:[#allocation14 + $0x6e0] sm:$0xff]
    %v4739 = vld [vmem:[#allocation14 + $0x6e8] sm:$0xff]
    %v4740 = vld [vmem:[#allocation14 + $0x6f0] sm:$0xff]
    %v4741 = vld [vmem:[#allocation14 + $0x6f8] sm:$0xff]
    %v4742 = vld [vmem:[#allocation14 + $0x700] sm:$0xff]
    %v4743 = vld [vmem:[#allocation14 + $0x708] sm:$0xff]
    %v4744 = vld [vmem:[#allocation14 + $0x710] sm:$0xff]
    %v4745 = vld [vmem:[#allocation14 + $0x718] sm:$0xff]
    %v4746 = vld [vmem:[#allocation14 + $0x720] sm:$0xff]
    %v4747 = vld [vmem:[#allocation14 + $0x728] sm:$0xff]
    %v4748 = vld [vmem:[#allocation14 + $0x730] sm:$0xff]
    %v4749 = vld [vmem:[#allocation14 + $0x738] sm:$0xff]
    %v4750 = vld [vmem:[#allocation14 + $0x740] sm:$0xff]
    %v4751 = vld [vmem:[#allocation14 + $0x748] sm:$0xff]
    %v4752 = vld [vmem:[#allocation14 + $0x750] sm:$0xff]
    %v4753 = vld [vmem:[#allocation14 + $0x758] sm:$0xff]
    %v4754 = vld [vmem:[#allocation14 + $0x760] sm:$0xff]
    %v4755 = vld [vmem:[#allocation14 + $0x768] sm:$0xff]
    %v4756 = vld [vmem:[#allocation14 + $0x770] sm:$0xff]
    %v4757 = vld [vmem:[#allocation14 + $0x778] sm:$0xff]
    %v4758 = vld [vmem:[#allocation14 + $0x780] sm:$0xff]
    %v4759 = vld [vmem:[#allocation14 + $0x788] sm:$0xff]
    %v4760 = vld [vmem:[#allocation14 + $0x790] sm:$0xff]
    %v4761 = vld [vmem:[#allocation14 + $0x798] sm:$0xff]
    %v4762 = vld [vmem:[#allocation14 + $0x7a0] sm:$0xff]
    %v4763 = vld [vmem:[#allocation14 + $0x7a8] sm:$0xff]
    %v4764 = vld [vmem:[#allocation14 + $0x7b0] sm:$0xff]
    %v4765 = vld [vmem:[#allocation14 + $0x7b8] sm:$0xff]
    %v4766 = vld [vmem:[#allocation14 + $0x7c0] sm:$0xff]
    %v4767 = vld [vmem:[#allocation14 + $0x7c8] sm:$0xff]
    %v4768 = vld [vmem:[#allocation14 + $0x7d0] sm:$0xff]
    %v4769 = vld [vmem:[#allocation14 + $0x7d8] sm:$0xff]
    %v4770 = vld [vmem:[#allocation14 + $0x7e0] sm:$0xff]
    %v4771 = vld [vmem:[#allocation14 + $0x7e8] sm:$0xff]
    %v4772 = vld [vmem:[#allocation14 + $0x7f0] sm:$0xff]
    %v4773 = vld [vmem:[#allocation14 + $0x7f8] sm:$0xff]
    %v4774 = vld [vmem:[#allocation14 + $0x800] sm:$0xff]
    %v4775 = vld [vmem:[#allocation14 + $0x808] sm:$0xff]
    %v4776 = vld [vmem:[#allocation14 + $0x810] sm:$0xff]
    %v4777 = vld [vmem:[#allocation14 + $0x818] sm:$0xff]
    %v4778 = vld [vmem:[#allocation14 + $0x820] sm:$0xff]
    %v4779 = vld [vmem:[#allocation14 + $0x828] sm:$0xff]
    %v4780 = vld [vmem:[#allocation14 + $0x830] sm:$0xff]
    %v4781 = vld [vmem:[#allocation14 + $0x838] sm:$0xff]
    %v4782 = vld [vmem:[#allocation14 + $0x840] sm:$0xff]
    %v4783 = vld [vmem:[#allocation14 + $0x848] sm:$0xff]
    %v4784 = vld [vmem:[#allocation14 + $0x850] sm:$0xff]
    %v4785 = vld [vmem:[#allocation14 + $0x858] sm:$0xff]
    %v4786 = vld [vmem:[#allocation14 + $0x860] sm:$0xff]
    %v4787 = vld [vmem:[#allocation14 + $0x868] sm:$0xff]
    %v4788 = vld [vmem:[#allocation14 + $0x870] sm:$0xff]
    %v4789 = vld [vmem:[#allocation14 + $0x878] sm:$0xff]
    %v4790 = vld [vmem:[#allocation14 + $0x880] sm:$0xff]
    %v4791 = vld [vmem:[#allocation14 + $0x888] sm:$0xff]
    %v4792 = vld [vmem:[#allocation14 + $0x890] sm:$0xff]
    %v4793 = vld [vmem:[#allocation14 + $0x898] sm:$0xff]
    %v4794 = vld [vmem:[#allocation14 + $0x8a0] sm:$0xff]
    %v4795 = vld [vmem:[#allocation14 + $0x8a8] sm:$0xff]
    %v4796 = vld [vmem:[#allocation14 + $0x8b0] sm:$0xff]
    %v4797 = vld [vmem:[#allocation14 + $0x8b8] sm:$0xff]
    %v4798 = vld [vmem:[#allocation14 + $0x8c0] sm:$0xff]
    %v4799 = vld [vmem:[#allocation14 + $0x8c8] sm:$0xff]
    %v4800 = vld [vmem:[#allocation14 + $0x8d0] sm:$0xff]
    %v4801 = vld [vmem:[#allocation14 + $0x8d8] sm:$0xff]
    %v4802 = vld [vmem:[#allocation14 + $0x8e0] sm:$0xff]
    %v4803 = vld [vmem:[#allocation14 + $0x8e8] sm:$0xff]
    %v4804 = vld [vmem:[#allocation14 + $0x8f0] sm:$0xff]
    %v4805 = vld [vmem:[#allocation14 + $0x8f8] sm:$0xff]
    %v4806 = vld [vmem:[#allocation16] sm:$0x3f]
    %v4808 = vlaneseq
    %v4809 = vshrl.u32 %v4808, 7
    %v4810 = vsub.s32 0, %v4809
    %v4811 = vrot.slane %v4806, %v4810
    %v4812 = vlaneseq
    %v4813 = vshrl.u32 %v4812, 7
    %v4814 = vsub.s32 1, %v4813
    %v4815 = vrot.slane %v4806, %v4814
    %v4816 = vlaneseq
    %v4817 = vshrl.u32 %v4816, 7
    %v4818 = vsub.s32 2, %v4817
    %v4819 = vrot.slane %v4806, %v4818
    %v4820 = vlaneseq
    %v4821 = vshrl.u32 %v4820, 7
    %v4822 = vsub.s32 3, %v4821
    %v4823 = vrot.slane %v4806, %v4822
    %v4824 = vlaneseq
    %v4825 = vshrl.u32 %v4824, 7
    %v4826 = vsub.s32 4, %v4825
    %v4827 = vrot.slane %v4806, %v4826
    %v4828 = vlaneseq
    %v4829 = vshrl.u32 %v4828, 7
    %v4830 = vsub.s32 5, %v4829
    %v4831 = vrot.slane %v4806, %v4830
    %v5126 = vunpack.c.l.b16 %v4518
    %v5127 = vunpack.c.h.b16 %v4518
    %v5128 = vunpack.c.l.b16 %v4519
    %v5129 = vunpack.c.h.b16 %v4519
    %v5130 = vunpack.c.l.b16 %v4520
    %v5131 = vunpack.c.h.b16 %v4520
    %v5132 = vunpack.c.l.b16 %v4521
    %v5133 = vunpack.c.h.b16 %v4521
    %v5134 = vunpack.c.l.b16 %v4522
    %v5135 = vunpack.c.h.b16 %v4522
    %v5136 = vunpack.c.l.b16 %v4523
    %v5137 = vunpack.c.h.b16 %v4523
    %v5138 = vunpack.c.l.b16 %v4524
    %v5139 = vunpack.c.h.b16 %v4524
    %v5140 = vunpack.c.l.b16 %v4525
    %v5141 = vunpack.c.h.b16 %v4525
    %v5142 = vunpack.c.l.b16 %v4526
    %v5143 = vunpack.c.h.b16 %v4526
    %v5144 = vunpack.c.l.b16 %v4527
    %v5145 = vunpack.c.h.b16 %v4527
    %v5146 = vunpack.c.l.b16 %v4528
    %v5147 = vunpack.c.h.b16 %v4528
    %v5148 = vunpack.c.l.b16 %v4529
    %v5149 = vunpack.c.h.b16 %v4529
    %v5150 = vunpack.c.l.b16 %v4530
    %v5151 = vunpack.c.h.b16 %v4530
    %v5152 = vunpack.c.l.b16 %v4531
    %v5153 = vunpack.c.h.b16 %v4531
    %v5154 = vunpack.c.l.b16 %v4532
    %v5155 = vunpack.c.h.b16 %v4532
    %v5156 = vunpack.c.l.b16 %v4533
    %v5157 = vunpack.c.h.b16 %v4533
    %v5158 = vunpack.c.l.b16 %v4534
    %v5159 = vunpack.c.h.b16 %v4534
    %v5160 = vunpack.c.l.b16 %v4535
    %v5161 = vunpack.c.h.b16 %v4535
    %v5162 = vunpack.c.l.b16 %v4536
    %v5163 = vunpack.c.h.b16 %v4536
    %v5164 = vunpack.c.l.b16 %v4537
    %v5165 = vunpack.c.h.b16 %v4537
    %v5166 = vunpack.c.l.b16 %v4538
    %v5167 = vunpack.c.h.b16 %v4538
    %v5168 = vunpack.c.l.b16 %v4539
    %v5169 = vunpack.c.h.b16 %v4539
    %v5170 = vunpack.c.l.b16 %v4540
    %v5171 = vunpack.c.h.b16 %v4540
    %v5172 = vunpack.c.l.b16 %v4541
    %v5173 = vunpack.c.h.b16 %v4541
    %v5174 = vunpack.c.l.b16 %v4542
    %v5175 = vunpack.c.h.b16 %v4542
    %v5176 = vunpack.c.l.b16 %v4543
    %v5177 = vunpack.c.h.b16 %v4543
    %v5178 = vunpack.c.l.b16 %v4544
    %v5179 = vunpack.c.h.b16 %v4544
    %v5180 = vunpack.c.l.b16 %v4545
    %v5181 = vunpack.c.h.b16 %v4545
    %v5182 = vunpack.c.l.b16 %v4546
    %v5183 = vunpack.c.h.b16 %v4546
    %v5184 = vunpack.c.l.b16 %v4547
    %v5185 = vunpack.c.h.b16 %v4547
    %v5186 = vunpack.c.l.b16 %v4548
    %v5187 = vunpack.c.h.b16 %v4548
    %v5188 = vunpack.c.l.b16 %v4549
    %v5189 = vunpack.c.h.b16 %v4549
    %v5190 = vunpack.c.l.b16 %v4550
    %v5191 = vunpack.c.h.b16 %v4550
    %v5192 = vunpack.c.l.b16 %v4551
    %v5193 = vunpack.c.h.b16 %v4551
    %v5194 = vunpack.c.l.b16 %v4552
    %v5195 = vunpack.c.h.b16 %v4552
    %v5196 = vunpack.c.l.b16 %v4553
    %v5197 = vunpack.c.h.b16 %v4553
    %v5198 = vunpack.c.l.b16 %v4554
    %v5199 = vunpack.c.h.b16 %v4554
    %v5200 = vunpack.c.l.b16 %v4555
    %v5201 = vunpack.c.h.b16 %v4555
    %v5202 = vunpack.c.l.b16 %v4556
    %v5203 = vunpack.c.h.b16 %v4556
    %v5204 = vunpack.c.l.b16 %v4557
    %v5205 = vunpack.c.h.b16 %v4557
    %v5206 = vunpack.c.l.b16 %v4558
    %v5207 = vunpack.c.h.b16 %v4558
    %v5208 = vunpack.c.l.b16 %v4559
    %v5209 = vunpack.c.h.b16 %v4559
    %v5210 = vunpack.c.l.b16 %v4560
    %v5211 = vunpack.c.h.b16 %v4560
    %v5212 = vunpack.c.l.b16 %v4561
    %v5213 = vunpack.c.h.b16 %v4561
    %v5214 = vunpack.c.l.b16 %v4562
    %v5215 = vunpack.c.h.b16 %v4562
    %v5216 = vunpack.c.l.b16 %v4563
    %v5217 = vunpack.c.h.b16 %v4563
    %v5218 = vunpack.c.l.b16 %v4564
    %v5219 = vunpack.c.h.b16 %v4564
    %v5220 = vunpack.c.l.b16 %v4565
    %v5221 = vunpack.c.h.b16 %v4565
    %v5222 = vunpack.c.l.b16 %v4566
    %v5223 = vunpack.c.h.b16 %v4566
    %v5224 = vunpack.c.l.b16 %v4567
    %v5225 = vunpack.c.h.b16 %v4567
    %v5226 = vunpack.c.l.b16 %v4568
    %v5227 = vunpack.c.h.b16 %v4568
    %v5228 = vunpack.c.l.b16 %v4569
    %v5229 = vunpack.c.h.b16 %v4569
    %v5230 = vunpack.c.l.b16 %v4570
    %v5231 = vunpack.c.h.b16 %v4570
    %v5232 = vunpack.c.l.b16 %v4571
    %v5233 = vunpack.c.h.b16 %v4571
    %v5234 = vunpack.c.l.b16 %v4572
    %v5235 = vunpack.c.h.b16 %v4572
    %v5236 = vunpack.c.l.b16 %v4573
    %v5237 = vunpack.c.h.b16 %v4573
    %v5238 = vunpack.c.l.b16 %v4574
    %v5239 = vunpack.c.h.b16 %v4574
    %v5240 = vunpack.c.l.b16 %v4575
    %v5241 = vunpack.c.h.b16 %v4575
    %v5242 = vunpack.c.l.b16 %v4576
    %v5243 = vunpack.c.h.b16 %v4576
    %v5244 = vunpack.c.l.b16 %v4577
    %v5245 = vunpack.c.h.b16 %v4577
    %v5246 = vunpack.c.l.b16 %v4578
    %v5247 = vunpack.c.h.b16 %v4578
    %v5248 = vunpack.c.l.b16 %v4579
    %v5249 = vunpack.c.h.b16 %v4579
    %v5250 = vunpack.c.l.b16 %v4580
    %v5251 = vunpack.c.h.b16 %v4580
    %v5252 = vunpack.c.l.b16 %v4581
    %v5253 = vunpack.c.h.b16 %v4581
    %v5254 = vunpack.c.l.b16 %v4582
    %v5255 = vunpack.c.h.b16 %v4582
    %v5256 = vunpack.c.l.b16 %v4583
    %v5257 = vunpack.c.h.b16 %v4583
    %v5258 = vunpack.c.l.b16 %v4584
    %v5259 = vunpack.c.h.b16 %v4584
    %v5260 = vunpack.c.l.b16 %v4585
    %v5261 = vunpack.c.h.b16 %v4585
    %v5262 = vunpack.c.l.b16 %v4586
    %v5263 = vunpack.c.h.b16 %v4586
    %v5264 = vunpack.c.l.b16 %v4587
    %v5265 = vunpack.c.h.b16 %v4587
    %v5266 = vunpack.c.l.b16 %v4588
    %v5267 = vunpack.c.h.b16 %v4588
    %v5268 = vunpack.c.l.b16 %v4589
    %v5269 = vunpack.c.h.b16 %v4589
    %v5270 = vunpack.c.l.b16 %v4590
    %v5271 = vunpack.c.h.b16 %v4590
    %v5272 = vunpack.c.l.b16 %v4591
    %v5273 = vunpack.c.h.b16 %v4591
    %v5274 = vunpack.c.l.b16 %v4592
    %v5275 = vunpack.c.h.b16 %v4592
    %v5276 = vunpack.c.l.b16 %v4593
    %v5277 = vunpack.c.h.b16 %v4593
    %v5278 = vunpack.c.l.b16 %v4594
    %v5279 = vunpack.c.h.b16 %v4594
    %v5280 = vunpack.c.l.b16 %v4595
    %v5281 = vunpack.c.h.b16 %v4595
    %v5282 = vunpack.c.l.b16 %v4596
    %v5283 = vunpack.c.h.b16 %v4596
    %v5284 = vunpack.c.l.b16 %v4597
    %v5285 = vunpack.c.h.b16 %v4597
    %v5286 = vunpack.c.l.b16 %v4598
    %v5287 = vunpack.c.h.b16 %v4598
    %v5288 = vunpack.c.l.b16 %v4599
    %v5289 = vunpack.c.h.b16 %v4599
    %v5290 = vunpack.c.l.b16 %v4600
    %v5291 = vunpack.c.h.b16 %v4600
    %v5292 = vunpack.c.l.b16 %v4601
    %v5293 = vunpack.c.h.b16 %v4601
    %v5294 = vunpack.c.l.b16 %v4602
    %v5295 = vunpack.c.h.b16 %v4602
    %v5296 = vunpack.c.l.b16 %v4603
    %v5297 = vunpack.c.h.b16 %v4603
    %v5298 = vunpack.c.l.b16 %v4604
    %v5299 = vunpack.c.h.b16 %v4604
    %v5300 = vunpack.c.l.b16 %v4605
    %v5301 = vunpack.c.h.b16 %v4605
    %v5302 = vunpack.c.l.b16 %v4606
    %v5303 = vunpack.c.h.b16 %v4606
    %v5304 = vunpack.c.l.b16 %v4607
    %v5305 = vunpack.c.h.b16 %v4607
    %v5306 = vunpack.c.l.b16 %v4608
    %v5307 = vunpack.c.h.b16 %v4608
    %v5308 = vunpack.c.l.b16 %v4609
    %v5309 = vunpack.c.h.b16 %v4609
    %v5310 = vunpack.c.l.b16 %v4610
    %v5311 = vunpack.c.h.b16 %v4610
    %v5312 = vunpack.c.l.b16 %v4611
    %v5313 = vunpack.c.h.b16 %v4611
    %v5314 = vunpack.c.l.b16 %v4612
    %v5315 = vunpack.c.h.b16 %v4612
    %v5316 = vunpack.c.l.b16 %v4613
    %v5317 = vunpack.c.h.b16 %v4613
    %v5318 = vunpack.c.l.b16 %v4614
    %v5319 = vunpack.c.h.b16 %v4614
    %v5320 = vunpack.c.l.b16 %v4615
    %v5321 = vunpack.c.h.b16 %v4615
    %v5322 = vunpack.c.l.b16 %v4616
    %v5323 = vunpack.c.h.b16 %v4616
    %v5324 = vunpack.c.l.b16 %v4617
    %v5325 = vunpack.c.h.b16 %v4617
    %v5326 = vunpack.c.l.b16 %v4618
    %v5327 = vunpack.c.h.b16 %v4618
    %v5328 = vunpack.c.l.b16 %v4619
    %v5329 = vunpack.c.h.b16 %v4619
    %v5330 = vunpack.c.l.b16 %v4620
    %v5331 = vunpack.c.h.b16 %v4620
    %v5332 = vunpack.c.l.b16 %v4621
    %v5333 = vunpack.c.h.b16 %v4621
    %v5334 = vunpack.c.l.b16 %v4622
    %v5335 = vunpack.c.h.b16 %v4622
    %v5336 = vunpack.c.l.b16 %v4623
    %v5337 = vunpack.c.h.b16 %v4623
    %v5338 = vunpack.c.l.b16 %v4624
    %v5339 = vunpack.c.h.b16 %v4624
    %v5340 = vunpack.c.l.b16 %v4625
    %v5341 = vunpack.c.h.b16 %v4625
    %v5342 = vunpack.c.l.b16 %v4626
    %v5343 = vunpack.c.h.b16 %v4626
    %v5344 = vunpack.c.l.b16 %v4627
    %v5345 = vunpack.c.h.b16 %v4627
    %v5346 = vunpack.c.l.b16 %v4628
    %v5347 = vunpack.c.h.b16 %v4628
    %v5348 = vunpack.c.l.b16 %v4629
    %v5349 = vunpack.c.h.b16 %v4629
    %v5350 = vunpack.c.l.b16 %v4630
    %v5351 = vunpack.c.h.b16 %v4630
    %v5352 = vunpack.c.l.b16 %v4631
    %v5353 = vunpack.c.h.b16 %v4631
    %v5354 = vunpack.c.l.b16 %v4632
    %v5355 = vunpack.c.h.b16 %v4632
    %v5356 = vunpack.c.l.b16 %v4633
    %v5357 = vunpack.c.h.b16 %v4633
    %v5358 = vunpack.c.l.b16 %v4634
    %v5359 = vunpack.c.h.b16 %v4634
    %v5360 = vunpack.c.l.b16 %v4635
    %v5361 = vunpack.c.h.b16 %v4635
    %v5362 = vunpack.c.l.b16 %v4636
    %v5363 = vunpack.c.h.b16 %v4636
    %v5364 = vunpack.c.l.b16 %v4637
    %v5365 = vunpack.c.h.b16 %v4637
    %v5366 = vunpack.c.l.b16 %v4638
    %v5367 = vunpack.c.h.b16 %v4638
    %v5368 = vunpack.c.l.b16 %v4639
    %v5369 = vunpack.c.h.b16 %v4639
    %v5370 = vunpack.c.l.b16 %v4640
    %v5371 = vunpack.c.h.b16 %v4640
    %v5372 = vunpack.c.l.b16 %v4641
    %v5373 = vunpack.c.h.b16 %v4641
    %v5374 = vunpack.c.l.b16 %v4642
    %v5375 = vunpack.c.h.b16 %v4642
    %v5376 = vunpack.c.l.b16 %v4643
    %v5377 = vunpack.c.h.b16 %v4643
    %v5378 = vunpack.c.l.b16 %v4644
    %v5379 = vunpack.c.h.b16 %v4644
    %v5380 = vunpack.c.l.b16 %v4645
    %v5381 = vunpack.c.h.b16 %v4645
    %v5382 = vunpack.c.l.b16 %v4646
    %v5383 = vunpack.c.h.b16 %v4646
    %v5384 = vunpack.c.l.b16 %v4647
    %v5385 = vunpack.c.h.b16 %v4647
    %v5386 = vunpack.c.l.b16 %v4648
    %v5387 = vunpack.c.h.b16 %v4648
    %v5388 = vunpack.c.l.b16 %v4649
    %v5389 = vunpack.c.h.b16 %v4649
    %v5390 = vunpack.c.l.b16 %v4650
    %v5391 = vunpack.c.h.b16 %v4650
    %v5392 = vunpack.c.l.b16 %v4651
    %v5393 = vunpack.c.h.b16 %v4651
    %v5394 = vunpack.c.l.b16 %v4652
    %v5395 = vunpack.c.h.b16 %v4652
    %v5396 = vunpack.c.l.b16 %v4653
    %v5397 = vunpack.c.h.b16 %v4653
    %v5398 = vunpack.c.l.b16 %v4654
    %v5399 = vunpack.c.h.b16 %v4654
    %v5400 = vunpack.c.l.b16 %v4655
    %v5401 = vunpack.c.h.b16 %v4655
    %v5402 = vunpack.c.l.b16 %v4656
    %v5403 = vunpack.c.h.b16 %v4656
    %v5404 = vunpack.c.l.b16 %v4657
    %v5405 = vunpack.c.h.b16 %v4657
    %v5406 = vunpack.c.l.b16 %v4658
    %v5407 = vunpack.c.h.b16 %v4658
    %v5408 = vunpack.c.l.b16 %v4659
    %v5409 = vunpack.c.h.b16 %v4659
    %v5410 = vunpack.c.l.b16 %v4660
    %v5411 = vunpack.c.h.b16 %v4660
    %v5412 = vunpack.c.l.b16 %v4661
    %v5413 = vunpack.c.h.b16 %v4661
    %v5414 = vunpack.c.l.b16 %v4662
    %v5415 = vunpack.c.h.b16 %v4662
    %v5416 = vunpack.c.l.b16 %v4663
    %v5417 = vunpack.c.h.b16 %v4663
    %v5418 = vunpack.c.l.b16 %v4664
    %v5419 = vunpack.c.h.b16 %v4664
    %v5420 = vunpack.c.l.b16 %v4665
    %v5421 = vunpack.c.h.b16 %v4665
    %v5422 = vunpack.c.l.b16 %v4666
    %v5423 = vunpack.c.h.b16 %v4666
    %v5424 = vunpack.c.l.b16 %v4667
    %v5425 = vunpack.c.h.b16 %v4667
    %v5426 = vunpack.c.l.b16 %v4668
    %v5427 = vunpack.c.h.b16 %v4668
    %v5428 = vunpack.c.l.b16 %v4669
    %v5429 = vunpack.c.h.b16 %v4669
    %v5430 = vunpack.c.l.b16 %v4670
    %v5431 = vunpack.c.h.b16 %v4670
    %v5432 = vunpack.c.l.b16 %v4671
    %v5433 = vunpack.c.h.b16 %v4671
    %v5434 = vunpack.c.l.b16 %v4672
    %v5435 = vunpack.c.h.b16 %v4672
    %v5436 = vunpack.c.l.b16 %v4673
    %v5437 = vunpack.c.h.b16 %v4673
    %v5438 = vunpack.c.l.b16 %v4674
    %v5439 = vunpack.c.h.b16 %v4674
    %v5440 = vunpack.c.l.b16 %v4675
    %v5441 = vunpack.c.h.b16 %v4675
    %v5442 = vunpack.c.l.b16 %v4676
    %v5443 = vunpack.c.h.b16 %v4676
    %v5444 = vunpack.c.l.b16 %v4677
    %v5445 = vunpack.c.h.b16 %v4677
    %v5446 = vunpack.c.l.b16 %v4678
    %v5447 = vunpack.c.h.b16 %v4678
    %v5448 = vunpack.c.l.b16 %v4679
    %v5449 = vunpack.c.h.b16 %v4679
    %v5450 = vunpack.c.l.b16 %v4680
    %v5451 = vunpack.c.h.b16 %v4680
    %v5452 = vunpack.c.l.b16 %v4681
    %v5453 = vunpack.c.h.b16 %v4681
    %v5454 = vunpack.c.l.b16 %v4682
    %v5455 = vunpack.c.h.b16 %v4682
    %v5456 = vunpack.c.l.b16 %v4683
    %v5457 = vunpack.c.h.b16 %v4683
    %v5458 = vunpack.c.l.b16 %v4684
    %v5459 = vunpack.c.h.b16 %v4684
    %v5460 = vunpack.c.l.b16 %v4685
    %v5461 = vunpack.c.h.b16 %v4685
    %v5462 = vunpack.c.l.b16 %v4686
    %v5463 = vunpack.c.h.b16 %v4686
    %v5464 = vunpack.c.l.b16 %v4687
    %v5465 = vunpack.c.h.b16 %v4687
    %v5466 = vunpack.c.l.b16 %v4688
    %v5467 = vunpack.c.h.b16 %v4688
    %v5468 = vunpack.c.l.b16 %v4689
    %v5469 = vunpack.c.h.b16 %v4689
    %v5470 = vunpack.c.l.b16 %v4690
    %v5471 = vunpack.c.h.b16 %v4690
    %v5472 = vunpack.c.l.b16 %v4691
    %v5473 = vunpack.c.h.b16 %v4691
    %v5474 = vunpack.c.l.b16 %v4692
    %v5475 = vunpack.c.h.b16 %v4692
    %v5476 = vunpack.c.l.b16 %v4693
    %v5477 = vunpack.c.h.b16 %v4693
    %v5478 = vunpack.c.l.b16 %v4694
    %v5479 = vunpack.c.h.b16 %v4694
    %v5480 = vunpack.c.l.b16 %v4695
    %v5481 = vunpack.c.h.b16 %v4695
    %v5482 = vunpack.c.l.b16 %v4696
    %v5483 = vunpack.c.h.b16 %v4696
    %v5484 = vunpack.c.l.b16 %v4697
    %v5485 = vunpack.c.h.b16 %v4697
    %v5486 = vunpack.c.l.b16 %v4698
    %v5487 = vunpack.c.h.b16 %v4698
    %v5488 = vunpack.c.l.b16 %v4699
    %v5489 = vunpack.c.h.b16 %v4699
    %v5490 = vunpack.c.l.b16 %v4700
    %v5491 = vunpack.c.h.b16 %v4700
    %v5492 = vunpack.c.l.b16 %v4701
    %v5493 = vunpack.c.h.b16 %v4701
    %v5494 = vunpack.c.l.b16 %v4702
    %v5495 = vunpack.c.h.b16 %v4702
    %v5496 = vunpack.c.l.b16 %v4703
    %v5497 = vunpack.c.h.b16 %v4703
    %v5498 = vunpack.c.l.b16 %v4704
    %v5499 = vunpack.c.h.b16 %v4704
    %v5500 = vunpack.c.l.b16 %v4705
    %v5501 = vunpack.c.h.b16 %v4705
    %v5502 = vunpack.c.l.b16 %v4706
    %v5503 = vunpack.c.h.b16 %v4706
    %v5504 = vunpack.c.l.b16 %v4707
    %v5505 = vunpack.c.h.b16 %v4707
    %v5506 = vunpack.c.l.b16 %v4708
    %v5507 = vunpack.c.h.b16 %v4708
    %v5508 = vunpack.c.l.b16 %v4709
    %v5509 = vunpack.c.h.b16 %v4709
    %v5510 = vunpack.c.l.b16 %v4710
    %v5511 = vunpack.c.h.b16 %v4710
    %v5512 = vunpack.c.l.b16 %v4711
    %v5513 = vunpack.c.h.b16 %v4711
    %v5514 = vunpack.c.l.b16 %v4712
    %v5515 = vunpack.c.h.b16 %v4712
    %v5516 = vunpack.c.l.b16 %v4713
    %v5517 = vunpack.c.h.b16 %v4713
    %v5518 = vunpack.c.l.b16 %v4714
    %v5519 = vunpack.c.h.b16 %v4714
    %v5520 = vunpack.c.l.b16 %v4715
    %v5521 = vunpack.c.h.b16 %v4715
    %v5522 = vunpack.c.l.b16 %v4716
    %v5523 = vunpack.c.h.b16 %v4716
    %v5524 = vunpack.c.l.b16 %v4717
    %v5525 = vunpack.c.h.b16 %v4717
    %v5526 = vunpack.c.l.b16 %v4718
    %v5527 = vunpack.c.h.b16 %v4718
    %v5528 = vunpack.c.l.b16 %v4719
    %v5529 = vunpack.c.h.b16 %v4719
    %v5530 = vunpack.c.l.b16 %v4720
    %v5531 = vunpack.c.h.b16 %v4720
    %v5532 = vunpack.c.l.b16 %v4721
    %v5533 = vunpack.c.h.b16 %v4721
    %v5534 = vunpack.c.l.b16 %v4722
    %v5535 = vunpack.c.h.b16 %v4722
    %v5536 = vunpack.c.l.b16 %v4723
    %v5537 = vunpack.c.h.b16 %v4723
    %v5538 = vunpack.c.l.b16 %v4724
    %v5539 = vunpack.c.h.b16 %v4724
    %v5540 = vunpack.c.l.b16 %v4725
    %v5541 = vunpack.c.h.b16 %v4725
    %v5542 = vunpack.c.l.b16 %v4726
    %v5543 = vunpack.c.h.b16 %v4726
    %v5544 = vunpack.c.l.b16 %v4727
    %v5545 = vunpack.c.h.b16 %v4727
    %v5546 = vunpack.c.l.b16 %v4728
    %v5547 = vunpack.c.h.b16 %v4728
    %v5548 = vunpack.c.l.b16 %v4729
    %v5549 = vunpack.c.h.b16 %v4729
    %v5550 = vunpack.c.l.b16 %v4730
    %v5551 = vunpack.c.h.b16 %v4730
    %v5552 = vunpack.c.l.b16 %v4731
    %v5553 = vunpack.c.h.b16 %v4731
    %v5554 = vunpack.c.l.b16 %v4732
    %v5555 = vunpack.c.h.b16 %v4732
    %v5556 = vunpack.c.l.b16 %v4733
    %v5557 = vunpack.c.h.b16 %v4733
    %v5558 = vunpack.c.l.b16 %v4734
    %v5559 = vunpack.c.h.b16 %v4734
    %v5560 = vunpack.c.l.b16 %v4735
    %v5561 = vunpack.c.h.b16 %v4735
    %v5562 = vunpack.c.l.b16 %v4736
    %v5563 = vunpack.c.h.b16 %v4736
    %v5564 = vunpack.c.l.b16 %v4737
    %v5565 = vunpack.c.h.b16 %v4737
    %v5566 = vunpack.c.l.b16 %v4738
    %v5567 = vunpack.c.h.b16 %v4738
    %v5568 = vunpack.c.l.b16 %v4739
    %v5569 = vunpack.c.h.b16 %v4739
    %v5570 = vunpack.c.l.b16 %v4740
    %v5571 = vunpack.c.h.b16 %v4740
    %v5572 = vunpack.c.l.b16 %v4741
    %v5573 = vunpack.c.h.b16 %v4741
    %v5574 = vunpack.c.l.b16 %v4742
    %v5575 = vunpack.c.h.b16 %v4742
    %v5576 = vunpack.c.l.b16 %v4743
    %v5577 = vunpack.c.h.b16 %v4743
    %v5578 = vunpack.c.l.b16 %v4744
    %v5579 = vunpack.c.h.b16 %v4744
    %v5580 = vunpack.c.l.b16 %v4745
    %v5581 = vunpack.c.h.b16 %v4745
    %v5582 = vunpack.c.l.b16 %v4746
    %v5583 = vunpack.c.h.b16 %v4746
    %v5584 = vunpack.c.l.b16 %v4747
    %v5585 = vunpack.c.h.b16 %v4747
    %v5586 = vunpack.c.l.b16 %v4748
    %v5587 = vunpack.c.h.b16 %v4748
    %v5588 = vunpack.c.l.b16 %v4749
    %v5589 = vunpack.c.h.b16 %v4749
    %v5590 = vunpack.c.l.b16 %v4750
    %v5591 = vunpack.c.h.b16 %v4750
    %v5592 = vunpack.c.l.b16 %v4751
    %v5593 = vunpack.c.h.b16 %v4751
    %v5594 = vunpack.c.l.b16 %v4752
    %v5595 = vunpack.c.h.b16 %v4752
    %v5596 = vunpack.c.l.b16 %v4753
    %v5597 = vunpack.c.h.b16 %v4753
    %v5598 = vunpack.c.l.b16 %v4754
    %v5599 = vunpack.c.h.b16 %v4754
    %v5600 = vunpack.c.l.b16 %v4755
    %v5601 = vunpack.c.h.b16 %v4755
    %v5602 = vunpack.c.l.b16 %v4756
    %v5603 = vunpack.c.h.b16 %v4756
    %v5604 = vunpack.c.l.b16 %v4757
    %v5605 = vunpack.c.h.b16 %v4757
    %v5606 = vunpack.c.l.b16 %v4758
    %v5607 = vunpack.c.h.b16 %v4758
    %v5608 = vunpack.c.l.b16 %v4759
    %v5609 = vunpack.c.h.b16 %v4759
    %v5610 = vunpack.c.l.b16 %v4760
    %v5611 = vunpack.c.h.b16 %v4760
    %v5612 = vunpack.c.l.b16 %v4761
    %v5613 = vunpack.c.h.b16 %v4761
    %v5614 = vunpack.c.l.b16 %v4762
    %v5615 = vunpack.c.h.b16 %v4762
    %v5616 = vunpack.c.l.b16 %v4763
    %v5617 = vunpack.c.h.b16 %v4763
    %v5618 = vunpack.c.l.b16 %v4764
    %v5619 = vunpack.c.h.b16 %v4764
    %v5620 = vunpack.c.l.b16 %v4765
    %v5621 = vunpack.c.h.b16 %v4765
    %v5622 = vunpack.c.l.b16 %v4766
    %v5623 = vunpack.c.h.b16 %v4766
    %v5624 = vunpack.c.l.b16 %v4767
    %v5625 = vunpack.c.h.b16 %v4767
    %v5626 = vunpack.c.l.b16 %v4768
    %v5627 = vunpack.c.h.b16 %v4768
    %v5628 = vunpack.c.l.b16 %v4769
    %v5629 = vunpack.c.h.b16 %v4769
    %v5630 = vunpack.c.l.b16 %v4770
    %v5631 = vunpack.c.h.b16 %v4770
    %v5632 = vunpack.c.l.b16 %v4771
    %v5633 = vunpack.c.h.b16 %v4771
    %v5634 = vunpack.c.l.b16 %v4772
    %v5635 = vunpack.c.h.b16 %v4772
    %v5636 = vunpack.c.l.b16 %v4773
    %v5637 = vunpack.c.h.b16 %v4773
    %v5638 = vunpack.c.l.b16 %v4774
    %v5639 = vunpack.c.h.b16 %v4774
    %v5640 = vunpack.c.l.b16 %v4775
    %v5641 = vunpack.c.h.b16 %v4775
    %v5642 = vunpack.c.l.b16 %v4776
    %v5643 = vunpack.c.h.b16 %v4776
    %v5644 = vunpack.c.l.b16 %v4777
    %v5645 = vunpack.c.h.b16 %v4777
    %v5646 = vunpack.c.l.b16 %v4778
    %v5647 = vunpack.c.h.b16 %v4778
    %v5648 = vunpack.c.l.b16 %v4779
    %v5649 = vunpack.c.h.b16 %v4779
    %v5650 = vunpack.c.l.b16 %v4780
    %v5651 = vunpack.c.h.b16 %v4780
    %v5652 = vunpack.c.l.b16 %v4781
    %v5653 = vunpack.c.h.b16 %v4781
    %v5654 = vunpack.c.l.b16 %v4782
    %v5655 = vunpack.c.h.b16 %v4782
    %v5656 = vunpack.c.l.b16 %v4783
    %v5657 = vunpack.c.h.b16 %v4783
    %v5658 = vunpack.c.l.b16 %v4784
    %v5659 = vunpack.c.h.b16 %v4784
    %v5660 = vunpack.c.l.b16 %v4785
    %v5661 = vunpack.c.h.b16 %v4785
    %v5662 = vunpack.c.l.b16 %v4786
    %v5663 = vunpack.c.h.b16 %v4786
    %v5664 = vunpack.c.l.b16 %v4787
    %v5665 = vunpack.c.h.b16 %v4787
    %v5666 = vunpack.c.l.b16 %v4788
    %v5667 = vunpack.c.h.b16 %v4788
    %v5668 = vunpack.c.l.b16 %v4789
    %v5669 = vunpack.c.h.b16 %v4789
    %v5670 = vunpack.c.l.b16 %v4790
    %v5671 = vunpack.c.h.b16 %v4790
    %v5672 = vunpack.c.l.b16 %v4791
    %v5673 = vunpack.c.h.b16 %v4791
    %v5674 = vunpack.c.l.b16 %v4792
    %v5675 = vunpack.c.h.b16 %v4792
    %v5676 = vunpack.c.l.b16 %v4793
    %v5677 = vunpack.c.h.b16 %v4793
    %v5678 = vunpack.c.l.b16 %v4794
    %v5679 = vunpack.c.h.b16 %v4794
    %v5680 = vunpack.c.l.b16 %v4795
    %v5681 = vunpack.c.h.b16 %v4795
    %v5682 = vunpack.c.l.b16 %v4796
    %v5683 = vunpack.c.h.b16 %v4796
    %v5684 = vunpack.c.l.b16 %v4797
    %v5685 = vunpack.c.h.b16 %v4797
    %v5686 = vunpack.c.l.b16 %v4798
    %v5687 = vunpack.c.h.b16 %v4798
    %v5688 = vunpack.c.l.b16 %v4799
    %v5689 = vunpack.c.h.b16 %v4799
    %v5690 = vunpack.c.l.b16 %v4800
    %v5691 = vunpack.c.h.b16 %v4800
    %v5692 = vunpack.c.l.b16 %v4801
    %v5693 = vunpack.c.h.b16 %v4801
    %v5694 = vunpack.c.l.b16 %v4802
    %v5695 = vunpack.c.h.b16 %v4802
    %v5696 = vunpack.c.l.b16 %v4803
    %v5697 = vunpack.c.h.b16 %v4803
    %v5698 = vunpack.c.l.b16 %v4804
    %v5699 = vunpack.c.h.b16 %v4804
    %v5700 = vunpack.c.l.b16 %v4805
    %v5701 = vunpack.c.h.b16 %v4805
    %v5702 = vpack.c.b16 %v5132, %v5126
    %v5703 = vpack.c.b16 %v5133, %v5127
    %v5704 = vpack.c.b16 %v5134, %v5128
    %v5705 = vpack.c.b16 %v5135, %v5129
    %v5706 = vpack.c.b16 %v5136, %v5130
    %v5707 = vpack.c.b16 %v5137, %v5131
    %v5708 = vpack.c.b16 %v5144, %v5138
    %v5709 = vpack.c.b16 %v5145, %v5139
    %v5710 = vpack.c.b16 %v5146, %v5140
    %v5711 = vpack.c.b16 %v5147, %v5141
    %v5712 = vpack.c.b16 %v5148, %v5142
    %v5713 = vpack.c.b16 %v5149, %v5143
    %v5714 = vpack.c.b16 %v5156, %v5150
    %v5715 = vpack.c.b16 %v5157, %v5151
    %v5716 = vpack.c.b16 %v5158, %v5152
    %v5717 = vpack.c.b16 %v5159, %v5153
    %v5718 = vpack.c.b16 %v5160, %v5154
    %v5719 = vpack.c.b16 %v5161, %v5155
    %v5720 = vpack.c.b16 %v5168, %v5162
    %v5721 = vpack.c.b16 %v5169, %v5163
    %v5722 = vpack.c.b16 %v5170, %v5164
    %v5723 = vpack.c.b16 %v5171, %v5165
    %v5724 = vpack.c.b16 %v5172, %v5166
    %v5725 = vpack.c.b16 %v5173, %v5167
    %v5726 = vpack.c.b16 %v5180, %v5174
    %v5727 = vpack.c.b16 %v5181, %v5175
    %v5728 = vpack.c.b16 %v5182, %v5176
    %v5729 = vpack.c.b16 %v5183, %v5177
    %v5730 = vpack.c.b16 %v5184, %v5178
    %v5731 = vpack.c.b16 %v5185, %v5179
    %v5732 = vpack.c.b16 %v5192, %v5186
    %v5733 = vpack.c.b16 %v5193, %v5187
    %v5734 = vpack.c.b16 %v5194, %v5188
    %v5735 = vpack.c.b16 %v5195, %v5189
    %v5736 = vpack.c.b16 %v5196, %v5190
    %v5737 = vpack.c.b16 %v5197, %v5191
    %v5738 = vpack.c.b16 %v5204, %v5198
    %v5739 = vpack.c.b16 %v5205, %v5199
    %v5740 = vpack.c.b16 %v5206, %v5200
    %v5741 = vpack.c.b16 %v5207, %v5201
    %v5742 = vpack.c.b16 %v5208, %v5202
    %v5743 = vpack.c.b16 %v5209, %v5203
    %v5744 = vpack.c.b16 %v5216, %v5210
    %v5745 = vpack.c.b16 %v5217, %v5211
    %v5746 = vpack.c.b16 %v5218, %v5212
    %v5747 = vpack.c.b16 %v5219, %v5213
    %v5748 = vpack.c.b16 %v5220, %v5214
    %v5749 = vpack.c.b16 %v5221, %v5215
    %v5750 = vpack.c.b16 %v5228, %v5222
    %v5751 = vpack.c.b16 %v5229, %v5223
    %v5752 = vpack.c.b16 %v5230, %v5224
    %v5753 = vpack.c.b16 %v5231, %v5225
    %v5754 = vpack.c.b16 %v5232, %v5226
    %v5755 = vpack.c.b16 %v5233, %v5227
    %v5756 = vpack.c.b16 %v5240, %v5234
    %v5757 = vpack.c.b16 %v5241, %v5235
    %v5758 = vpack.c.b16 %v5242, %v5236
    %v5759 = vpack.c.b16 %v5243, %v5237
    %v5760 = vpack.c.b16 %v5244, %v5238
    %v5761 = vpack.c.b16 %v5245, %v5239
    %v5762 = vpack.c.b16 %v5252, %v5246
    %v5763 = vpack.c.b16 %v5253, %v5247
    %v5764 = vpack.c.b16 %v5254, %v5248
    %v5765 = vpack.c.b16 %v5255, %v5249
    %v5766 = vpack.c.b16 %v5256, %v5250
    %v5767 = vpack.c.b16 %v5257, %v5251
    %v5768 = vpack.c.b16 %v5264, %v5258
    %v5769 = vpack.c.b16 %v5265, %v5259
    %v5770 = vpack.c.b16 %v5266, %v5260
    %v5771 = vpack.c.b16 %v5267, %v5261
    %v5772 = vpack.c.b16 %v5268, %v5262
    %v5773 = vpack.c.b16 %v5269, %v5263
    %v5774 = vpack.c.b16 %v5276, %v5270
    %v5775 = vpack.c.b16 %v5277, %v5271
    %v5776 = vpack.c.b16 %v5278, %v5272
    %v5777 = vpack.c.b16 %v5279, %v5273
    %v5778 = vpack.c.b16 %v5280, %v5274
    %v5779 = vpack.c.b16 %v5281, %v5275
    %v5780 = vpack.c.b16 %v5288, %v5282
    %v5781 = vpack.c.b16 %v5289, %v5283
    %v5782 = vpack.c.b16 %v5290, %v5284
    %v5783 = vpack.c.b16 %v5291, %v5285
    %v5784 = vpack.c.b16 %v5292, %v5286
    %v5785 = vpack.c.b16 %v5293, %v5287
    %v5786 = vpack.c.b16 %v5300, %v5294
    %v5787 = vpack.c.b16 %v5301, %v5295
    %v5788 = vpack.c.b16 %v5302, %v5296
    %v5789 = vpack.c.b16 %v5303, %v5297
    %v5790 = vpack.c.b16 %v5304, %v5298
    %v5791 = vpack.c.b16 %v5305, %v5299
    %v5792 = vpack.c.b16 %v5312, %v5306
    %v5793 = vpack.c.b16 %v5313, %v5307
    %v5794 = vpack.c.b16 %v5314, %v5308
    %v5795 = vpack.c.b16 %v5315, %v5309
    %v5796 = vpack.c.b16 %v5316, %v5310
    %v5797 = vpack.c.b16 %v5317, %v5311
    %v5798 = vpack.c.b16 %v5324, %v5318
    %v5799 = vpack.c.b16 %v5325, %v5319
    %v5800 = vpack.c.b16 %v5326, %v5320
    %v5801 = vpack.c.b16 %v5327, %v5321
    %v5802 = vpack.c.b16 %v5328, %v5322
    %v5803 = vpack.c.b16 %v5329, %v5323
    %v5804 = vpack.c.b16 %v5336, %v5330
    %v5805 = vpack.c.b16 %v5337, %v5331
    %v5806 = vpack.c.b16 %v5338, %v5332
    %v5807 = vpack.c.b16 %v5339, %v5333
    %v5808 = vpack.c.b16 %v5340, %v5334
    %v5809 = vpack.c.b16 %v5341, %v5335
    %v5810 = vpack.c.b16 %v5348, %v5342
    %v5811 = vpack.c.b16 %v5349, %v5343
    %v5812 = vpack.c.b16 %v5350, %v5344
    %v5813 = vpack.c.b16 %v5351, %v5345
    %v5814 = vpack.c.b16 %v5352, %v5346
    %v5815 = vpack.c.b16 %v5353, %v5347
    %v5816 = vpack.c.b16 %v5360, %v5354
    %v5817 = vpack.c.b16 %v5361, %v5355
    %v5818 = vpack.c.b16 %v5362, %v5356
    %v5819 = vpack.c.b16 %v5363, %v5357
    %v5820 = vpack.c.b16 %v5364, %v5358
    %v5821 = vpack.c.b16 %v5365, %v5359
    %v5822 = vpack.c.b16 %v5372, %v5366
    %v5823 = vpack.c.b16 %v5373, %v5367
    %v5824 = vpack.c.b16 %v5374, %v5368
    %v5825 = vpack.c.b16 %v5375, %v5369
    %v5826 = vpack.c.b16 %v5376, %v5370
    %v5827 = vpack.c.b16 %v5377, %v5371
    %v5828 = vpack.c.b16 %v5384, %v5378
    %v5829 = vpack.c.b16 %v5385, %v5379
    %v5830 = vpack.c.b16 %v5386, %v5380
    %v5831 = vpack.c.b16 %v5387, %v5381
    %v5832 = vpack.c.b16 %v5388, %v5382
    %v5833 = vpack.c.b16 %v5389, %v5383
    %v5834 = vpack.c.b16 %v5396, %v5390
    %v5835 = vpack.c.b16 %v5397, %v5391
    %v5836 = vpack.c.b16 %v5398, %v5392
    %v5837 = vpack.c.b16 %v5399, %v5393
    %v5838 = vpack.c.b16 %v5400, %v5394
    %v5839 = vpack.c.b16 %v5401, %v5395
    %v5840 = vpack.c.b16 %v5408, %v5402
    %v5841 = vpack.c.b16 %v5409, %v5403
    %v5842 = vpack.c.b16 %v5410, %v5404
    %v5843 = vpack.c.b16 %v5411, %v5405
    %v5844 = vpack.c.b16 %v5412, %v5406
    %v5845 = vpack.c.b16 %v5413, %v5407
    %v5846 = vpack.c.b16 %v5420, %v5414
    %v5847 = vpack.c.b16 %v5421, %v5415
    %v5848 = vpack.c.b16 %v5422, %v5416
    %v5849 = vpack.c.b16 %v5423, %v5417
    %v5850 = vpack.c.b16 %v5424, %v5418
    %v5851 = vpack.c.b16 %v5425, %v5419
    %v5852 = vpack.c.b16 %v5432, %v5426
    %v5853 = vpack.c.b16 %v5433, %v5427
    %v5854 = vpack.c.b16 %v5434, %v5428
    %v5855 = vpack.c.b16 %v5435, %v5429
    %v5856 = vpack.c.b16 %v5436, %v5430
    %v5857 = vpack.c.b16 %v5437, %v5431
    %v5858 = vpack.c.b16 %v5444, %v5438
    %v5859 = vpack.c.b16 %v5445, %v5439
    %v5860 = vpack.c.b16 %v5446, %v5440
    %v5861 = vpack.c.b16 %v5447, %v5441
    %v5862 = vpack.c.b16 %v5448, %v5442
    %v5863 = vpack.c.b16 %v5449, %v5443
    %v5864 = vpack.c.b16 %v5456, %v5450
    %v5865 = vpack.c.b16 %v5457, %v5451
    %v5866 = vpack.c.b16 %v5458, %v5452
    %v5867 = vpack.c.b16 %v5459, %v5453
    %v5868 = vpack.c.b16 %v5460, %v5454
    %v5869 = vpack.c.b16 %v5461, %v5455
    %v5870 = vpack.c.b16 %v5468, %v5462
    %v5871 = vpack.c.b16 %v5469, %v5463
    %v5872 = vpack.c.b16 %v5470, %v5464
    %v5873 = vpack.c.b16 %v5471, %v5465
    %v5874 = vpack.c.b16 %v5472, %v5466
    %v5875 = vpack.c.b16 %v5473, %v5467
    %v5876 = vpack.c.b16 %v5480, %v5474
    %v5877 = vpack.c.b16 %v5481, %v5475
    %v5878 = vpack.c.b16 %v5482, %v5476
    %v5879 = vpack.c.b16 %v5483, %v5477
    %v5880 = vpack.c.b16 %v5484, %v5478
    %v5881 = vpack.c.b16 %v5485, %v5479
    %v5882 = vpack.c.b16 %v5492, %v5486
    %v5883 = vpack.c.b16 %v5493, %v5487
    %v5884 = vpack.c.b16 %v5494, %v5488
    %v5885 = vpack.c.b16 %v5495, %v5489
    %v5886 = vpack.c.b16 %v5496, %v5490
    %v5887 = vpack.c.b16 %v5497, %v5491
    %v5888 = vpack.c.b16 %v5504, %v5498
    %v5889 = vpack.c.b16 %v5505, %v5499
    %v5890 = vpack.c.b16 %v5506, %v5500
    %v5891 = vpack.c.b16 %v5507, %v5501
    %v5892 = vpack.c.b16 %v5508, %v5502
    %v5893 = vpack.c.b16 %v5509, %v5503
    %v5894 = vpack.c.b16 %v5516, %v5510
    %v5895 = vpack.c.b16 %v5517, %v5511
    %v5896 = vpack.c.b16 %v5518, %v5512
    %v5897 = vpack.c.b16 %v5519, %v5513
    %v5898 = vpack.c.b16 %v5520, %v5514
    %v5899 = vpack.c.b16 %v5521, %v5515
    %v5900 = vpack.c.b16 %v5528, %v5522
    %v5901 = vpack.c.b16 %v5529, %v5523
    %v5902 = vpack.c.b16 %v5530, %v5524
    %v5903 = vpack.c.b16 %v5531, %v5525
    %v5904 = vpack.c.b16 %v5532, %v5526
    %v5905 = vpack.c.b16 %v5533, %v5527
    %v5906 = vpack.c.b16 %v5540, %v5534
    %v5907 = vpack.c.b16 %v5541, %v5535
    %v5908 = vpack.c.b16 %v5542, %v5536
    %v5909 = vpack.c.b16 %v5543, %v5537
    %v5910 = vpack.c.b16 %v5544, %v5538
    %v5911 = vpack.c.b16 %v5545, %v5539
    %v5912 = vpack.c.b16 %v5552, %v5546
    %v5913 = vpack.c.b16 %v5553, %v5547
    %v5914 = vpack.c.b16 %v5554, %v5548
    %v5915 = vpack.c.b16 %v5555, %v5549
    %v5916 = vpack.c.b16 %v5556, %v5550
    %v5917 = vpack.c.b16 %v5557, %v5551
    %v5918 = vpack.c.b16 %v5564, %v5558
    %v5919 = vpack.c.b16 %v5565, %v5559
    %v5920 = vpack.c.b16 %v5566, %v5560
    %v5921 = vpack.c.b16 %v5567, %v5561
    %v5922 = vpack.c.b16 %v5568, %v5562
    %v5923 = vpack.c.b16 %v5569, %v5563
    %v5924 = vpack.c.b16 %v5576, %v5570
    %v5925 = vpack.c.b16 %v5577, %v5571
    %v5926 = vpack.c.b16 %v5578, %v5572
    %v5927 = vpack.c.b16 %v5579, %v5573
    %v5928 = vpack.c.b16 %v5580, %v5574
    %v5929 = vpack.c.b16 %v5581, %v5575
    %v5930 = vpack.c.b16 %v5588, %v5582
    %v5931 = vpack.c.b16 %v5589, %v5583
    %v5932 = vpack.c.b16 %v5590, %v5584
    %v5933 = vpack.c.b16 %v5591, %v5585
    %v5934 = vpack.c.b16 %v5592, %v5586
    %v5935 = vpack.c.b16 %v5593, %v5587
    %v5936 = vpack.c.b16 %v5600, %v5594
    %v5937 = vpack.c.b16 %v5601, %v5595
    %v5938 = vpack.c.b16 %v5602, %v5596
    %v5939 = vpack.c.b16 %v5603, %v5597
    %v5940 = vpack.c.b16 %v5604, %v5598
    %v5941 = vpack.c.b16 %v5605, %v5599
    %v5942 = vpack.c.b16 %v5612, %v5606
    %v5943 = vpack.c.b16 %v5613, %v5607
    %v5944 = vpack.c.b16 %v5614, %v5608
    %v5945 = vpack.c.b16 %v5615, %v5609
    %v5946 = vpack.c.b16 %v5616, %v5610
    %v5947 = vpack.c.b16 %v5617, %v5611
    %v5948 = vpack.c.b16 %v5624, %v5618
    %v5949 = vpack.c.b16 %v5625, %v5619
    %v5950 = vpack.c.b16 %v5626, %v5620
    %v5951 = vpack.c.b16 %v5627, %v5621
    %v5952 = vpack.c.b16 %v5628, %v5622
    %v5953 = vpack.c.b16 %v5629, %v5623
    %v5954 = vpack.c.b16 %v5636, %v5630
    %v5955 = vpack.c.b16 %v5637, %v5631
    %v5956 = vpack.c.b16 %v5638, %v5632
    %v5957 = vpack.c.b16 %v5639, %v5633
    %v5958 = vpack.c.b16 %v5640, %v5634
    %v5959 = vpack.c.b16 %v5641, %v5635
    %v5960 = vpack.c.b16 %v5648, %v5642
    %v5961 = vpack.c.b16 %v5649, %v5643
    %v5962 = vpack.c.b16 %v5650, %v5644
    %v5963 = vpack.c.b16 %v5651, %v5645
    %v5964 = vpack.c.b16 %v5652, %v5646
    %v5965 = vpack.c.b16 %v5653, %v5647
    %v5966 = vpack.c.b16 %v5660, %v5654
    %v5967 = vpack.c.b16 %v5661, %v5655
    %v5968 = vpack.c.b16 %v5662, %v5656
    %v5969 = vpack.c.b16 %v5663, %v5657
    %v5970 = vpack.c.b16 %v5664, %v5658
    %v5971 = vpack.c.b16 %v5665, %v5659
    %v5972 = vpack.c.b16 %v5672, %v5666
    %v5973 = vpack.c.b16 %v5673, %v5667
    %v5974 = vpack.c.b16 %v5674, %v5668
    %v5975 = vpack.c.b16 %v5675, %v5669
    %v5976 = vpack.c.b16 %v5676, %v5670
    %v5977 = vpack.c.b16 %v5677, %v5671
    %v5978 = vpack.c.b16 %v5684, %v5678
    %v5979 = vpack.c.b16 %v5685, %v5679
    %v5980 = vpack.c.b16 %v5686, %v5680
    %v5981 = vpack.c.b16 %v5687, %v5681
    %v5982 = vpack.c.b16 %v5688, %v5682
    %v5983 = vpack.c.b16 %v5689, %v5683
    %v5984 = vpack.c.b16 %v5696, %v5690
    %v5985 = vpack.c.b16 %v5697, %v5691
    %v5986 = vpack.c.b16 %v5698, %v5692
    %v5987 = vpack.c.b16 %v5699, %v5693
    %v5988 = vpack.c.b16 %v5700, %v5694
    %v5989 = vpack.c.b16 %v5701, %v5695
    %6278 = vmatprep.subr.bf16.mxu0 %v5703
    %6279 = vmatpush1.bf16.msra.mxu0 %v5702
    %6280 = vmatprep.subr.bf16.mxu0 %v5709
    %6281 = vmatpush1.bf16.msra.mxu0 %v5708
    %6282 = vmatprep.subr.bf16.mxu0 %v5715
    %6283 = vmatpush1.bf16.msra.mxu0 %v5714
    %6284 = vmatprep.subr.bf16.mxu0 %v5721
    %6285 = vmatpush1.bf16.msra.mxu0 %v5720
    %6286 = vmatprep.subr.bf16.mxu0 %v5727
    %6287 = vmatpush1.bf16.msra.mxu0 %v5726
    %6288 = vmatprep.subr.bf16.mxu0 %v5733
    %6289 = vmatpush1.bf16.msra.mxu0 %v5732
    %6290 = vmatprep.subr.bf16.mxu0 %v5739
    %6291 = vmatpush1.bf16.msra.mxu0 %v5738
    %6292 = vmatprep.subr.bf16.mxu0 %v5745
    %6293 = vmatpush1.bf16.msra.mxu0 %v5744
    %6294 = vmatprep.subr.bf16.mxu0 %v5751
    %6295 = vmatpush1.bf16.msra.mxu0 %v5750
    %6296 = vmatprep.subr.bf16.mxu0 %v5757
    %6297 = vmatpush1.bf16.msra.mxu0 %v5756
    %6298 = vmatprep.subr.bf16.mxu0 %v5763
    %6299 = vmatpush1.bf16.msra.mxu0 %v5762
    %6300 = vmatprep.subr.bf16.mxu0 %v5769
    %6301 = vmatpush1.bf16.msra.mxu0 %v5768
    %6302 = vmatprep.subr.bf16.mxu0 %v5775
    %6303 = vmatpush1.bf16.msra.mxu0 %v5774
    %6304 = vmatprep.subr.bf16.mxu0 %v5781
    %6305 = vmatpush1.bf16.msra.mxu0 %v5780
    %6306 = vmatprep.subr.bf16.mxu0 %v5787
    %6307 = vmatpush1.bf16.msra.mxu0 %v5786
    %6308 = vmatprep.subr.bf16.mxu0 %v5793
    %6309 = vmatpush1.bf16.msra.mxu0 %v5792
    %6310 = vmatprep.mubr.bf16.mxu0 %v4513
    %6311 = vmatmul.mubr.bf16.gmra.mrb[0].mxu0 %v4512
    %v6312 = vpop.f32.mrb[0].mxu0
    %v6313 = vadd.f32 %v4811, %v6312
    %v6314 = vpop.f32.mrb[0].mxu0
    %v6315 = vadd.f32 %v4815, %v6314
    %v6316 = vpop.f32.mrb[0].mxu0
    %v6317 = vadd.f32 %v4811, %v6316
    %v6318 = vpop.f32.mrb[0].mxu0
    %v6319 = vadd.f32 %v4815, %v6318
    %6320 = vdwg.mxu0
    %6321 = vmatprep.subr.bf16.mxu0 %v5799
    %6322 = vmatpush1.bf16.msra.mxu0 %v5798
    %6323 = vmatprep.subr.bf16.mxu0 %v5805
    %6324 = vmatpush1.bf16.msra.mxu0 %v5804
    %6325 = vmatprep.subr.bf16.mxu0 %v5811
    %6326 = vmatpush1.bf16.msra.mxu0 %v5810
    %6327 = vmatprep.subr.bf16.mxu0 %v5817
    %6328 = vmatpush1.bf16.msra.mxu0 %v5816
    %6329 = vmatprep.subr.bf16.mxu0 %v5823
    %6330 = vmatpush1.bf16.msra.mxu0 %v5822
    %6331 = vmatprep.subr.bf16.mxu0 %v5829
    %6332 = vmatpush1.bf16.msra.mxu0 %v5828
    %6333 = vmatprep.subr.bf16.mxu0 %v5835
    %6334 = vmatpush1.bf16.msra.mxu0 %v5834
    %6335 = vmatprep.subr.bf16.mxu0 %v5841
    %6336 = vmatpush1.bf16.msra.mxu0 %v5840
    %6337 = vmatprep.subr.bf16.mxu0 %v5847
    %6338 = vmatpush1.bf16.msra.mxu0 %v5846
    %6339 = vmatprep.subr.bf16.mxu0 %v5853
    %6340 = vmatpush1.bf16.msra.mxu0 %v5852
    %6341 = vmatprep.subr.bf16.mxu0 %v5859
    %6342 = vmatpush1.bf16.msra.mxu0 %v5858
    %6343 = vmatprep.subr.bf16.mxu0 %v5865
    %6344 = vmatpush1.bf16.msra.mxu0 %v5864
    %6345 = vmatprep.subr.bf16.mxu0 %v5871
    %6346 = vmatpush1.bf16.msra.mxu0 %v5870
    %6347 = vmatprep.subr.bf16.mxu0 %v5877
    %6348 = vmatpush1.bf16.msra.mxu0 %v5876
    %6349 = vmatprep.subr.bf16.mxu0 %v5883
    %6350 = vmatpush1.bf16.msra.mxu0 %v5882
    %6351 = vmatprep.subr.bf16.mxu0 %v5889
    %6352 = vmatpush1.bf16.msra.mxu0 %v5888
    %6353 = vmatprep.mubr.bf16.mxu0 %v4515
    %6354 = vmatmul.mubr.bf16.gmra.mrb[0].mxu0 %v4514
    %v6355 = vpop.f32.mrb[0].mxu0
    %v6356 = vadd.f32 %v6313, %v6355
    %v6357 = vpop.f32.mrb[0].mxu0
    %v6358 = vadd.f32 %v6315, %v6357
    %v6359 = vpop.f32.mrb[0].mxu0
    %v6360 = vadd.f32 %v6317, %v6359
    %v6361 = vpop.f32.mrb[0].mxu0
    %v6362 = vadd.f32 %v6319, %v6361
    %6363 = vdwg.mxu0
    %6364 = vmatprep.subr.bf16.mxu0 %v5895
    %6365 = vmatpush1.bf16.msra.mxu0 %v5894
    %6366 = vmatprep.subr.bf16.mxu0 %v5901
    %6367 = vmatpush1.bf16.msra.mxu0 %v5900
    %6368 = vmatprep.subr.bf16.mxu0 %v5907
    %6369 = vmatpush1.bf16.msra.mxu0 %v5906
    %6370 = vmatprep.subr.bf16.mxu0 %v5913
    %6371 = vmatpush1.bf16.msra.mxu0 %v5912
    %6372 = vmatprep.subr.bf16.mxu0 %v5919
    %6373 = vmatpush1.bf16.msra.mxu0 %v5918
    %6374 = vmatprep.subr.bf16.mxu0 %v5925
    %6375 = vmatpush1.bf16.msra.mxu0 %v5924
    %6376 = vmatprep.subr.bf16.mxu0 %v5931
    %6377 = vmatpush1.bf16.msra.mxu0 %v5930
    %6378 = vmatprep.subr.bf16.mxu0 %v5937
    %6379 = vmatpush1.bf16.msra.mxu0 %v5936
    %6380 = vmatprep.subr.bf16.mxu0 %v5943
    %6381 = vmatpush1.bf16.msra.mxu0 %v5942
    %6382 = vmatprep.subr.bf16.mxu0 %v5949
    %6383 = vmatpush1.bf16.msra.mxu0 %v5948
    %6384 = vmatprep.subr.bf16.mxu0 %v5955
    %6385 = vmatpush1.bf16.msra.mxu0 %v5954
    %6386 = vmatprep.subr.bf16.mxu0 %v5961
    %6387 = vmatpush1.bf16.msra.mxu0 %v5960
    %6388 = vmatprep.subr.bf16.mxu0 %v5967
    %6389 = vmatpush1.bf16.msra.mxu0 %v5966
    %6390 = vmatprep.subr.bf16.mxu0 %v5973
    %6391 = vmatpush1.bf16.msra.mxu0 %v5972
    %6392 = vmatprep.subr.bf16.mxu0 %v5979
    %6393 = vmatpush1.bf16.msra.mxu0 %v5978
    %6394 = vmatprep.subr.bf16.mxu0 %v5985
    %6395 = vmatpush1.bf16.msra.mxu0 %v5984
    %6396 = vmatprep.mubr.bf16.mxu0 %v4517
    %6397 = vmatmul.mubr.bf16.gmra.mrb[0].mxu0 %v4516
    %v6398 = vpop.f32.mrb[0].mxu0
    %v6399 = vadd.f32 %v6356, %v6398
    %v6400 = vpop.f32.mrb[0].mxu0
    %v6401 = vadd.f32 %v6358, %v6400
    %v6402 = vpop.f32.mrb[0].mxu0
    %v6403 = vadd.f32 %v6360, %v6402
    %v6404 = vpop.f32.mrb[0].mxu0
    %v6405 = vadd.f32 %v6362, %v6404
    %6406 = vdwg.mxu0
    %6407 = vmatprep.subr.bf16.mxu0 %v5705
    %6408 = vmatpush1.bf16.msra.mxu0 %v5704
    %6409 = vmatprep.subr.bf16.mxu0 %v5711
    %6410 = vmatpush1.bf16.msra.mxu0 %v5710
    %6411 = vmatprep.subr.bf16.mxu0 %v5717
    %6412 = vmatpush1.bf16.msra.mxu0 %v5716
    %6413 = vmatprep.subr.bf16.mxu0 %v5723
    %6414 = vmatpush1.bf16.msra.mxu0 %v5722
    %6415 = vmatprep.subr.bf16.mxu0 %v5729
    %6416 = vmatpush1.bf16.msra.mxu0 %v5728
    %6417 = vmatprep.subr.bf16.mxu0 %v5735
    %6418 = vmatpush1.bf16.msra.mxu0 %v5734
    %6419 = vmatprep.subr.bf16.mxu0 %v5741
    %6420 = vmatpush1.bf16.msra.mxu0 %v5740
    %6421 = vmatprep.subr.bf16.mxu0 %v5747
    %6422 = vmatpush1.bf16.msra.mxu0 %v5746
    %6423 = vmatprep.subr.bf16.mxu0 %v5753
    %6424 = vmatpush1.bf16.msra.mxu0 %v5752
    %6425 = vmatprep.subr.bf16.mxu0 %v5759
    %6426 = vmatpush1.bf16.msra.mxu0 %v5758
    %6427 = vmatprep.subr.bf16.mxu0 %v5765
    %6428 = vmatpush1.bf16.msra.mxu0 %v5764
    %6429 = vmatprep.subr.bf16.mxu0 %v5771
    %6430 = vmatpush1.bf16.msra.mxu0 %v5770
    %6431 = vmatprep.subr.bf16.mxu0 %v5777
    %6432 = vmatpush1.bf16.msra.mxu0 %v5776
    %6433 = vmatprep.subr.bf16.mxu0 %v5783
    %6434 = vmatpush1.bf16.msra.mxu0 %v5782
    %6435 = vmatprep.subr.bf16.mxu0 %v5789
    %6436 = vmatpush1.bf16.msra.mxu0 %v5788
    %6437 = vmatprep.subr.bf16.mxu0 %v5795
    %6438 = vmatpush1.bf16.msra.mxu0 %v5794
    %6439 = vmatprep.mubr.bf16.mxu0 %v4513
    %6440 = vmatmul.mubr.bf16.gmra.mrb[0].mxu0 %v4512
    %v6441 = vpop.f32.mrb[0].mxu0
    %v6442 = vadd.f32 %v4819, %v6441
    %v6443 = vpop.f32.mrb[0].mxu0
    %v6444 = vadd.f32 %v4823, %v6443
    %v6445 = vpop.f32.mrb[0].mxu0
    %v6446 = vadd.f32 %v4819, %v6445
    %v6447 = vpop.f32.mrb[0].mxu0
    %v6448 = vadd.f32 %v4823, %v6447
    %6449 = vdwg.mxu0
    %6450 = vmatprep.subr.bf16.mxu0 %v5801
    %6451 = vmatpush1.bf16.msra.mxu0 %v5800
    %6452 = vmatprep.subr.bf16.mxu0 %v5807
    %6453 = vmatpush1.bf16.msra.mxu0 %v5806
    %6454 = vmatprep.subr.bf16.mxu0 %v5813
    %6455 = vmatpush1.bf16.msra.mxu0 %v5812
    %6456 = vmatprep.subr.bf16.mxu0 %v5819
    %6457 = vmatpush1.bf16.msra.mxu0 %v5818
    %6458 = vmatprep.subr.bf16.mxu0 %v5825
    %6459 = vmatpush1.bf16.msra.mxu0 %v5824
    %6460 = vmatprep.subr.bf16.mxu0 %v5831
    %6461 = vmatpush1.bf16.msra.mxu0 %v5830
    %6462 = vmatprep.subr.bf16.mxu0 %v5837
    %6463 = vmatpush1.bf16.msra.mxu0 %v5836
    %6464 = vmatprep.subr.bf16.mxu0 %v5843
    %6465 = vmatpush1.bf16.msra.mxu0 %v5842
    %6466 = vmatprep.subr.bf16.mxu0 %v5849
    %6467 = vmatpush1.bf16.msra.mxu0 %v5848
    %6468 = vmatprep.subr.bf16.mxu0 %v5855
    %6469 = vmatpush1.bf16.msra.mxu0 %v5854
    %6470 = vmatprep.subr.bf16.mxu0 %v5861
    %6471 = vmatpush1.bf16.msra.mxu0 %v5860
    %6472 = vmatprep.subr.bf16.mxu0 %v5867
    %6473 = vmatpush1.bf16.msra.mxu0 %v5866
    %6474 = vmatprep.subr.bf16.mxu0 %v5873
    %6475 = vmatpush1.bf16.msra.mxu0 %v5872
    %6476 = vmatprep.subr.bf16.mxu0 %v5879
    %6477 = vmatpush1.bf16.msra.mxu0 %v5878
    %6478 = vmatprep.subr.bf16.mxu0 %v5885
    %6479 = vmatpush1.bf16.msra.mxu0 %v5884
    %6480 = vmatprep.subr.bf16.mxu0 %v5891
    %6481 = vmatpush1.bf16.msra.mxu0 %v5890
    %6482 = vmatprep.mubr.bf16.mxu0 %v4515
    %6483 = vmatmul.mubr.bf16.gmra.mrb[0].mxu0 %v4514
    %v6484 = vpop.f32.mrb[0].mxu0
    %v6485 = vadd.f32 %v6442, %v6484
    %v6486 = vpop.f32.mrb[0].mxu0
    %v6487 = vadd.f32 %v6444, %v6486
    %v6488 = vpop.f32.mrb[0].mxu0
    %v6489 = vadd.f32 %v6446, %v6488
    %v6490 = vpop.f32.mrb[0].mxu0
    %v6491 = vadd.f32 %v6448, %v6490
    %6492 = vdwg.mxu0
    %6493 = vmatprep.subr.bf16.mxu0 %v5897
    %6494 = vmatpush1.bf16.msra.mxu0 %v5896
    %6495 = vmatprep.subr.bf16.mxu0 %v5903
    %6496 = vmatpush1.bf16.msra.mxu0 %v5902
    %6497 = vmatprep.subr.bf16.mxu0 %v5909
    %6498 = vmatpush1.bf16.msra.mxu0 %v5908
    %6499 = vmatprep.subr.bf16.mxu0 %v5915
    %6500 = vmatpush1.bf16.msra.mxu0 %v5914
    %6501 = vmatprep.subr.bf16.mxu0 %v5921
    %6502 = vmatpush1.bf16.msra.mxu0 %v5920
    %6503 = vmatprep.subr.bf16.mxu0 %v5927
    %6504 = vmatpush1.bf16.msra.mxu0 %v5926
    %6505 = vmatprep.subr.bf16.mxu0 %v5933
    %6506 = vmatpush1.bf16.msra.mxu0 %v5932
    %6507 = vmatprep.subr.bf16.mxu0 %v5939
    %6508 = vmatpush1.bf16.msra.mxu0 %v5938
    %6509 = vmatprep.subr.bf16.mxu0 %v5945
    %6510 = vmatpush1.bf16.msra.mxu0 %v5944
    %6511 = vmatprep.subr.bf16.mxu0 %v5951
    %6512 = vmatpush1.bf16.msra.mxu0 %v5950
    %6513 = vmatprep.subr.bf16.mxu0 %v5957
    %6514 = vmatpush1.bf16.msra.mxu0 %v5956
    %6515 = vmatprep.subr.bf16.mxu0 %v5963
    %6516 = vmatpush1.bf16.msra.mxu0 %v5962
    %6517 = vmatprep.subr.bf16.mxu0 %v5969
    %6518 = vmatpush1.bf16.msra.mxu0 %v5968
    %6519 = vmatprep.subr.bf16.mxu0 %v5975
    %6520 = vmatpush1.bf16.msra.mxu0 %v5974
    %6521 = vmatprep.subr.bf16.mxu0 %v5981
    %6522 = vmatpush1.bf16.msra.mxu0 %v5980
    %6523 = vmatprep.subr.bf16.mxu0 %v5987
    %6524 = vmatpush1.bf16.msra.mxu0 %v5986
    %6525 = vmatprep.mubr.bf16.mxu0 %v4517
    %6526 = vmatmul.mubr.bf16.gmra.mrb[0].mxu0 %v4516
    %v6527 = vpop.f32.mrb[0].mxu0
    %v6528 = vadd.f32 %v6485, %v6527
    %v6529 = vpop.f32.mrb[0].mxu0
    %v6530 = vadd.f32 %v6487, %v6529
    %v6531 = vpop.f32.mrb[0].mxu0
    %v6532 = vadd.f32 %v6489, %v6531
    %v6533 = vpop.f32.mrb[0].mxu0
    %v6534 = vadd.f32 %v6491, %v6533
    %6535 = vdwg.mxu0
    %6536 = vmatprep.subr.bf16.mxu0 %v5707
    %6537 = vmatpush1.bf16.msra.mxu0 %v5706
    %6538 = vmatprep.subr.bf16.mxu0 %v5713
    %6539 = vmatpush1.bf16.msra.mxu0 %v5712
    %6540 = vmatprep.subr.bf16.mxu0 %v5719
    %6541 = vmatpush1.bf16.msra.mxu0 %v5718
    %6542 = vmatprep.subr.bf16.mxu0 %v5725
    %6543 = vmatpush1.bf16.msra.mxu0 %v5724
    %6544 = vmatprep.subr.bf16.mxu0 %v5731
    %6545 = vmatpush1.bf16.msra.mxu0 %v5730
    %6546 = vmatprep.subr.bf16.mxu0 %v5737
    %6547 = vmatpush1.bf16.msra.mxu0 %v5736
    %6548 = vmatprep.subr.bf16.mxu0 %v5743
    %6549 = vmatpush1.bf16.msra.mxu0 %v5742
    %6550 = vmatprep.subr.bf16.mxu0 %v5749
    %6551 = vmatpush1.bf16.msra.mxu0 %v5748
    %6552 = vmatprep.subr.bf16.mxu0 %v5755
    %6553 = vmatpush1.bf16.msra.mxu0 %v5754
    %6554 = vmatprep.subr.bf16.mxu0 %v5761
    %6555 = vmatpush1.bf16.msra.mxu0 %v5760
    %6556 = vmatprep.subr.bf16.mxu0 %v5767
    %6557 = vmatpush1.bf16.msra.mxu0 %v5766
    %6558 = vmatprep.subr.bf16.mxu0 %v5773
    %6559 = vmatpush1.bf16.msra.mxu0 %v5772
    %6560 = vmatprep.subr.bf16.mxu0 %v5779
    %6561 = vmatpush1.bf16.msra.mxu0 %v5778
    %6562 = vmatprep.subr.bf16.mxu0 %v5785
    %6563 = vmatpush1.bf16.msra.mxu0 %v5784
    %6564 = vmatprep.subr.bf16.mxu0 %v5791
    %6565 = vmatpush1.bf16.msra.mxu0 %v5790
    %6566 = vmatprep.subr.bf16.mxu0 %v5797
    %6567 = vmatpush1.bf16.msra.mxu0 %v5796
    %6568 = vmatprep.mubr.bf16.mxu0 %v4513
    %6569 = vmatmul.mubr.bf16.gmra.mrb[0].mxu0 %v4512
    %v6570 = vpop.f32.mrb[0].mxu0
    %v6571 = vadd.f32 %v4827, %v6570
    %v6572 = vpop.f32.mrb[0].mxu0
    %v6573 = vadd.f32 %v4831, %v6572
    %v6574 = vpop.f32.mrb[0].mxu0
    %v6575 = vadd.f32 %v4827, %v6574
    %v6576 = vpop.f32.mrb[0].mxu0
    %v6577 = vadd.f32 %v4831, %v6576
    %6578 = vdwg.mxu0
    %6579 = vmatprep.subr.bf16.mxu0 %v5803
    %6580 = vmatpush1.bf16.msra.mxu0 %v5802
    %6581 = vmatprep.subr.bf16.mxu0 %v5809
    %6582 = vmatpush1.bf16.msra.mxu0 %v5808
    %6583 = vmatprep.subr.bf16.mxu0 %v5815
    %6584 = vmatpush1.bf16.msra.mxu0 %v5814
    %6585 = vmatprep.subr.bf16.mxu0 %v5821
    %6586 = vmatpush1.bf16.msra.mxu0 %v5820
    %6587 = vmatprep.subr.bf16.mxu0 %v5827
    %6588 = vmatpush1.bf16.msra.mxu0 %v5826
    %6589 = vmatprep.subr.bf16.mxu0 %v5833
    %6590 = vmatpush1.bf16.msra.mxu0 %v5832
    %6591 = vmatprep.subr.bf16.mxu0 %v5839
    %6592 = vmatpush1.bf16.msra.mxu0 %v5838
    %6593 = vmatprep.subr.bf16.mxu0 %v5845
    %6594 = vmatpush1.bf16.msra.mxu0 %v5844
    %6595 = vmatprep.subr.bf16.mxu0 %v5851
    %6596 = vmatpush1.bf16.msra.mxu0 %v5850
    %6597 = vmatprep.subr.bf16.mxu0 %v5857
    %6598 = vmatpush1.bf16.msra.mxu0 %v5856
    %6599 = vmatprep.subr.bf16.mxu0 %v5863
    %6600 = vmatpush1.bf16.msra.mxu0 %v5862
    %6601 = vmatprep.subr.bf16.mxu0 %v5869
    %6602 = vmatpush1.bf16.msra.mxu0 %v5868
    %6603 = vmatprep.subr.bf16.mxu0 %v5875
    %6604 = vmatpush1.bf16.msra.mxu0 %v5874
    %6605 = vmatprep.subr.bf16.mxu0 %v5881
    %6606 = vmatpush1.bf16.msra.mxu0 %v5880
    %6607 = vmatprep.subr.bf16.mxu0 %v5887
    %6608 = vmatpush1.bf16.msra.mxu0 %v5886
    %6609 = vmatprep.subr.bf16.mxu0 %v5893
    %6610 = vmatpush1.bf16.msra.mxu0 %v5892
    %6611 = vmatprep.mubr.bf16.mxu0 %v4515
    %6612 = vmatmul.mubr.bf16.gmra.mrb[0].mxu0 %v4514
    %v6613 = vpop.f32.mrb[0].mxu0
    %v6614 = vadd.f32 %v6571, %v6613
    %v6615 = vpop.f32.mrb[0].mxu0
    %v6616 = vadd.f32 %v6573, %v6615
    %v6617 = vpop.f32.mrb[0].mxu0
    %v6618 = vadd.f32 %v6575, %v6617
    %v6619 = vpop.f32.mrb[0].mxu0
    %v6620 = vadd.f32 %v6577, %v6619
    %6621 = vdwg.mxu0
    %6622 = vmatprep.subr.bf16.mxu0 %v5899
    %6623 = vmatpush1.bf16.msra.mxu0 %v5898
    %6624 = vmatprep.subr.bf16.mxu0 %v5905
    %6625 = vmatpush1.bf16.msra.mxu0 %v5904
    %6626 = vmatprep.subr.bf16.mxu0 %v5911
    %6627 = vmatpush1.bf16.msra.mxu0 %v5910
    %6628 = vmatprep.subr.bf16.mxu0 %v5917
    %6629 = vmatpush1.bf16.msra.mxu0 %v5916
    %6630 = vmatprep.subr.bf16.mxu0 %v5923
    %6631 = vmatpush1.bf16.msra.mxu0 %v5922
    %6632 = vmatprep.subr.bf16.mxu0 %v5929
    %6633 = vmatpush1.bf16.msra.mxu0 %v5928
    %6634 = vmatprep.subr.bf16.mxu0 %v5935
    %6635 = vmatpush1.bf16.msra.mxu0 %v5934
    %6636 = vmatprep.subr.bf16.mxu0 %v5941
    %6637 = vmatpush1.bf16.msra.mxu0 %v5940
    %6638 = vmatprep.subr.bf16.mxu0 %v5947
    %6639 = vmatpush1.bf16.msra.mxu0 %v5946
    %6640 = vmatprep.subr.bf16.mxu0 %v5953
    %6641 = vmatpush1.bf16.msra.mxu0 %v5952
    %6642 = vmatprep.subr.bf16.mxu0 %v5959
    %6643 = vmatpush1.bf16.msra.mxu0 %v5958
    %6644 = vmatprep.subr.bf16.mxu0 %v5965
    %6645 = vmatpush1.bf16.msra.mxu0 %v5964
    %6646 = vmatprep.subr.bf16.mxu0 %v5971
    %6647 = vmatpush1.bf16.msra.mxu0 %v5970
    %6648 = vmatprep.subr.bf16.mxu0 %v5977
    %6649 = vmatpush1.bf16.msra.mxu0 %v5976
    %6650 = vmatprep.subr.bf16.mxu0 %v5983
    %6651 = vmatpush1.bf16.msra.mxu0 %v5982
    %6652 = vmatprep.subr.bf16.mxu0 %v5989
    %6653 = vmatpush1.bf16.msra.mxu0 %v5988
    %6654 = vmatprep.mubr.bf16.mxu0 %v4517
    %6655 = vmatmul.mubr.bf16.gmra.mrb[0].mxu0 %v4516
    %v6656 = vpop.f32.mrb[0].mxu0
    %v6657 = vadd.f32 %v6614, %v6656
    %v6658 = vpop.f32.mrb[0].mxu0
    %v6659 = vadd.f32 %v6616, %v6658
    %v6660 = vpop.f32.mrb[0].mxu0
    %v6661 = vadd.f32 %v6618, %v6660
    %v6662 = vpop.f32.mrb[0].mxu0
    %v6663 = vadd.f32 %v6620, %v6662
    %6664 = vdwg.mxu0
    %v6665 = vxor.u32 %v6399, 2147483648
    %v6666 = vxor.u32 %v6401, 2147483648
    %v6667 = vxor.u32 %v6528, 2147483648
    %v6668 = vxor.u32 %v6530, 2147483648
    %v6669 = vxor.u32 %v6657, 2147483648
    %v6670 = vxor.u32 %v6659, 2147483648
    %v6671 = vxor.u32 %v6403, 2147483648
    %v6672 = vxor.u32 %v6405, 2147483648
    %v6673 = vxor.u32 %v6532, 2147483648
    %v6674 = vxor.u32 %v6534, 2147483648
    %v6675 = vxor.u32 %v6661, 2147483648
    %v6676 = vxor.u32 %v6663, 2147483648
    %v6677 = vmul.f32 %v6665, 1.442695
    %v6678 = vpow.pop %v6677
    %v6679 = vmul.f32 %v6666, 1.442695
    %v6680 = vpow.pop %v6679
    %v6681 = vmul.f32 %v6667, 1.442695
    %v6682 = vpow.pop %v6681
    %v6683 = vmul.f32 %v6668, 1.442695
    %v6684 = vpow.pop %v6683
    %v6685 = vmul.f32 %v6669, 1.442695
    %v6686 = vpow.pop %v6685
    %v6687 = vmul.f32 %v6670, 1.442695
    %v6688 = vpow.pop %v6687
    %v6689 = vmul.f32 %v6671, 1.442695
    %v6690 = vpow.pop %v6689
    %v6691 = vmul.f32 %v6672, 1.442695
    %v6692 = vpow.pop %v6691
    %v6693 = vmul.f32 %v6673, 1.442695
    %v6694 = vpow.pop %v6693
    %v6695 = vmul.f32 %v6674, 1.442695
    %v6696 = vpow.pop %v6695
    %v6697 = vmul.f32 %v6675, 1.442695
    %v6698 = vpow.pop %v6697
    %v6699 = vmul.f32 %v6676, 1.442695
    %v6700 = vpow.pop %v6699
    %v6701 = vadd.f32 %v6678, 1.0
    %v6702 = vadd.f32 %v6680, 1.0
    %v6703 = vadd.f32 %v6682, 1.0
    %v6704 = vadd.f32 %v6684, 1.0
    %v6705 = vadd.f32 %v6686, 1.0
    %v6706 = vadd.f32 %v6688, 1.0
    %v6707 = vadd.f32 %v6690, 1.0
    %v6708 = vadd.f32 %v6692, 1.0
    %v6709 = vadd.f32 %v6694, 1.0
    %v6710 = vadd.f32 %v6696, 1.0
    %v6711 = vadd.f32 %v6698, 1.0
    %v6712 = vadd.f32 %v6700, 1.0
    %v6713 = vrcp.pop %v6701
    %v6714 = vmul.f32 1.0, %v6713
    %v6715 = vrcp.pop %v6702
    %v6716 = vmul.f32 1.0, %v6715
    %v6717 = vrcp.pop %v6703
    %v6718 = vmul.f32 1.0, %v6717
    %v6719 = vrcp.pop %v6704
    %v6720 = vmul.f32 1.0, %v6719
    %v6721 = vrcp.pop %v6705
    %v6722 = vmul.f32 1.0, %v6721
    %v6723 = vrcp.pop %v6706
    %v6724 = vmul.f32 1.0, %v6723
    %v6725 = vrcp.pop %v6707
    %v6726 = vmul.f32 1.0, %v6725
    %v6727 = vrcp.pop %v6708
    %v6728 = vmul.f32 1.0, %v6727
    %v6729 = vrcp.pop %v6709
    %v6730 = vmul.f32 1.0, %v6729
    %v6731 = vrcp.pop %v6710
    %v6732 = vmul.f32 1.0, %v6731
    %v6733 = vrcp.pop %v6711
    %v6734 = vmul.f32 1.0, %v6733
    %v6735 = vrcp.pop %v6712
    %v6736 = vmul.f32 1.0, %v6735
    %v6737 = vunpack.c.l.bf16 %v154
    %v6738 = vunpack.c.h.bf16 %v154
    %v6739 = vunpack.c.l.bf16 %v155
    %v6740 = vunpack.c.h.bf16 %v155
    %v6741 = vunpack.c.l.bf16 %v156
    %v6742 = vunpack.c.h.bf16 %v156
    %v6743 = vunpack.c.l.bf16 %v157
    %v6744 = vunpack.c.h.bf16 %v157
    %v6745 = vunpack.c.l.bf16 %v158
    %v6746 = vunpack.c.h.bf16 %v158
    %v6747 = vunpack.c.l.bf16 %v159
    %v6748 = vunpack.c.h.bf16 %v159
    %v6749 = vunpack.c.l.bf16 %v160
    %v6750 = vunpack.c.h.bf16 %v160
    %v6751 = vunpack.c.l.bf16 %v161
    %v6752 = vunpack.c.h.bf16 %v161
    %v6753 = vunpack.c.l.bf16 %v162
    %v6754 = vunpack.c.h.bf16 %v162
    %v6755 = vunpack.c.l.bf16 %v163
    %v6756 = vunpack.c.h.bf16 %v163
    %v6757 = vunpack.c.l.bf16 %v164
    %v6758 = vunpack.c.h.bf16 %v164
    %v6759 = vunpack.c.l.bf16 %v165
    %v6760 = vunpack.c.h.bf16 %v165
    %v6761 = vmul.f32 %v6714, %v6737
    %v6762 = vmul.f32 %v6716, %v6738
    %v6763 = vmul.f32 %v6718, %v6739
    %v6764 = vmul.f32 %v6720, %v6740
    %v6765 = vmul.f32 %v6722, %v6741
    %v6766 = vmul.f32 %v6724, %v6742
    %v6767 = vmul.f32 %v6726, %v6743
    %v6768 = vmul.f32 %v6728, %v6744
    %v6769 = vmul.f32 %v6730, %v6745
    %v6770 = vmul.f32 %v6732, %v6746
    %v6771 = vmul.f32 %v6734, %v6747
    %v6772 = vmul.f32 %v6736, %v6748
    %v6773 = vsub.f32 1.0, %v6714
    %v6774 = vsub.f32 1.0, %v6716
    %v6775 = vsub.f32 1.0, %v6718
    %v6776 = vsub.f32 1.0, %v6720
    %v6777 = vsub.f32 1.0, %v6722
    %v6778 = vsub.f32 1.0, %v6724
    %v6779 = vsub.f32 1.0, %v6726
    %v6780 = vsub.f32 1.0, %v6728
    %v6781 = vsub.f32 1.0, %v6730
    %v6782 = vsub.f32 1.0, %v6732
    %v6783 = vsub.f32 1.0, %v6734
    %v6784 = vsub.f32 1.0, %v6736
    %v6785 = vmul.f32 %v6773, %v6749
    %v6786 = vmul.f32 %v6774, %v6750
    %v6787 = vmul.f32 %v6775, %v6751
    %v6788 = vmul.f32 %v6776, %v6752
    %v6789 = vmul.f32 %v6777, %v6753
    %v6790 = vmul.f32 %v6778, %v6754
    %v6791 = vmul.f32 %v6779, %v6755
    %v6792 = vmul.f32 %v6780, %v6756
    %v6793 = vmul.f32 %v6781, %v6757
    %v6794 = vmul.f32 %v6782, %v6758
    %v6795 = vmul.f32 %v6783, %v6759
    %v6796 = vmul.f32 %v6784, %v6760
    %v6797 = vadd.f32 %v6761, %v6785
    %v6798 = vadd.f32 %v6762, %v6786
    %v6799 = vadd.f32 %v6763, %v6787
    %v6800 = vadd.f32 %v6764, %v6788
    %v6801 = vadd.f32 %v6765, %v6789
    %v6802 = vadd.f32 %v6766, %v6790
    %v6803 = vadd.f32 %v6767, %v6791
    %v6804 = vadd.f32 %v6768, %v6792
    %v6805 = vadd.f32 %v6769, %v6793
    %v6806 = vadd.f32 %v6770, %v6794
    %v6807 = vadd.f32 %v6771, %v6795
    %v6808 = vadd.f32 %v6772, %v6796
    %v6809 = vpack.c.bf16 %v6803, %v6797
    %v6810 = vpack.c.bf16 %v6804, %v6798
    %v6811 = vpack.c.bf16 %v6805, %v6799
    %v6812 = vpack.c.bf16 %v6806, %v6800
    %v6813 = vpack.c.bf16 %v6807, %v6801
    %v6814 = vpack.c.bf16 %v6808, %v6802
    %v6821 = vunpack.c.l.b16 %v6809
    %v6822 = vunpack.c.l.b16 %v6810
    %v6823 = vunpack.c.l.b16 %v6811
    %v6824 = vunpack.c.l.b16 %v6812
    %v6825 = vunpack.c.l.b16 %v6813
    %v6826 = vunpack.c.l.b16 %v6814
    %v6827 = vunpack.c.h.b16 %v6809
    %v6828 = vunpack.c.h.b16 %v6810
    %v6829 = vunpack.c.h.b16 %v6811
    %v6830 = vunpack.c.h.b16 %v6812
    %v6831 = vunpack.c.h.b16 %v6813
    %v6832 = vunpack.c.h.b16 %v6814
    %v6833 = vpack.c.b16 %v6822, %v6821
    %v6834 = vpack.c.b16 %v6824, %v6823
    %v6835 = vpack.c.b16 %v6826, %v6825
    %v6836 = vpack.c.b16 %v6828, %v6827
    %v6837 = vpack.c.b16 %v6830, %v6829
    %v6838 = vpack.c.b16 %v6832, %v6831
    %6845 = vst [vmem:[#allocation17] sm:$0xff] %v6833
    %6846 = vst [vmem:[#allocation17 + $0x8] sm:$0xff] %v6834
    %6847 = vst [vmem:[#allocation17 + $0x10] sm:$0xff] %v6835
    %6848 = vst [vmem:[#allocation17 + $0x18] sm:$0xff] %v6836
    %6849 = vst [vmem:[#allocation17 + $0x20] sm:$0xff] %v6837
    %6850 = vst [vmem:[#allocation17 + $0x28] sm:$0xff] %v6838
    %v6851 = vld [vmem:[#allocation7] sm:$0xff]
    %v6852 = vld [vmem:[#allocation7 + $0x8] sm:$0xff]
    %v6853 = vld [vmem:[#allocation7 + $0x10] sm:$0xff]
    %v6854 = vld [vmem:[#allocation7 + $0x18] sm:$0xff]
    %v6855 = vld [vmem:[#allocation7 + $0x20] sm:$0xff]
    %v6856 = vld [vmem:[#allocation7 + $0x28] sm:$0xff]
    %v6857 = vunpack.c.l.bf16 %v6851
    %v6858 = vunpack.c.h.bf16 %v6851
    %v6859 = vunpack.c.l.bf16 %v6852
    %v6860 = vunpack.c.h.bf16 %v6852
    %v6861 = vunpack.c.l.bf16 %v6853
    %v6862 = vunpack.c.h.bf16 %v6853
    %v6863 = vunpack.c.l.bf16 %v6854
    %v6864 = vunpack.c.h.bf16 %v6854
    %v6865 = vunpack.c.l.bf16 %v6855
    %v6866 = vunpack.c.h.bf16 %v6855
    %v6867 = vunpack.c.l.bf16 %v6856
    %v6868 = vunpack.c.h.bf16 %v6856
    %v6869 = vld [vmem:[#allocation8] sm:$0xff]
    %v6870 = vld [vmem:[#allocation8 + $0x8] sm:$0xff]
    %v6871 = vld [vmem:[#allocation8 + $0x10] sm:$0xff]
    %v6872 = vld [vmem:[#allocation8 + $0x18] sm:$0xff]
    %v6873 = vld [vmem:[#allocation8 + $0x20] sm:$0xff]
    %v6874 = vld [vmem:[#allocation8 + $0x28] sm:$0xff]
    %v6875 = vunpack.c.l.bf16 %v6869
    %v6876 = vunpack.c.h.bf16 %v6869
    %v6877 = vunpack.c.l.bf16 %v6870
    %v6878 = vunpack.c.h.bf16 %v6870
    %v6879 = vunpack.c.l.bf16 %v6871
    %v6880 = vunpack.c.h.bf16 %v6871
    %v6881 = vunpack.c.l.bf16 %v6872
    %v6882 = vunpack.c.h.bf16 %v6872
    %v6883 = vunpack.c.l.bf16 %v6873
    %v6884 = vunpack.c.h.bf16 %v6873
    %v6885 = vunpack.c.l.bf16 %v6874
    %v6886 = vunpack.c.h.bf16 %v6874
    %v6887 = vadd.f32 %v6857, %v6875
    %v6888 = vadd.f32 %v6858, %v6876
    %v6889 = vadd.f32 %v6859, %v6877
    %v6890 = vadd.f32 %v6860, %v6878
    %v6891 = vadd.f32 %v6861, %v6879
    %v6892 = vadd.f32 %v6862, %v6880
    %v6893 = vadd.f32 %v6863, %v6881
    %v6894 = vadd.f32 %v6864, %v6882
    %v6895 = vadd.f32 %v6865, %v6883
    %v6896 = vadd.f32 %v6866, %v6884
    %v6897 = vadd.f32 %v6867, %v6885
    %v6898 = vadd.f32 %v6868, %v6886
    %v6899 = vmul.f32 %v6887, 0.5
    %v6900 = vmul.f32 %v6888, 0.5
    %v6901 = vmul.f32 %v6889, 0.5
    %v6902 = vmul.f32 %v6890, 0.5
    %v6903 = vmul.f32 %v6891, 0.5
    %v6904 = vmul.f32 %v6892, 0.5
    %v6905 = vmul.f32 %v6893, 0.5
    %v6906 = vmul.f32 %v6894, 0.5
    %v6907 = vmul.f32 %v6895, 0.5
    %v6908 = vmul.f32 %v6896, 0.5
    %v6909 = vmul.f32 %v6897, 0.5
    %v6910 = vmul.f32 %v6898, 0.5
    %v6911 = vpack.c.bf16 %v6905, %v6899
    %v6912 = vpack.c.bf16 %v6906, %v6900
    %v6913 = vpack.c.bf16 %v6907, %v6901
    %v6914 = vpack.c.bf16 %v6908, %v6902
    %v6915 = vpack.c.bf16 %v6909, %v6903
    %v6916 = vpack.c.bf16 %v6910, %v6904
    %v6923 = vunpack.c.l.b16 %v6911
    %v6924 = vunpack.c.l.b16 %v6912
    %v6925 = vunpack.c.l.b16 %v6913
    %v6926 = vunpack.c.l.b16 %v6914
    %v6927 = vunpack.c.l.b16 %v6915
    %v6928 = vunpack.c.l.b16 %v6916
    %v6929 = vunpack.c.h.b16 %v6911
    %v6930 = vunpack.c.h.b16 %v6912
    %v6931 = vunpack.c.h.b16 %v6913
    %v6932 = vunpack.c.h.b16 %v6914
    %v6933 = vunpack.c.h.b16 %v6915
    %v6934 = vunpack.c.h.b16 %v6916
    %v6935 = vpack.c.b16 %v6924, %v6923
    %v6936 = vpack.c.b16 %v6926, %v6925
    %v6937 = vpack.c.b16 %v6928, %v6927
    %v6938 = vpack.c.b16 %v6930, %v6929
    %v6939 = vpack.c.b16 %v6932, %v6931
    %v6940 = vpack.c.b16 %v6934, %v6933
    %6947 = vst [vmem:[#allocation18] sm:$0xff] %v6935
    %6948 = vst [vmem:[#allocation18 + $0x8] sm:$0xff] %v6936
    %6949 = vst [vmem:[#allocation18 + $0x10] sm:$0xff] %v6937
    %6950 = vst [vmem:[#allocation18 + $0x18] sm:$0xff] %v6938
    %6951 = vst [vmem:[#allocation18 + $0x20] sm:$0xff] %v6939
    %6952 = vst [vmem:[#allocation18 + $0x28] sm:$0xff] %v6940
    // Predicated region
    $region74: #{tpu_custom_call.1} parent=1 // pred_check
      _
    $region75: #{tpu_custom_call.1} parent=1 // pred_check_branch
      %6954 = sbr.rel (0) target = $region77
    $region76: #{tpu_custom_call.1} parent=1 // pred_region
      %s6956 = ssub.s32 768, 768
      %6957 = vsyncadd [#allocation4], %s6956
      %s6958 = sshll.u32 [#allocation17], 4
      %s6959 = int_to_ptr.vmem [resolvable:$true] %s6958
      %6964 = dma.vmem_to_hbm [thread:$0]  %s6959, 768, %s9, [#allocation4], 384, 384, 24
    $region77: #{tpu_custom_call.1} parent=1 // pred_fallthru
      _
    // Predicated region
    $region78: #{tpu_custom_call.1} parent=1 // pred_check
      _
    $region79: #{tpu_custom_call.1} parent=1 // pred_check_branch
      %6966 = sbr.rel (0) target = $region81
    $region80: #{tpu_custom_call.1} parent=1 // pred_region
      %s6968 = ssub.s32 768, 768
      %6969 = vsyncadd [#allocation19], %s6968
      %s6970 = sshll.u32 [#allocation18], 4
      %s6971 = int_to_ptr.vmem [resolvable:$true] %s6970
      %6976 = dma.vmem_to_hbm [thread:$0]  %s6971, 768, %s10, [#allocation19], 384, 384, 24
    $region81: #{tpu_custom_call.1} parent=1 // pred_fallthru
      _
    // Predicated region
    $region82: #{tpu_custom_call.1} parent=1 // pred_check
      _
    $region83: #{tpu_custom_call.1} parent=1 // pred_check_branch
      %6978 = sbr.rel (0) target = $region85
    $region84: #{tpu_custom_call.1} parent=1 // pred_region
      %6979 = dma.done [#allocation4], 768
    $region85: #{tpu_custom_call.1} parent=1 // pred_fallthru
      _
    // Predicated region
    $region86: #{tpu_custom_call.1} parent=1 // pred_check
      _
    $region87: #{tpu_custom_call.1} parent=1 // pred_check_branch
      %6981 = sbr.rel (0) target = $region89
    $region88: #{tpu_custom_call.1} parent=1 // pred_region
      %6982 = dma.done [#allocation19], 768
    $region89: #{tpu_custom_call.1} parent=1 // pred_fallthru
      _
    %6983 = vsyncpa [#allocation3], 1
    %6984 = vsyncpa [#allocation6], 1
    %6985 = vsyncpa [#allocation9], 1
    %6986 = vsyncpa [#allocation12], 1
    %6987 = vsyncpa [#allocation15], 1
    %6988 = vsyncpa [#allocation4], 1
    %6989 = vsyncpa [#allocation19], 1

</llo_original>
